<compile_context>
chip_gen: v7x
topology: tpu7x:2x2x1
jax: 0.10.0
libtpu: 0.0.40
codegen_flags: <defaults>
</compile_context>

<pallas_src>
import functools

import jax
import jax.numpy as jnp
from jax import lax
from jax.experimental import pallas as pl
from jax.experimental.pallas import tpu as pltpu

VMEM_SPEC = pl.BlockSpec(memory_space=pltpu.MemorySpace.VMEM)
NEG = -1e9                      # large-negative padding value for masked label lanes


def _default_vmem_limit():
    # 3/4 of physical VMEM leaves headroom for Mosaic internal scratch;
    # ~48 MiB on v7x (64 MiB physical), 96 MiB on v5e/v6e (128 MiB physical).
    try:
        cap = int(pltpu.get_tpu_info().vmem_capacity_bytes)
        return min(cap * 3 // 4, 96 * 1024 * 1024)
    except Exception:
        return 48 * 1024 * 1024


VMEM_LIMIT = _default_vmem_limit()


def _round_up(x, m):
    return ((x + m - 1) // m) * m


def _pick_tile(dim, target, aligns):
    """Largest tile <= target that divides dim and is a multiple of one of
    `aligns` (tried in order), else the full dim (full-dim block is legal)."""
    if dim <= target:
        return dim
    for align in aligns:
        t = (target // align) * align
        while t >= align:
            if dim % t == 0:
                return t
            t -= align
    return dim


# ----------------------------------------------------------------------------
# Tiled linear kernel:  y = act(x @ w + b)
#   grid = (M/tm, N/tn, K/tk), bf16 operands, f32 accumulator scratch
# ----------------------------------------------------------------------------
def _linear_kernel(x_ref, w_ref, b_ref, o_ref, acc_ref, *, activation):
    @pl.when(pl.program_id(2) == 0)
    def _():
        acc_ref[...] = jnp.zeros_like(acc_ref)

    acc_ref[...] += jnp.dot(x_ref[...], w_ref[...],
                            preferred_element_type=jnp.float32)

    @pl.when(pl.program_id(2) == pl.num_programs(2) - 1)
    def _():
        y = acc_ref[...] + b_ref[...]            # epilogue stays f32 (v5e-safe)
        if activation == "gelu":
            y = jax.nn.gelu(y, approximate=True)
        o_ref[...] = y.astype(o_ref.dtype)


def pallas_linear(x, w, b, activation=None, out_dtype=jnp.float32):
    """x: [..., K], w: [K, N], b: [N] -> [..., N] (out_dtype)."""
    orig_shape = x.shape
    K = orig_shape[-1]
    x2 = x.reshape(-1, K)
    M = x2.shape[0]
    N = w.shape[1]
    tm = _pick_tile(M, 512, (16, 8))
    tn = _pick_tile(N, 1024, (256, 128))
    tk = _pick_tile(K, 1024, (256, 128))
    grid = (M // tm, N // tn, K // tk)
    out = pl.pallas_call(
        functools.partial(_linear_kernel, activation=activation),
        out_shape=jax.ShapeDtypeStruct((M, N), out_dtype),
        grid=grid,
        in_specs=[pl.BlockSpec((tm, tk), lambda i, j, k: (i, k)),
                  pl.BlockSpec((tk, tn), lambda i, j, k: (k, j)),
                  pl.BlockSpec((1, tn), lambda i, j, k: (0, j))],
        out_specs=pl.BlockSpec((tm, tn), lambda i, j, k: (i, j)),
        scratch_shapes=[pltpu.VMEM((tm, tn), jnp.float32)],
        compiler_params=pltpu.CompilerParams(
            dimension_semantics=("parallel", "parallel", "arbitrary"),
            vmem_limit_bytes=VMEM_LIMIT),
        cost_estimate=pl.CostEstimate(
            flops=2 * M * N * K,
            transcendentals=M * N if activation == "gelu" else 0,
            bytes_accessed=2 * (M * K + K * N) + 4 * M * N),
    )(x2.astype(jnp.bfloat16), w.astype(jnp.bfloat16),
      b.reshape(1, N).astype(jnp.float32))
    return out.reshape(orig_shape[:-1] + (N,))


# ----------------------------------------------------------------------------
# Fused linear + bias + residual-add + LayerNorm kernel:
#   out = LayerNorm(res + x @ w + b)      grid = (M/tm, K/tk)
# ----------------------------------------------------------------------------
def _linear_res_ln_kernel(x_ref, w_ref, b_ref, res_ref, g_ref, beta_ref,
                          o_ref, acc_ref, *, eps):
    @pl.when(pl.program_id(1) == 0)
    def _():
        acc_ref[...] = jnp.zeros_like(acc_ref)

    acc_ref[...] += jnp.dot(x_ref[...], w_ref[...],
                            preferred_element_type=jnp.float32)

    @pl.when(pl.program_id(1) == pl.num_programs(1) - 1)
    def _():
        y = acc_ref[...] + b_ref[...] + res_ref[...]
        mean = jnp.mean(y, axis=-1, keepdims=True)
        var = jnp.mean((y - mean) ** 2, axis=-1, keepdims=True)
        o_ref[...] = ((y - mean) * lax.rsqrt(var + eps)
                      * g_ref[...] + beta_ref[...]).astype(o_ref.dtype)


def pallas_linear_res_ln(x, w, b, res, g, beta, eps=1e-12):
    """x: [..., K] @ w[K, N] + b, add residual res[..., N], LayerNorm over N."""
    orig_shape = res.shape
    K = x.shape[-1]
    N = w.shape[1]
    x2 = x.reshape(-1, K)
    res2 = res.reshape(-1, N).astype(jnp.float32)
    M = x2.shape[0]
    tm = _pick_tile(M, 256, (16, 8))
    tk = _pick_tile(K, 1024, (256, 128))
    grid = (M // tm, K // tk)
    out = pl.pallas_call(
        functools.partial(_linear_res_ln_kernel, eps=eps),
        out_shape=jax.ShapeDtypeStruct((M, N), jnp.float32),
        grid=grid,
        in_specs=[pl.BlockSpec((tm, tk), lambda i, k: (i, k)),
                  pl.BlockSpec((tk, N), lambda i, k: (k, 0)),
                  pl.BlockSpec((1, N), lambda i, k: (0, 0)),
                  pl.BlockSpec((tm, N), lambda i, k: (i, 0)),
                  pl.BlockSpec((1, N), lambda i, k: (0, 0)),
                  pl.BlockSpec((1, N), lambda i, k: (0, 0))],
        out_specs=pl.BlockSpec((tm, N), lambda i, k: (i, 0)),
        scratch_shapes=[pltpu.VMEM((tm, N), jnp.float32)],
        compiler_params=pltpu.CompilerParams(
            dimension_semantics=("parallel", "arbitrary"),
            vmem_limit_bytes=VMEM_LIMIT),
        cost_estimate=pl.CostEstimate(
            flops=2 * M * N * K, transcendentals=0,
            bytes_accessed=2 * (M * K + K * N) + 4 * 2 * M * N),
    )(x2.astype(jnp.bfloat16), w.astype(jnp.bfloat16),
      b.reshape(1, N).astype(jnp.float32), res2,
      g.reshape(1, N).astype(jnp.float32), beta.reshape(1, N).astype(jnp.float32))
    return out.reshape(orig_shape)


# ----------------------------------------------------------------------------
# Standalone LayerNorm kernel (embeddings), tiled over rows
# ----------------------------------------------------------------------------
def _layernorm_kernel(x_ref, g_ref, b_ref, o_ref, *, eps):
    x = x_ref[...]
    mean = jnp.mean(x, axis=-1, keepdims=True)
    var = jnp.mean((x - mean) ** 2, axis=-1, keepdims=True)
    o_ref[...] = (x - mean) * lax.rsqrt(var + eps) * g_ref[...] + b_ref[...]


def pallas_layernorm(x, g, b, eps=1e-12):
    shp = x.shape
    D = shp[-1]
    x2 = x.reshape(-1, D).astype(jnp.float32)
    M = x2.shape[0]
    tm = _pick_tile(M, 512, (16, 8))
    out = pl.pallas_call(
        functools.partial(_layernorm_kernel, eps=eps),
        out_shape=jax.ShapeDtypeStruct((M, D), jnp.float32),
        grid=(M // tm,),
        in_specs=[pl.BlockSpec((tm, D), lambda i: (i, 0)),
                  pl.BlockSpec((1, D), lambda i: (0, 0)),
                  pl.BlockSpec((1, D), lambda i: (0, 0))],
        out_specs=pl.BlockSpec((tm, D), lambda i: (i, 0)),
        compiler_params=pltpu.CompilerParams(
            dimension_semantics=("parallel",),
            vmem_limit_bytes=VMEM_LIMIT),
    )(x2, g.reshape(1, D).astype(jnp.float32), b.reshape(1, D).astype(jnp.float32))
    return out.reshape(shp)


# ----------------------------------------------------------------------------
# Multi-head attention directly from the fused [B, T, 3H] qkv tensor.
# Grid over batch; static per-head lane slices inside the kernel (no HBM
# split_heads / merge transposes); bf16 lane-dense [B, T, H] output.
# ----------------------------------------------------------------------------
def _attention_kernel(qkv_ref, bias_ref, o_ref, *, nh, dh, scale):
    H = nh * dh
    qkv = qkv_ref[0]          # [T, 3H] bf16
    bias = bias_ref[0]        # [1, T]  f32
    heads_out = []
    for h in range(nh):       # static unroll over heads
        qh = qkv[:, h * dh:(h + 1) * dh]
        kh = qkv[:, H + h * dh:H + (h + 1) * dh]
        vh = qkv[:, 2 * H + h * dh:2 * H + (h + 1) * dh]
        # contract head_dim of q with head_dim of k (no in-kernel transpose)
        s = lax.dot_general(qh, kh, (((1,), (1,)), ((), ())),
                            preferred_element_type=jnp.float32) * scale + bias
        s = s - jnp.max(s, axis=-1, keepdims=True)
        p = jnp.exp(s)
        p = p * pl.reciprocal(jnp.sum(p, axis=-1, keepdims=True), approx=True)
        heads_out.append(jnp.dot(p.astype(vh.dtype), vh,
                                 preferred_element_type=jnp.float32))
    o_ref[0] = jnp.concatenate(heads_out, axis=-1).astype(o_ref.dtype)


def pallas_attention(qkv, bias, num_heads, head_dim):
    """qkv: [B, T, 3H] bf16; bias: [B, 1, T] additive mask (f32) -> [B, T, H] bf16."""
    # TODO(synk): for long sequences (T >= 2k) this should become a flash-style
    #             kernel with q/kv tiles and online softmax to keep VMEM O(tile).
    B, T, threeH = qkv.shape
    H = num_heads * head_dim
    scale = 1.0 / (head_dim ** 0.5)
    return pl.pallas_call(
        functools.partial(_attention_kernel, nh=num_heads, dh=head_dim, scale=scale),
        out_shape=jax.ShapeDtypeStruct((B, T, H), jnp.bfloat16),
        grid=(B,),
        in_specs=[pl.BlockSpec((1, T, threeH), lambda b: (b, 0, 0)),
                  pl.BlockSpec((1, 1, T), lambda b: (b, 0, 0))],
        out_specs=pl.BlockSpec((1, T, H), lambda b: (b, 0, 0)),
        compiler_params=pltpu.CompilerParams(
            dimension_semantics=("parallel",),
            vmem_limit_bytes=VMEM_LIMIT),
        cost_estimate=pl.CostEstimate(
            flops=4 * B * num_heads * T * T * head_dim,
            transcendentals=B * num_heads * T * T,
            bytes_accessed=2 * B * T * (3 * H + H) + 4 * B * T),
    )(qkv, bias)


# ----------------------------------------------------------------------------
# Bidirectional LSTM recurrence kernel, time-major end-to-end.
# Inputs: xg = x @ [W_ih_f^T | W_ih_b^T] + biases     [T, B, 8H] bf16
#         whh_f / whh_b = W_hh_{f,b}^T                [H, 4H] bf16
# Output: [T, B, 2H] f32 (forward hidden at lanes [0,H), backward at [H,2H)).
# Carry keeps hf/hb/cf/cb separate (no per-step concatenates on the serial
# critical path).  PyTorch gate order: i, f, g, o.
# ----------------------------------------------------------------------------
def _bilstm_kernel(xg_ref, whh_f_ref, whh_b_ref, o_ref, *, H, T):
    whh_f = whh_f_ref[...]      # [H, 4H] bf16
    whh_b = whh_b_ref[...]
    B = xg_ref.shape[1]

    def cell(g, c_prev):
        i = jax.nn.sigmoid(g[:, 0:H])
        f = jax.nn.sigmoid(g[:, H:2 * H])
        gg = jnp.tanh(g[:, 2 * H:3 * H])
        o = jax.nn.sigmoid(g[:, 3 * H:4 * H])
        c_new = f * c_prev + i * gg
        return o * jnp.tanh(c_new), c_new

    def step(t, carry):
        hf, hb, cf, cb = carry              # [B, H] f32 each
        tb = T - 1 - t
        xg_t = xg_ref[t].astype(jnp.float32)     # [B, 8H]
        xg_tb = xg_ref[tb].astype(jnp.float32)
        gf = xg_t[:, 0:4 * H] + jnp.dot(hf.astype(jnp.bfloat16), whh_f,
                                        preferred_element_type=jnp.float32)
        gb = xg_tb[:, 4 * H:8 * H] + jnp.dot(hb.astype(jnp.bfloat16), whh_b,
                                             preferred_element_type=jnp.float32)
        hf2, cf2 = cell(gf, cf)
        hb2, cb2 = cell(gb, cb)
        o_ref[t, :, 0:H] = hf2
        o_ref[tb, :, H:2 * H] = hb2
        return (hf2, hb2, cf2, cb2)

    z = jnp.zeros((B, H), jnp.float32)
    lax.fori_loop(0, T, step, (z, z, z, z))


def pallas_bilstm(x_tm, lstm_params, H):
    """x_tm: time-major [T, B, Hin] -> time-major [T, B, 2H] f32."""
    # TODO(synk): for production T*B*H, stream T-chunks of xg / output with a
    #             manual double-buffered DMA instead of whole-array VMEM refs.
    T, B, _ = x_tm.shape
    # Fused input projection for both directions (encoder output read once).
    w_in = jnp.concatenate([lstm_params["w_ih_f"].T, lstm_params["w_ih_b"].T], axis=1)
    b_in = jnp.concatenate([lstm_params["b_ih_f"] + lstm_params["b_hh_f"],
                            lstm_params["b_ih_b"] + lstm_params["b_hh_b"]])
    xg = pallas_linear(x_tm, w_in, b_in, out_dtype=jnp.bfloat16)     # [T, B, 8H]
    out = pl.pallas_call(
        functools.partial(_bilstm_kernel, H=H, T=T),
        out_shape=jax.ShapeDtypeStruct((T, B, 2 * H), jnp.float32),
        in_specs=[VMEM_SPEC, VMEM_SPEC, VMEM_SPEC],
        out_specs=VMEM_SPEC,
        compiler_params=pltpu.CompilerParams(vmem_limit_bytes=VMEM_LIMIT),
    )(xg, lstm_params["w_hh_f"].T.astype(jnp.bfloat16),
      lstm_params["w_hh_b"].T.astype(jnp.bfloat16))
    return out


# ----------------------------------------------------------------------------
# CRF forward algorithm (log partition) on a 128-lane-padded label axis.
# Matmul-ized recursion: alpha_t = m + log(exp(alpha-m) @ exp(trans)) + em_t.
# The gold-path score is precomputed (tiny gather) and passed in.
# ----------------------------------------------------------------------------
def _crf_forward_kernel(em_ref, mask_ref, score_ref, exp_trans_ref,
                        start_ref, end_ref, o_ref, *, T):
    exp_trans = exp_trans_ref[...]          # [Lp, Lp] f32, padded entries == 0
    alpha0 = start_ref[...] + em_ref[0]     # [B, Lp]

    def body(t, alpha):
        m = jnp.max(alpha, axis=-1, keepdims=True)                      # [B,1]
        a = jnp.exp(alpha - m)                                           # [B,Lp]
        z = jnp.dot(a, exp_trans, preferred_element_type=jnp.float32)    # MXU
        nxt = m + jnp.log(jnp.maximum(z, 1e-30)) + em_ref[t]
        return jnp.where(mask_ref[t] > 0.0, nxt, alpha)

    alpha = lax.fori_loop(1, T, body, alpha0)
    alpha = alpha + end_ref[...]
    m = jnp.max(alpha, axis=-1, keepdims=True)
    logz = m + jnp.log(jnp.sum(jnp.exp(alpha - m), axis=-1, keepdims=True))  # [B,1]
    nll = logz - score_ref[...]
    o_ref[...] = jnp.mean(nll)[None, None]


def crf_nll(emissions_tm, labels, attention_mask, trans, start, end, L):
    """emissions_tm: time-major [T, B, Lp] with padded label lanes == NEG (f32)."""
    T, B, Lp = emissions_tm.shape
    mask_f = attention_mask.astype(jnp.float32)                      # [B, T]

    # --- gold-path score (numerator): tiny gather/elementwise, plain JAX ---
    labels_tm = labels.T                                              # [T, B]
    emit = jnp.take_along_axis(emissions_tm, labels_tm[..., None], axis=-1)[..., 0].T  # [B,T]
    trans_gold = trans[labels[:, :-1], labels[:, 1:]]                 # [B, T-1]
    last_idx = jnp.sum(attention_mask, axis=1).astype(jnp.int32) - 1
    last_labels = jnp.take_along_axis(labels, last_idx[:, None], axis=1)[:, 0]
    score = (start[labels[:, 0]] + emit[:, 0]
             + jnp.sum(mask_f[:, 1:] * (trans_gold + emit[:, 1:]), axis=1)
             + end[last_labels])                                      # [B]
    score = score[:, None].astype(jnp.float32)

    # --- lane-padded parameters for the forward algorithm (kept f32) ---
    trans_pad = jnp.full((Lp, Lp), NEG, jnp.float32).at[:L, :L].set(trans)
    exp_trans = jnp.exp(trans_pad)            # padded entries underflow to 0
    start_pad = jnp.full((1, Lp), NEG, jnp.float32).at[0, :L].set(start)
    end_pad = jnp.full((1, Lp), NEG, jnp.float32).at[0, :L].set(end)
    mask_t = mask_f.T[:, :, None]             # [T, B, 1]

    nll = pl.pallas_call(
        functools.partial(_crf_forward_kernel, T=T),
        out_shape=jax.ShapeDtypeStruct((1, 1), jnp.float32),
        in_specs=[VMEM_SPEC] * 6,
        out_specs=VMEM_SPEC,
        compiler_params=pltpu.CompilerParams(vmem_limit_bytes=VMEM_LIMIT),
    )(emissions_tm, mask_t, score, exp_trans, start_pad, end_pad)
    return nll[0, 0]


# ----------------------------------------------------------------------------
# Focal loss kernel (masked mean of (1-pt)^gamma * CE over flattened tokens).
# Gold-class selection built in-kernel from int32 labels (no one-hot in HBM).
# ----------------------------------------------------------------------------
def _focal_loss_kernel(em_ref, lab_ref, mask_ref, o_ref, *, gamma):
    em = em_ref[...]      # [N, Lp] f32 (padded lanes are NEG -> exp underflows)
    lab = lab_ref[...]    # [N, 1] int32
    mask = mask_ref[...]  # [N, 1] f32
    m = jnp.max(em, axis=-1, keepdims=True)
    lse = m + jnp.log(jnp.sum(jnp.exp(em - m), axis=-1, keepdims=True))
    iota = lax.broadcasted_iota(jnp.int32, em.shape, 1)
    gold = jnp.sum(jnp.where(iota == lab, em, 0.0), axis=-1, keepdims=True)
    ce = lse - gold
    pt = jnp.exp(-ce)
    fl = (1.0 - pt) ** gamma * ce * mask
    o_ref[...] = (jnp.sum(fl) / jnp.sum(mask))[None, None]


def focal_loss(emissions_tm, labels, attention_mask, gamma=2):
    T, B, Lp = emissions_tm.shape
    em = emissions_tm.reshape(T * B, Lp)
    lab = labels.T.reshape(-1, 1).astype(jnp.int32)
    mask = attention_mask.astype(jnp.float32).T.reshape(-1, 1)
    out = pl.pallas_call(
        functools.partial(_focal_loss_kernel, gamma=gamma),
        out_shape=jax.ShapeDtypeStruct((1, 1), jnp.float32),
        in_specs=[VMEM_SPEC] * 3,
        out_specs=VMEM_SPEC,
        compiler_params=pltpu.CompilerParams(vmem_limit_bytes=VMEM_LIMIT),
    )(em, lab, mask)
    return out[0, 0]


# ----------------------------------------------------------------------------
# Synthetic BERT encoder (small), built from the Pallas kernels above
# ----------------------------------------------------------------------------
def bert_encoder(params, input_ids, attention_mask, cfg):
    B, T = input_ids.shape
    H, nh, dh = cfg["hidden"], cfg["heads"], cfg["head_dim"]
    emb = (params["word_emb"][input_ids]
           + params["pos_emb"][:T][None, :, :]
           + params["type_emb"][0][None, None, :])
    x = pallas_layernorm(emb, params["emb_ln_g"], params["emb_ln_b"])
    # HF-style extended attention mask: (1 - mask) * -10000, shape [B, 1, T]
    bias = ((1.0 - attention_mask.astype(jnp.float32)) * -10000.0)[:, None, :]

    for layer in params["layers"]:
        qkv = pallas_linear(x, layer["wqkv"], layer["bqkv"],
                            out_dtype=jnp.bfloat16)                  # [B, T, 3H]
        ctx = pallas_attention(qkv, bias, nh, dh)                     # [B, T, H] bf16
        # fused: output proj + residual + LayerNorm
        x = pallas_linear_res_ln(ctx, layer["wo"], layer["bo"],
                                 x, layer["ln1_g"], layer["ln1_b"])
        ffn = pallas_linear(x, layer["w1"], layer["b1"], activation="gelu",
                            out_dtype=jnp.bfloat16)
        # fused: FFN w2 + residual + LayerNorm
        x = pallas_linear_res_ln(ffn, layer["w2"], layer["b2"],
                                 x, layer["ln2_g"], layer["ln2_b"])
    return x


# ----------------------------------------------------------------------------
# Full forward (training-loss branch of BERT_BiLSTM_CRF.forward)
# ----------------------------------------------------------------------------
def forward(params, input_ids, attention_mask, labels, cfg):
    sequence_output = bert_encoder(params, input_ids, attention_mask, cfg)  # [B,T,H]
    # single layout change to time-major; everything downstream stays time-major
    seq_tm = sequence_output.transpose(1, 0, 2)                             # [T,B,H]
    lstm_tm = pallas_bilstm(seq_tm, params["lstm"], cfg["lstm_hidden"])     # [T,B,2H]

    L = cfg["num_labels"]
    Lp = _round_up(L, 128)
    # Emissions produced directly lane-padded: padded weight columns = 0 and
    # padded bias = NEG so padded label lanes are exactly NEG (masked classes).
    # Emissions kept f32 (NEG semantics must not pass through bf16).
    kin = params["fc_w"].shape[1]           # 2 * lstm_hidden
    fc_w_pad = jnp.zeros((kin, Lp), jnp.float32).at[:, :L].set(params["fc_w"].T)
    fc_b_pad = jnp.full((Lp,), NEG, jnp.float32).at[:L].set(params["fc_b"])
    emissions_tm = pallas_linear(lstm_tm, fc_w_pad, fc_b_pad)               # [T,B,Lp]

    crf = crf_nll(emissions_tm, labels, attention_mask,
                  params["crf_trans"], params["crf_start"], params["crf_end"], L)
    fl = focal_loss(emissions_tm, labels, attention_mask, gamma=2)
    return crf + fl


# ----------------------------------------------------------------------------
# Deterministic parameter initialization (synthetic weights)
# ----------------------------------------------------------------------------
def init_params(key, cfg):
    keys = iter(jax.random.split(key, 128))

    def nrm(shape, scale=0.02):
        return jax.random.normal(next(keys), shape, jnp.float32) * scale

    H, ffn = cfg["hidden"], cfg["ffn"]
    Hl, L = cfg["lstm_hidden"], cfg["num_labels"]
    p = {
        "word_emb": nrm((cfg["vocab"], H)),
        "pos_emb": nrm((cfg["max_pos"], H)),
        "type_emb": nrm((cfg["type_vocab"], H)),
        "emb_ln_g": jnp.ones((H,), jnp.float32),
        "emb_ln_b": jnp.zeros((H,), jnp.float32),
        "layers": [],
    }
    for _ in range(cfg["n_layers"]):
        p["layers"].append({
            "wqkv": nrm((H, 3 * H)), "bqkv": jnp.zeros((3 * H,), jnp.float32),
            "wo": nrm((H, H)), "bo": jnp.zeros((H,), jnp.float32),
            "ln1_g": jnp.ones((H,), jnp.float32), "ln1_b": jnp.zeros((H,), jnp.float32),
            "w1": nrm((H, ffn)), "b1": jnp.zeros((ffn,), jnp.float32),
            "w2": nrm((ffn, H)), "b2": jnp.zeros((H,), jnp.float32),
            "ln2_g": jnp.ones((H,), jnp.float32), "ln2_b": jnp.zeros((H,), jnp.float32),
        })
    p["lstm"] = {
        "w_ih_f": nrm((4 * Hl, H), 0.1), "w_hh_f": nrm((4 * Hl, Hl), 0.1),
        "b_ih_f": nrm((4 * Hl,), 0.1), "b_hh_f": nrm((4 * Hl,), 0.1),
        "w_ih_b": nrm((4 * Hl, H), 0.1), "w_hh_b": nrm((4 * Hl, Hl), 0.1),
        "b_ih_b": nrm((4 * Hl,), 0.1), "b_hh_b": nrm((4 * Hl,), 0.1),
    }
    p["fc_w"] = nrm((L, 2 * Hl), 0.1)   # PyTorch nn.Linear weight layout [out, in]
    p["fc_b"] = jnp.zeros((L,), jnp.float32)
    p["crf_trans"] = nrm((L, L), 0.1)
    p["crf_start"] = nrm((L,), 0.1)
    p["crf_end"] = nrm((L,), 0.1)
    return p


if __name__ == "__main__":
    cfg = dict(vocab=64, max_pos=32, type_vocab=2, hidden=32, heads=2, head_dim=16,
               ffn=64, n_layers=2, lstm_hidden=16, num_labels=5)
    key = jax.random.PRNGKey(0)
    pkey, ikey, lkey = jax.random.split(key, 3)
    params = init_params(pkey, cfg)

    B, T = 2, 8
    input_ids = jax.random.randint(ikey, (B, T), 0, cfg["vocab"], dtype=jnp.int32)
    attention_mask = jnp.array([[1, 1, 1, 1, 1, 1, 1, 1],
                                [1, 1, 1, 1, 1, 1, 0, 0]], dtype=jnp.int32)
    labels = jax.random.randint(lkey, (B, T), 0, cfg["num_labels"], dtype=jnp.int32)

    loss_fn = jax.jit(functools.partial(forward, cfg=cfg))
    loss = loss_fn(params, input_ids, attention_mask, labels)
    loss = jax.block_until_ready(loss)
    assert loss.shape == () and bool(jnp.isfinite(loss))
    print("KERNEL_OK")
</pallas_src>

<mosaic_0001>
module attributes {stable_mosaic.version = 11 : i64} {
  func.func @_linear_kernel(%arg0: i32, %arg1: i32, %arg2: i32, %arg3: memref<16x32xbf16, #tpu.memory_space<vmem>>, %arg4: memref<32x96xbf16, #tpu.memory_space<vmem>>, %arg5: memref<1x96xf32, #tpu.memory_space<vmem>>, %arg6: memref<16x96xbf16, #tpu.memory_space<vmem>>, %arg7: memref<16x96xf32, #tpu.memory_space<vmem>>) attributes {dimension_semantics = [#tpu.dimension_semantics<parallel>, #tpu.dimension_semantics<parallel>, #tpu.dimension_semantics<arbitrary>], iteration_bounds = array<i64: 1, 1, 1>, scalar_prefetch = 0 : i64, scratch_operands = 1 : i64, tpu.core_type = #tpu.core_type<tc>, window_params = [{transform_indices = @transform_0, window_bounds = array<i64: 16, 32>}, {transform_indices = @transform_1, window_bounds = array<i64: 32, 96>}, {transform_indices = @transform_2, window_bounds = array<i64: 1, 96>}, {transform_indices = @transform_3, window_bounds = array<i64: 16, 96>}]} {
    %c0_i32 = arith.constant 0 : i32
    %0 = arith.cmpi eq, %arg2, %c0_i32 : i32
    %1 = arith.extui %0 : i1 to i32
    %c0_i32_0 = arith.constant 0 : i32
    %2 = arith.cmpi ne, %1, %c0_i32_0 : i32
    scf.if %2 {
      %cst_10 = arith.constant 0.000000e+00 : f32
      %12 = vector.broadcast %cst_10 : f32 to vector<16x96xf32>
      %c0_11 = arith.constant 0 : index
      %c0_12 = arith.constant 0 : index
      %13 = vector.load %arg7[%c0_11, %c0_12] : memref<16x96xf32, #tpu.memory_space<vmem>>, vector<16x96xf32>
      tpu.vector_store %arg7[%c0_11, %c0_12], %12 {strides = array<i32>} : memref<16x96xf32, #tpu.memory_space<vmem>>, vector<16x96xf32>,
    } else {
    }
    %c0 = arith.constant 0 : index
    %c0_1 = arith.constant 0 : index
    %3 = vector.load %arg7[%c0, %c0_1] : memref<16x96xf32, #tpu.memory_space<vmem>>, vector<16x96xf32>
    %c0_2 = arith.constant 0 : index
    %c0_3 = arith.constant 0 : index
    %4 = vector.load %arg3[%c0_2, %c0_3] : memref<16x32xbf16, #tpu.memory_space<vmem>>, vector<16x32xbf16>
    %c0_4 = arith.constant 0 : index
    %c0_5 = arith.constant 0 : index
    %5 = vector.load %arg4[%c0_4, %c0_5] : memref<32x96xbf16, #tpu.memory_space<vmem>>, vector<32x96xbf16>
    %cst = arith.constant dense<0.000000e+00> : vector<16x96xf32>
    %6 = tpu.matmul %4, %5, %cst {dimension_numbers = #tpu.dot_dimension_numbers<[1], [0], [0], [1], [0, 0, 1, 1], [], []>} : vector<16x32xbf16>, vector<32x96xbf16>, vector<16x96xf32> -> vector<16x96xf32>
    %7 = arith.addf %3, %6 : vector<16x96xf32>
    %c0_6 = arith.constant 0 : index
    %c0_7 = arith.constant 0 : index
    %8 = vector.load %arg7[%c0_6, %c0_7] : memref<16x96xf32, #tpu.memory_space<vmem>>, vector<16x96xf32>
    tpu.vector_store %arg7[%c0_6, %c0_7], %7 {strides = array<i32>} : memref<16x96xf32, #tpu.memory_space<vmem>>, vector<16x96xf32>,
    %c0_i32_8 = arith.constant 0 : i32
    %9 = arith.cmpi eq, %arg2, %c0_i32_8 : i32
    %10 = arith.extui %9 : i1 to i32
    %c0_i32_9 = arith.constant 0 : i32
    %11 = arith.cmpi ne, %10, %c0_i32_9 : i32
    scf.if %11 {
      %c0_10 = arith.constant 0 : index
      %c0_11 = arith.constant 0 : index
      %12 = vector.load %arg7[%c0_10, %c0_11] : memref<16x96xf32, #tpu.memory_space<vmem>>, vector<16x96xf32>
      %c0_12 = arith.constant 0 : index
      %c0_13 = arith.constant 0 : index
      %13 = vector.load %arg5[%c0_12, %c0_13] : memref<1x96xf32, #tpu.memory_space<vmem>>, vector<1x96xf32>
      %14 = vector.broadcast %13 : vector<1x96xf32> to vector<16x96xf32>
      %15 = arith.addf %12, %14 : vector<16x96xf32>
      %16 = arith.truncf %15 : vector<16x96xf32> to vector<16x96xbf16>
      %c0_14 = arith.constant 0 : index
      %c0_15 = arith.constant 0 : index
      %17 = vector.load %arg6[%c0_14, %c0_15] : memref<16x96xbf16, #tpu.memory_space<vmem>>, vector<16x96xbf16>
      tpu.vector_store %arg6[%c0_14, %c0_15], %16 {strides = array<i32>} : memref<16x96xbf16, #tpu.memory_space<vmem>>, vector<16x96xbf16>,
    } else {
    }
    return
  }
  func.func @transform_0(%arg0: i32, %arg1: i32, %arg2: i32) -> (i32, i32) {
    %c0_i32 = arith.constant 0 : i32
    return %arg0, %arg2 : i32, i32
  }
  func.func @transform_1(%arg0: i32, %arg1: i32, %arg2: i32) -> (i32, i32) {
    %c0_i32 = arith.constant 0 : i32
    return %arg2, %arg1 : i32, i32
  }
  func.func @transform_2(%arg0: i32, %arg1: i32, %arg2: i32) -> (i32, i32) {
    %c0_i32 = arith.constant 0 : i32
    %c0_i32_0 = arith.constant 0 : i32
    return %c0_i32, %arg1 : i32, i32
  }
  func.func @transform_3(%arg0: i32, %arg1: i32, %arg2: i32) -> (i32, i32) {
    %c0_i32 = arith.constant 0 : i32
    return %arg0, %arg1 : i32, i32
  }
}

module attributes {stable_mosaic.version = 11 : i64} {
  func.func @_linear_res_ln_kernel(%arg0: i32, %arg1: i32, %arg2: memref<16x32xbf16, #tpu.memory_space<vmem>>, %arg3: memref<32x32xbf16, #tpu.memory_space<vmem>>, %arg4: memref<1x32xf32, #tpu.memory_space<vmem>>, %arg5: memref<16x32xf32, #tpu.memory_space<vmem>>, %arg6: memref<1x32xf32, #tpu.memory_space<vmem>>, %arg7: memref<1x32xf32, #tpu.memory_space<vmem>>, %arg8: memref<16x32xf32, #tpu.memory_space<vmem>>, %arg9: memref<16x32xf32, #tpu.memory_space<vmem>>) attributes {dimension_semantics = [#tpu.dimension_semantics<parallel>, #tpu.dimension_semantics<arbitrary>], iteration_bounds = array<i64: 1, 1>, scalar_prefetch = 0 : i64, scratch_operands = 1 : i64, tpu.core_type = #tpu.core_type<tc>, window_params = [{transform_indices = @transform_0, window_bounds = array<i64: 16, 32>}, {transform_indices = @transform_1, window_bounds = array<i64: 32, 32>}, {pipeline_mode = #tpu.pipeline_mode<synchronous>, transform_indices = @transform_2, window_bounds = array<i64: 1, 32>}, {transform_indices = @transform_3, window_bounds = array<i64: 16, 32>}, {pipeline_mode = #tpu.pipeline_mode<synchronous>, transform_indices = @transform_4, window_bounds = array<i64: 1, 32>}, {pipeline_mode = #tpu.pipeline_mode<synchronous>, transform_indices = @transform_5, window_bounds = array<i64: 1, 32>}, {transform_indices = @transform_6, window_bounds = array<i64: 16, 32>}]} {
    %c0_i32 = arith.constant 0 : i32
    %0 = arith.cmpi eq, %arg1, %c0_i32 : i32
    %1 = arith.extui %0 : i1 to i32
    %c0_i32_0 = arith.constant 0 : i32
    %2 = arith.cmpi ne, %1, %c0_i32_0 : i32
    scf.if %2 {
      %cst_10 = arith.constant 0.000000e+00 : f32
      %12 = vector.broadcast %cst_10 : f32 to vector<16x32xf32>
      %c0_11 = arith.constant 0 : index
      %c0_12 = arith.constant 0 : index
      %13 = vector.load %arg9[%c0_11, %c0_12] : memref<16x32xf32, #tpu.memory_space<vmem>>, vector<16x32xf32>
      tpu.vector_store %arg9[%c0_11, %c0_12], %12 {strides = array<i32>} : memref<16x32xf32, #tpu.memory_space<vmem>>, vector<16x32xf32>,
    } else {
    }
    %c0 = arith.constant 0 : index
    %c0_1 = arith.constant 0 : index
    %3 = vector.load %arg9[%c0, %c0_1] : memref<16x32xf32, #tpu.memory_space<vmem>>, vector<16x32xf32>
    %c0_2 = arith.constant 0 : index
    %c0_3 = arith.constant 0 : index
    %4 = vector.load %arg2[%c0_2, %c0_3] : memref<16x32xbf16, #tpu.memory_space<vmem>>, vector<16x32xbf16>
    %c0_4 = arith.constant 0 : index
    %c0_5 = arith.constant 0 : index
    %5 = vector.load %arg3[%c0_4, %c0_5] : memref<32x32xbf16, #tpu.memory_space<vmem>>, vector<32x32xbf16>
    %cst = arith.constant dense<0.000000e+00> : vector<16x32xf32>
    %6 = tpu.matmul %4, %5, %cst {dimension_numbers = #tpu.dot_dimension_numbers<[1], [0], [0], [1], [0, 0, 1, 1], [], []>} : vector<16x32xbf16>, vector<32x32xbf16>, vector<16x32xf32> -> vector<16x32xf32>
    %7 = arith.addf %3, %6 : vector<16x32xf32>
    %c0_6 = arith.constant 0 : index
    %c0_7 = arith.constant 0 : index
    %8 = vector.load %arg9[%c0_6, %c0_7] : memref<16x32xf32, #tpu.memory_space<vmem>>, vector<16x32xf32>
    tpu.vector_store %arg9[%c0_6, %c0_7], %7 {strides = array<i32>} : memref<16x32xf32, #tpu.memory_space<vmem>>, vector<16x32xf32>,
    %c0_i32_8 = arith.constant 0 : i32
    %9 = arith.cmpi eq, %arg1, %c0_i32_8 : i32
    %10 = arith.extui %9 : i1 to i32
    %c0_i32_9 = arith.constant 0 : i32
    %11 = arith.cmpi ne, %10, %c0_i32_9 : i32
    scf.if %11 {
      %c0_10 = arith.constant 0 : index
      %c0_11 = arith.constant 0 : index
      %12 = vector.load %arg9[%c0_10, %c0_11] : memref<16x32xf32, #tpu.memory_space<vmem>>, vector<16x32xf32>
      %c0_12 = arith.constant 0 : index
      %c0_13 = arith.constant 0 : index
      %13 = vector.load %arg4[%c0_12, %c0_13] : memref<1x32xf32, #tpu.memory_space<vmem>>, vector<1x32xf32>
      %14 = vector.broadcast %13 : vector<1x32xf32> to vector<16x32xf32>
      %15 = arith.addf %12, %14 : vector<16x32xf32>
      %c0_14 = arith.constant 0 : index
      %c0_15 = arith.constant 0 : index
      %16 = vector.load %arg5[%c0_14, %c0_15] : memref<16x32xf32, #tpu.memory_space<vmem>>, vector<16x32xf32>
      %17 = arith.addf %15, %16 : vector<16x32xf32>
      %cst_16 = arith.constant dense<0.000000e+00> : vector<16xf32>
      %18 = vector.multi_reduction <add>, %17, %cst_16 [1] : vector<16x32xf32> to vector<16xf32>
      %19 = vector.shape_cast %18 : vector<16xf32> to vector<16x1xf32>
      %cst_17 = arith.constant 3.200000e+01 : f32
      %20 = vector.broadcast %cst_17 : f32 to vector<16x1xf32>
      %21 = arith.divf %19, %20 : vector<16x1xf32>
      %22 = vector.broadcast %21 : vector<16x1xf32> to vector<16x32xf32>
      %23 = arith.subf %17, %22 : vector<16x32xf32>
      %24 = arith.mulf %23, %23 : vector<16x32xf32>
      %cst_18 = arith.constant dense<0.000000e+00> : vector<16xf32>
      %25 = vector.multi_reduction <add>, %24, %cst_18 [1] : vector<16x32xf32> to vector<16xf32>
      %26 = vector.shape_cast %25 : vector<16xf32> to vector<16x1xf32>
      %cst_19 = arith.constant 3.200000e+01 : f32
      %27 = vector.broadcast %cst_19 : f32 to vector<16x1xf32>
      %28 = arith.divf %26, %27 : vector<16x1xf32>
      %29 = vector.broadcast %21 : vector<16x1xf32> to vector<16x32xf32>
      %30 = arith.subf %17, %29 : vector<16x32xf32>
      %cst_20 = arith.constant 9.99999996E-13 : f32
      %31 = vector.broadcast %cst_20 : f32 to vector<16x1xf32>
      %32 = arith.addf %28, %31 : vector<16x1xf32>
      %33 = math.rsqrt %32 : vector<16x1xf32>
      %34 = vector.broadcast %33 : vector<16x1xf32> to vector<16x32xf32>
      %35 = arith.mulf %30, %34 : vector<16x32xf32>
      %c0_21 = arith.constant 0 : index
      %c0_22 = arith.constant 0 : index
      %36 = vector.load %arg6[%c0_21, %c0_22] : memref<1x32xf32, #tpu.memory_space<vmem>>, vector<1x32xf32>
      %37 = vector.broadcast %36 : vector<1x32xf32> to vector<16x32xf32>
      %38 = arith.mulf %35, %37 : vector<16x32xf32>
      %c0_23 = arith.constant 0 : index
      %c0_24 = arith.constant 0 : index
      %39 = vector.load %arg7[%c0_23, %c0_24] : memref<1x32xf32, #tpu.memory_space<vmem>>, vector<1x32xf32>
      %40 = vector.broadcast %39 : vector<1x32xf32> to vector<16x32xf32>
      %41 = arith.addf %38, %40 : vector<16x32xf32>
      %c0_25 = arith.constant 0 : index
      %c0_26 = arith.constant 0 : index
      %42 = vector.load %arg8[%c0_25, %c0_26] : memref<16x32xf32, #tpu.memory_space<vmem>>, vector<16x32xf32>
      tpu.vector_store %arg8[%c0_25, %c0_26], %41 {strides = array<i32>} : memref<16x32xf32, #tpu.memory_space<vmem>>, vector<16x32xf32>,
    } else {
    }
    return
  }
  func.func @transform_0(%arg0: i32, %arg1: i32) -> (i32, i32) {
    %c0_i32 = arith.constant 0 : i32
    return %arg0, %arg1 : i32, i32
  }
  func.func @transform_1(%arg0: i32, %arg1: i32) -> (i32, i32) {
    %c0_i32 = arith.constant 0 : i32
    %c0_i32_0 = arith.constant 0 : i32
    return %arg1, %c0_i32 : i32, i32
  }
  func.func @transform_2(%arg0: i32, %arg1: i32) -> (i32, i32) {
    %c0_i32 = arith.constant 0 : i32
    %c0_i32_0 = arith.constant 0 : i32
    %c0_i32_1 = arith.constant 0 : i32
    return %c0_i32, %c0_i32_0 : i32, i32
  }
  func.func @transform_3(%arg0: i32, %arg1: i32) -> (i32, i32) {
    %c0_i32 = arith.constant 0 : i32
    %c0_i32_0 = arith.constant 0 : i32
    return %arg0, %c0_i32 : i32, i32
  }
  func.func @transform_4(%arg0: i32, %arg1: i32) -> (i32, i32) {
    %c0_i32 = arith.constant 0 : i32
    %c0_i32_0 = arith.constant 0 : i32
    %c0_i32_1 = arith.constant 0 : i32
    return %c0_i32, %c0_i32_0 : i32, i32
  }
  func.func @transform_5(%arg0: i32, %arg1: i32) -> (i32, i32) {
    %c0_i32 = arith.constant 0 : i32
    %c0_i32_0 = arith.constant 0 : i32
    %c0_i32_1 = arith.constant 0 : i32
    return %c0_i32, %c0_i32_0 : i32, i32
  }
  func.func @transform_6(%arg0: i32, %arg1: i32) -> (i32, i32) {
    %c0_i32 = arith.constant 0 : i32
    %c0_i32_0 = arith.constant 0 : i32
    return %arg0, %c0_i32 : i32, i32
  }
}

module attributes {stable_mosaic.version = 11 : i64} {
  func.func @_attention_kernel(%arg0: i32, %arg1: memref<1x8x96xbf16, #tpu.memory_space<vmem>>, %arg2: memref<1x1x8xf32, #tpu.memory_space<vmem>>, %arg3: memref<1x8x32xbf16, #tpu.memory_space<vmem>>) attributes {dimension_semantics = [#tpu.dimension_semantics<parallel>], iteration_bounds = array<i64: 2>, scalar_prefetch = 0 : i64, scratch_operands = 0 : i64, tpu.core_type = #tpu.core_type<tc>, window_params = [{transform_indices = @transform_0, window_bounds = array<i64: 1, 8, 96>}, {transform_indices = @transform_1, window_bounds = array<i64: 1, 1, 8>}, {transform_indices = @transform_2, window_bounds = array<i64: 1, 8, 32>}]} {
    %c0 = arith.constant 0 : index
    %c0_0 = arith.constant 0 : index
    %c0_1 = arith.constant 0 : index
    %0 = vector.load %arg1[%c0, %c0_0, %c0_1] : memref<1x8x96xbf16, #tpu.memory_space<vmem>>, vector<1x8x96xbf16>
    %1 = vector.shape_cast %0 : vector<1x8x96xbf16> to vector<8x96xbf16>
    %c0_2 = arith.constant 0 : index
    %c0_3 = arith.constant 0 : index
    %c0_4 = arith.constant 0 : index
    %2 = vector.load %arg2[%c0_2, %c0_3, %c0_4] : memref<1x1x8xf32, #tpu.memory_space<vmem>>, vector<1x1x8xf32>
    %3 = vector.shape_cast %2 : vector<1x1x8xf32> to vector<1x8xf32>
    %4 = vector.extract_strided_slice %1 {offsets = [0, 0], sizes = [8, 16], strides = [1, 1]} : vector<8x96xbf16> to vector<8x16xbf16>
    %5 = vector.extract_strided_slice %1 {offsets = [0, 32], sizes = [8, 16], strides = [1, 1]} : vector<8x96xbf16> to vector<8x16xbf16>
    %6 = vector.extract_strided_slice %1 {offsets = [0, 64], sizes = [8, 16], strides = [1, 1]} : vector<8x96xbf16> to vector<8x16xbf16>
    %cst = arith.constant dense<0.000000e+00> : vector<8x8xf32>
    %7 = tpu.matmul %4, %5, %cst {dimension_numbers = #tpu.dot_dimension_numbers<[1], [1], [0], [0], [0, 0, 1, 0], [], []>} : vector<8x16xbf16>, vector<8x16xbf16>, vector<8x8xf32> -> vector<8x8xf32>
    %cst_5 = arith.constant 2.500000e-01 : f32
    %8 = vector.broadcast %cst_5 : f32 to vector<8x8xf32>
    %9 = arith.mulf %7, %8 : vector<8x8xf32>
    %10 = vector.broadcast %3 : vector<1x8xf32> to vector<8x8xf32>
    %11 = arith.addf %9, %10 : vector<8x8xf32>
    %cst_6 = arith.constant dense<0xFF800000> : vector<8xf32>
    %12 = vector.multi_reduction <maximumf>, %11, %cst_6 [1] : vector<8x8xf32> to vector<8xf32>
    %13 = vector.shape_cast %12 : vector<8xf32> to vector<8x1xf32>
    %14 = vector.broadcast %13 : vector<8x1xf32> to vector<8x8xf32>
    %15 = arith.subf %11, %14 : vector<8x8xf32>
    %16 = math.exp %15 : vector<8x8xf32>
    %cst_7 = arith.constant dense<0.000000e+00> : vector<8xf32>
    %17 = vector.multi_reduction <add>, %16, %cst_7 [1] : vector<8x8xf32> to vector<8xf32>
    %18 = vector.shape_cast %17 : vector<8xf32> to vector<8x1xf32>
    %19 = tpu.reciprocal %18 {approx = true} : vector<8x1xf32> -> vector<8x1xf32>
    %20 = vector.broadcast %19 : vector<8x1xf32> to vector<8x8xf32>
    %21 = arith.mulf %16, %20 : vector<8x8xf32>
    %22 = arith.truncf %21 : vector<8x8xf32> to vector<8x8xbf16>
    %cst_8 = arith.constant dense<0.000000e+00> : vector<8x16xf32>
    %23 = tpu.matmul %22, %6, %cst_8 {dimension_numbers = #tpu.dot_dimension_numbers<[1], [0], [0], [1], [0, 0, 1, 1], [], []>} : vector<8x8xbf16>, vector<8x16xbf16>, vector<8x16xf32> -> vector<8x16xf32>
    %24 = vector.extract_strided_slice %1 {offsets = [0, 16], sizes = [8, 16], strides = [1, 1]} : vector<8x96xbf16> to vector<8x16xbf16>
    %25 = vector.extract_strided_slice %1 {offsets = [0, 48], sizes = [8, 16], strides = [1, 1]} : vector<8x96xbf16> to vector<8x16xbf16>
    %26 = vector.extract_strided_slice %1 {offsets = [0, 80], sizes = [8, 16], strides = [1, 1]} : vector<8x96xbf16> to vector<8x16xbf16>
    %cst_9 = arith.constant dense<0.000000e+00> : vector<8x8xf32>
    %27 = tpu.matmul %24, %25, %cst_9 {dimension_numbers = #tpu.dot_dimension_numbers<[1], [1], [0], [0], [0, 0, 1, 0], [], []>} : vector<8x16xbf16>, vector<8x16xbf16>, vector<8x8xf32> -> vector<8x8xf32>
    %cst_10 = arith.constant 2.500000e-01 : f32
    %28 = vector.broadcast %cst_10 : f32 to vector<8x8xf32>
    %29 = arith.mulf %27, %28 : vector<8x8xf32>
    %30 = vector.broadcast %3 : vector<1x8xf32> to vector<8x8xf32>
    %31 = arith.addf %29, %30 : vector<8x8xf32>
    %cst_11 = arith.constant dense<0xFF800000> : vector<8xf32>
    %32 = vector.multi_reduction <maximumf>, %31, %cst_11 [1] : vector<8x8xf32> to vector<8xf32>
    %33 = vector.shape_cast %32 : vector<8xf32> to vector<8x1xf32>
    %34 = vector.broadcast %33 : vector<8x1xf32> to vector<8x8xf32>
    %35 = arith.subf %31, %34 : vector<8x8xf32>
    %36 = math.exp %35 : vector<8x8xf32>
    %cst_12 = arith.constant dense<0.000000e+00> : vector<8xf32>
    %37 = vector.multi_reduction <add>, %36, %cst_12 [1] : vector<8x8xf32> to vector<8xf32>
    %38 = vector.shape_cast %37 : vector<8xf32> to vector<8x1xf32>
    %39 = tpu.reciprocal %38 {approx = true} : vector<8x1xf32> -> vector<8x1xf32>
    %40 = vector.broadcast %39 : vector<8x1xf32> to vector<8x8xf32>
    %41 = arith.mulf %36, %40 : vector<8x8xf32>
    %42 = arith.truncf %41 : vector<8x8xf32> to vector<8x8xbf16>
    %cst_13 = arith.constant dense<0.000000e+00> : vector<8x16xf32>
    %43 = tpu.matmul %42, %26, %cst_13 {dimension_numbers = #tpu.dot_dimension_numbers<[1], [0], [0], [1], [0, 0, 1, 1], [], []>} : vector<8x8xbf16>, vector<8x16xbf16>, vector<8x16xf32> -> vector<8x16xf32>
    %44 = tpu.concatenate %23, %43 in 1 : vector<8x16xf32>, vector<8x16xf32> -> vector<8x32xf32>
    %45 = arith.truncf %44 : vector<8x32xf32> to vector<8x32xbf16>
    %c0_14 = arith.constant 0 : index
    %c0_15 = arith.constant 0 : index
    %c0_16 = arith.constant 0 : index
    %46 = vector.load %arg3[%c0_14, %c0_15, %c0_16] : memref<1x8x32xbf16, #tpu.memory_space<vmem>>, vector<1x8x32xbf16>
    %47 = vector.shape_cast %46 : vector<1x8x32xbf16> to vector<8x32xbf16>
    %48 = vector.shape_cast %45 : vector<8x32xbf16> to vector<1x8x32xbf16>
    tpu.vector_store %arg3[%c0_14, %c0_15, %c0_16], %48 {strides = array<i32>} : memref<1x8x32xbf16, #tpu.memory_space<vmem>>, vector<1x8x32xbf16>,
    return
  }
  func.func @transform_0(%arg0: i32) -> (i32, i32, i32) {
    %c0_i32 = arith.constant 0 : i32
    %c0_i32_0 = arith.constant 0 : i32
    %c0_i32_1 = arith.constant 0 : i32
    return %arg0, %c0_i32, %c0_i32_0 : i32, i32, i32
  }
  func.func @transform_1(%arg0: i32) -> (i32, i32, i32) {
    %c0_i32 = arith.constant 0 : i32
    %c0_i32_0 = arith.constant 0 : i32
    %c0_i32_1 = arith.constant 0 : i32
    return %arg0, %c0_i32, %c0_i32_0 : i32, i32, i32
  }
  func.func @transform_2(%arg0: i32) -> (i32, i32, i32) {
    %c0_i32 = arith.constant 0 : i32
    %c0_i32_0 = arith.constant 0 : i32
    %c0_i32_1 = arith.constant 0 : i32
    return %arg0, %c0_i32, %c0_i32_0 : i32, i32, i32
  }
}

module attributes {stable_mosaic.version = 11 : i64} {
  func.func @_layernorm_kernel(%arg0: i32, %arg1: memref<16x32xf32, #tpu.memory_space<vmem>>, %arg2: memref<1x32xf32, #tpu.memory_space<vmem>>, %arg3: memref<1x32xf32, #tpu.memory_space<vmem>>, %arg4: memref<16x32xf32, #tpu.memory_space<vmem>>) attributes {dimension_semantics = [#tpu.dimension_semantics<parallel>], iteration_bounds = array<i64: 1>, scalar_prefetch = 0 : i64, scratch_operands = 0 : i64, tpu.core_type = #tpu.core_type<tc>, window_params = [{transform_indices = @transform_0, window_bounds = array<i64: 16, 32>}, {pipeline_mode = #tpu.pipeline_mode<synchronous>, transform_indices = @transform_1, window_bounds = array<i64: 1, 32>}, {pipeline_mode = #tpu.pipeline_mode<synchronous>, transform_indices = @transform_2, window_bounds = array<i64: 1, 32>}, {transform_indices = @transform_3, window_bounds = array<i64: 16, 32>}]} {
    %c0 = arith.constant 0 : index
    %c0_0 = arith.constant 0 : index
    %0 = vector.load %arg1[%c0, %c0_0] : memref<16x32xf32, #tpu.memory_space<vmem>>, vector<16x32xf32>
    %cst = arith.constant dense<0.000000e+00> : vector<16xf32>
    %1 = vector.multi_reduction <add>, %0, %cst [1] : vector<16x32xf32> to vector<16xf32>
    %2 = vector.shape_cast %1 : vector<16xf32> to vector<16x1xf32>
    %cst_1 = arith.constant 3.200000e+01 : f32
    %3 = vector.broadcast %cst_1 : f32 to vector<16x1xf32>
    %4 = arith.divf %2, %3 : vector<16x1xf32>
    %5 = vector.broadcast %4 : vector<16x1xf32> to vector<16x32xf32>
    %6 = arith.subf %0, %5 : vector<16x32xf32>
    %7 = arith.mulf %6, %6 : vector<16x32xf32>
    %cst_2 = arith.constant dense<0.000000e+00> : vector<16xf32>
    %8 = vector.multi_reduction <add>, %7, %cst_2 [1] : vector<16x32xf32> to vector<16xf32>
    %9 = vector.shape_cast %8 : vector<16xf32> to vector<16x1xf32>
    %cst_3 = arith.constant 3.200000e+01 : f32
    %10 = vector.broadcast %cst_3 : f32 to vector<16x1xf32>
    %11 = arith.divf %9, %10 : vector<16x1xf32>
    %12 = vector.broadcast %4 : vector<16x1xf32> to vector<16x32xf32>
    %13 = arith.subf %0, %12 : vector<16x32xf32>
    %cst_4 = arith.constant 9.99999996E-13 : f32
    %14 = vector.broadcast %cst_4 : f32 to vector<16x1xf32>
    %15 = arith.addf %11, %14 : vector<16x1xf32>
    %16 = math.rsqrt %15 : vector<16x1xf32>
    %17 = vector.broadcast %16 : vector<16x1xf32> to vector<16x32xf32>
    %18 = arith.mulf %13, %17 : vector<16x32xf32>
    %c0_5 = arith.constant 0 : index
    %c0_6 = arith.constant 0 : index
    %19 = vector.load %arg2[%c0_5, %c0_6] : memref<1x32xf32, #tpu.memory_space<vmem>>, vector<1x32xf32>
    %20 = vector.broadcast %19 : vector<1x32xf32> to vector<16x32xf32>
    %21 = arith.mulf %18, %20 : vector<16x32xf32>
    %c0_7 = arith.constant 0 : index
    %c0_8 = arith.constant 0 : index
    %22 = vector.load %arg3[%c0_7, %c0_8] : memref<1x32xf32, #tpu.memory_space<vmem>>, vector<1x32xf32>
    %23 = vector.broadcast %22 : vector<1x32xf32> to vector<16x32xf32>
    %24 = arith.addf %21, %23 : vector<16x32xf32>
    %c0_9 = arith.constant 0 : index
    %c0_10 = arith.constant 0 : index
    %25 = vector.load %arg4[%c0_9, %c0_10] : memref<16x32xf32, #tpu.memory_space<vmem>>, vector<16x32xf32>
    tpu.vector_store %arg4[%c0_9, %c0_10], %24 {strides = array<i32>} : memref<16x32xf32, #tpu.memory_space<vmem>>, vector<16x32xf32>,
    return
  }
  func.func @transform_0(%arg0: i32) -> (i32, i32) {
    %c0_i32 = arith.constant 0 : i32
    %c0_i32_0 = arith.constant 0 : i32
    return %arg0, %c0_i32 : i32, i32
  }
  func.func @transform_1(%arg0: i32) -> (i32, i32) {
    %c0_i32 = arith.constant 0 : i32
    %c0_i32_0 = arith.constant 0 : i32
    %c0_i32_1 = arith.constant 0 : i32
    return %c0_i32, %c0_i32_0 : i32, i32
  }
  func.func @transform_2(%arg0: i32) -> (i32, i32) {
    %c0_i32 = arith.constant 0 : i32
    %c0_i32_0 = arith.constant 0 : i32
    %c0_i32_1 = arith.constant 0 : i32
    return %c0_i32, %c0_i32_0 : i32, i32
  }
  func.func @transform_3(%arg0: i32) -> (i32, i32) {
    %c0_i32 = arith.constant 0 : i32
    %c0_i32_0 = arith.constant 0 : i32
    return %arg0, %c0_i32 : i32, i32
  }
}

module attributes {stable_mosaic.version = 11 : i64} {
  func.func @_linear_kernel(%arg0: i32, %arg1: i32, %arg2: i32, %arg3: memref<16x32xbf16, #tpu.memory_space<vmem>>, %arg4: memref<32x64xbf16, #tpu.memory_space<vmem>>, %arg5: memref<1x64xf32, #tpu.memory_space<vmem>>, %arg6: memref<16x64xbf16, #tpu.memory_space<vmem>>, %arg7: memref<16x64xf32, #tpu.memory_space<vmem>>) attributes {dimension_semantics = [#tpu.dimension_semantics<parallel>, #tpu.dimension_semantics<parallel>, #tpu.dimension_semantics<arbitrary>], iteration_bounds = array<i64: 1, 1, 1>, scalar_prefetch = 0 : i64, scratch_operands = 1 : i64, tpu.core_type = #tpu.core_type<tc>, window_params = [{transform_indices = @transform_0, window_bounds = array<i64: 16, 32>}, {transform_indices = @transform_1, window_bounds = array<i64: 32, 64>}, {transform_indices = @transform_2, window_bounds = array<i64: 1, 64>}, {transform_indices = @transform_3, window_bounds = array<i64: 16, 64>}]} {
    %c0_i32 = arith.constant 0 : i32
    %0 = arith.cmpi eq, %arg2, %c0_i32 : i32
    %1 = arith.extui %0 : i1 to i32
    %c0_i32_0 = arith.constant 0 : i32
    %2 = arith.cmpi ne, %1, %c0_i32_0 : i32
    scf.if %2 {
      %cst_10 = arith.constant 0.000000e+00 : f32
      %12 = vector.broadcast %cst_10 : f32 to vector<16x64xf32>
      %c0_11 = arith.constant 0 : index
      %c0_12 = arith.constant 0 : index
      %13 = vector.load %arg7[%c0_11, %c0_12] : memref<16x64xf32, #tpu.memory_space<vmem>>, vector<16x64xf32>
      tpu.vector_store %arg7[%c0_11, %c0_12], %12 {strides = array<i32>} : memref<16x64xf32, #tpu.memory_space<vmem>>, vector<16x64xf32>,
    } else {
    }
    %c0 = arith.constant 0 : index
    %c0_1 = arith.constant 0 : index
    %3 = vector.load %arg7[%c0, %c0_1] : memref<16x64xf32, #tpu.memory_space<vmem>>, vector<16x64xf32>
    %c0_2 = arith.constant 0 : index
    %c0_3 = arith.constant 0 : index
    %4 = vector.load %arg3[%c0_2, %c0_3] : memref<16x32xbf16, #tpu.memory_space<vmem>>, vector<16x32xbf16>
    %c0_4 = arith.constant 0 : index
    %c0_5 = arith.constant 0 : index
    %5 = vector.load %arg4[%c0_4, %c0_5] : memref<32x64xbf16, #tpu.memory_space<vmem>>, vector<32x64xbf16>
    %cst = arith.constant dense<0.000000e+00> : vector<16x64xf32>
    %6 = tpu.matmul %4, %5, %cst {dimension_numbers = #tpu.dot_dimension_numbers<[1], [0], [0], [1], [0, 0, 1, 1], [], []>} : vector<16x32xbf16>, vector<32x64xbf16>, vector<16x64xf32> -> vector<16x64xf32>
    %7 = arith.addf %3, %6 : vector<16x64xf32>
    %c0_6 = arith.constant 0 : index
    %c0_7 = arith.constant 0 : index
    %8 = vector.load %arg7[%c0_6, %c0_7] : memref<16x64xf32, #tpu.memory_space<vmem>>, vector<16x64xf32>
    tpu.vector_store %arg7[%c0_6, %c0_7], %7 {strides = array<i32>} : memref<16x64xf32, #tpu.memory_space<vmem>>, vector<16x64xf32>,
    %c0_i32_8 = arith.constant 0 : i32
    %9 = arith.cmpi eq, %arg2, %c0_i32_8 : i32
    %10 = arith.extui %9 : i1 to i32
    %c0_i32_9 = arith.constant 0 : i32
    %11 = arith.cmpi ne, %10, %c0_i32_9 : i32
    scf.if %11 {
      %c0_10 = arith.constant 0 : index
      %c0_11 = arith.constant 0 : index
      %12 = vector.load %arg7[%c0_10, %c0_11] : memref<16x64xf32, #tpu.memory_space<vmem>>, vector<16x64xf32>
      %c0_12 = arith.constant 0 : index
      %c0_13 = arith.constant 0 : index
      %13 = vector.load %arg5[%c0_12, %c0_13] : memref<1x64xf32, #tpu.memory_space<vmem>>, vector<1x64xf32>
      %14 = vector.broadcast %13 : vector<1x64xf32> to vector<16x64xf32>
      %15 = arith.addf %12, %14 : vector<16x64xf32>
      %16 = arith.mulf %15, %15 : vector<16x64xf32>
      %17 = arith.mulf %15, %16 : vector<16x64xf32>
      %cst_14 = arith.constant 4.471500e-02 : f32
      %18 = vector.broadcast %cst_14 : f32 to vector<16x64xf32>
      %19 = arith.mulf %18, %17 : vector<16x64xf32>
      %20 = arith.addf %15, %19 : vector<16x64xf32>
      %cst_15 = arith.constant 0.797884583 : f32
      %21 = vector.broadcast %cst_15 : f32 to vector<16x64xf32>
      %22 = arith.mulf %21, %20 : vector<16x64xf32>
      %23 = math.tanh %22 : vector<16x64xf32>
      %cst_16 = arith.constant 1.000000e+00 : f32
      %24 = vector.broadcast %cst_16 : f32 to vector<16x64xf32>
      %25 = arith.addf %24, %23 : vector<16x64xf32>
      %cst_17 = arith.constant 5.000000e-01 : f32
      %26 = vector.broadcast %cst_17 : f32 to vector<16x64xf32>
      %27 = arith.mulf %26, %25 : vector<16x64xf32>
      %28 = arith.mulf %15, %27 : vector<16x64xf32>
      %29 = arith.truncf %28 : vector<16x64xf32> to vector<16x64xbf16>
      %c0_18 = arith.constant 0 : index
      %c0_19 = arith.constant 0 : index
      %30 = vector.load %arg6[%c0_18, %c0_19] : memref<16x64xbf16, #tpu.memory_space<vmem>>, vector<16x64xbf16>
      tpu.vector_store %arg6[%c0_18, %c0_19], %29 {strides = array<i32>} : memref<16x64xbf16, #tpu.memory_space<vmem>>, vector<16x64xbf16>,
    } else {
    }
    return
  }
  func.func @transform_0(%arg0: i32, %arg1: i32, %arg2: i32) -> (i32, i32) {
    %c0_i32 = arith.constant 0 : i32
    return %arg0, %arg2 : i32, i32
  }
  func.func @transform_1(%arg0: i32, %arg1: i32, %arg2: i32) -> (i32, i32) {
    %c0_i32 = arith.constant 0 : i32
    return %arg2, %arg1 : i32, i32
  }
  func.func @transform_2(%arg0: i32, %arg1: i32, %arg2: i32) -> (i32, i32) {
    %c0_i32 = arith.constant 0 : i32
    %c0_i32_0 = arith.constant 0 : i32
    return %c0_i32, %arg1 : i32, i32
  }
  func.func @transform_3(%arg0: i32, %arg1: i32, %arg2: i32) -> (i32, i32) {
    %c0_i32 = arith.constant 0 : i32
    return %arg0, %arg1 : i32, i32
  }
}

module attributes {stable_mosaic.version = 11 : i64} {
  func.func @_linear_res_ln_kernel(%arg0: i32, %arg1: i32, %arg2: memref<16x64xbf16, #tpu.memory_space<vmem>>, %arg3: memref<64x32xbf16, #tpu.memory_space<vmem>>, %arg4: memref<1x32xf32, #tpu.memory_space<vmem>>, %arg5: memref<16x32xf32, #tpu.memory_space<vmem>>, %arg6: memref<1x32xf32, #tpu.memory_space<vmem>>, %arg7: memref<1x32xf32, #tpu.memory_space<vmem>>, %arg8: memref<16x32xf32, #tpu.memory_space<vmem>>, %arg9: memref<16x32xf32, #tpu.memory_space<vmem>>) attributes {dimension_semantics = [#tpu.dimension_semantics<parallel>, #tpu.dimension_semantics<arbitrary>], iteration_bounds = array<i64: 1, 1>, scalar_prefetch = 0 : i64, scratch_operands = 1 : i64, tpu.core_type = #tpu.core_type<tc>, window_params = [{transform_indices = @transform_0, window_bounds = array<i64: 16, 64>}, {transform_indices = @transform_1, window_bounds = array<i64: 64, 32>}, {pipeline_mode = #tpu.pipeline_mode<synchronous>, transform_indices = @transform_2, window_bounds = array<i64: 1, 32>}, {transform_indices = @transform_3, window_bounds = array<i64: 16, 32>}, {pipeline_mode = #tpu.pipeline_mode<synchronous>, transform_indices = @transform_4, window_bounds = array<i64: 1, 32>}, {pipeline_mode = #tpu.pipeline_mode<synchronous>, transform_indices = @transform_5, window_bounds = array<i64: 1, 32>}, {transform_indices = @transform_6, window_bounds = array<i64: 16, 32>}]} {
    %c0_i32 = arith.constant 0 : i32
    %0 = arith.cmpi eq, %arg1, %c0_i32 : i32
    %1 = arith.extui %0 : i1 to i32
    %c0_i32_0 = arith.constant 0 : i32
    %2 = arith.cmpi ne, %1, %c0_i32_0 : i32
    scf.if %2 {
      %cst_10 = arith.constant 0.000000e+00 : f32
      %12 = vector.broadcast %cst_10 : f32 to vector<16x32xf32>
      %c0_11 = arith.constant 0 : index
      %c0_12 = arith.constant 0 : index
      %13 = vector.load %arg9[%c0_11, %c0_12] : memref<16x32xf32, #tpu.memory_space<vmem>>, vector<16x32xf32>
      tpu.vector_store %arg9[%c0_11, %c0_12], %12 {strides = array<i32>} : memref<16x32xf32, #tpu.memory_space<vmem>>, vector<16x32xf32>,
    } else {
    }
    %c0 = arith.constant 0 : index
    %c0_1 = arith.constant 0 : index
    %3 = vector.load %arg9[%c0, %c0_1] : memref<16x32xf32, #tpu.memory_space<vmem>>, vector<16x32xf32>
    %c0_2 = arith.constant 0 : index
    %c0_3 = arith.constant 0 : index
    %4 = vector.load %arg2[%c0_2, %c0_3] : memref<16x64xbf16, #tpu.memory_space<vmem>>, vector<16x64xbf16>
    %c0_4 = arith.constant 0 : index
    %c0_5 = arith.constant 0 : index
    %5 = vector.load %arg3[%c0_4, %c0_5] : memref<64x32xbf16, #tpu.memory_space<vmem>>, vector<64x32xbf16>
    %cst = arith.constant dense<0.000000e+00> : vector<16x32xf32>
    %6 = tpu.matmul %4, %5, %cst {dimension_numbers = #tpu.dot_dimension_numbers<[1], [0], [0], [1], [0, 0, 1, 1], [], []>} : vector<16x64xbf16>, vector<64x32xbf16>, vector<16x32xf32> -> vector<16x32xf32>
    %7 = arith.addf %3, %6 : vector<16x32xf32>
    %c0_6 = arith.constant 0 : index
    %c0_7 = arith.constant 0 : index
    %8 = vector.load %arg9[%c0_6, %c0_7] : memref<16x32xf32, #tpu.memory_space<vmem>>, vector<16x32xf32>
    tpu.vector_store %arg9[%c0_6, %c0_7], %7 {strides = array<i32>} : memref<16x32xf32, #tpu.memory_space<vmem>>, vector<16x32xf32>,
    %c0_i32_8 = arith.constant 0 : i32
    %9 = arith.cmpi eq, %arg1, %c0_i32_8 : i32
    %10 = arith.extui %9 : i1 to i32
    %c0_i32_9 = arith.constant 0 : i32
    %11 = arith.cmpi ne, %10, %c0_i32_9 : i32
    scf.if %11 {
      %c0_10 = arith.constant 0 : index
      %c0_11 = arith.constant 0 : index
      %12 = vector.load %arg9[%c0_10, %c0_11] : memref<16x32xf32, #tpu.memory_space<vmem>>, vector<16x32xf32>
      %c0_12 = arith.constant 0 : index
      %c0_13 = arith.constant 0 : index
      %13 = vector.load %arg4[%c0_12, %c0_13] : memref<1x32xf32, #tpu.memory_space<vmem>>, vector<1x32xf32>
      %14 = vector.broadcast %13 : vector<1x32xf32> to vector<16x32xf32>
      %15 = arith.addf %12, %14 : vector<16x32xf32>
      %c0_14 = arith.constant 0 : index
      %c0_15 = arith.constant 0 : index
      %16 = vector.load %arg5[%c0_14, %c0_15] : memref<16x32xf32, #tpu.memory_space<vmem>>, vector<16x32xf32>
      %17 = arith.addf %15, %16 : vector<16x32xf32>
      %cst_16 = arith.constant dense<0.000000e+00> : vector<16xf32>
      %18 = vector.multi_reduction <add>, %17, %cst_16 [1] : vector<16x32xf32> to vector<16xf32>
      %19 = vector.shape_cast %18 : vector<16xf32> to vector<16x1xf32>
      %cst_17 = arith.constant 3.200000e+01 : f32
      %20 = vector.broadcast %cst_17 : f32 to vector<16x1xf32>
      %21 = arith.divf %19, %20 : vector<16x1xf32>
      %22 = vector.broadcast %21 : vector<16x1xf32> to vector<16x32xf32>
      %23 = arith.subf %17, %22 : vector<16x32xf32>
      %24 = arith.mulf %23, %23 : vector<16x32xf32>
      %cst_18 = arith.constant dense<0.000000e+00> : vector<16xf32>
      %25 = vector.multi_reduction <add>, %24, %cst_18 [1] : vector<16x32xf32> to vector<16xf32>
      %26 = vector.shape_cast %25 : vector<16xf32> to vector<16x1xf32>
      %cst_19 = arith.constant 3.200000e+01 : f32
      %27 = vector.broadcast %cst_19 : f32 to vector<16x1xf32>
      %28 = arith.divf %26, %27 : vector<16x1xf32>
      %29 = vector.broadcast %21 : vector<16x1xf32> to vector<16x32xf32>
      %30 = arith.subf %17, %29 : vector<16x32xf32>
      %cst_20 = arith.constant 9.99999996E-13 : f32
      %31 = vector.broadcast %cst_20 : f32 to vector<16x1xf32>
      %32 = arith.addf %28, %31 : vector<16x1xf32>
      %33 = math.rsqrt %32 : vector<16x1xf32>
      %34 = vector.broadcast %33 : vector<16x1xf32> to vector<16x32xf32>
      %35 = arith.mulf %30, %34 : vector<16x32xf32>
      %c0_21 = arith.constant 0 : index
      %c0_22 = arith.constant 0 : index
      %36 = vector.load %arg6[%c0_21, %c0_22] : memref<1x32xf32, #tpu.memory_space<vmem>>, vector<1x32xf32>
      %37 = vector.broadcast %36 : vector<1x32xf32> to vector<16x32xf32>
      %38 = arith.mulf %35, %37 : vector<16x32xf32>
      %c0_23 = arith.constant 0 : index
      %c0_24 = arith.constant 0 : index
      %39 = vector.load %arg7[%c0_23, %c0_24] : memref<1x32xf32, #tpu.memory_space<vmem>>, vector<1x32xf32>
      %40 = vector.broadcast %39 : vector<1x32xf32> to vector<16x32xf32>
      %41 = arith.addf %38, %40 : vector<16x32xf32>
      %c0_25 = arith.constant 0 : index
      %c0_26 = arith.constant 0 : index
      %42 = vector.load %arg8[%c0_25, %c0_26] : memref<16x32xf32, #tpu.memory_space<vmem>>, vector<16x32xf32>
      tpu.vector_store %arg8[%c0_25, %c0_26], %41 {strides = array<i32>} : memref<16x32xf32, #tpu.memory_space<vmem>>, vector<16x32xf32>,
    } else {
    }
    return
  }
  func.func @transform_0(%arg0: i32, %arg1: i32) -> (i32, i32) {
    %c0_i32 = arith.constant 0 : i32
    return %arg0, %arg1 : i32, i32
  }
  func.func @transform_1(%arg0: i32, %arg1: i32) -> (i32, i32) {
    %c0_i32 = arith.constant 0 : i32
    %c0_i32_0 = arith.constant 0 : i32
    return %arg1, %c0_i32 : i32, i32
  }
  func.func @transform_2(%arg0: i32, %arg1: i32) -> (i32, i32) {
    %c0_i32 = arith.constant 0 : i32
    %c0_i32_0 = arith.constant 0 : i32
    %c0_i32_1 = arith.constant 0 : i32
    return %c0_i32, %c0_i32_0 : i32, i32
  }
  func.func @transform_3(%arg0: i32, %arg1: i32) -> (i32, i32) {
    %c0_i32 = arith.constant 0 : i32
    %c0_i32_0 = arith.constant 0 : i32
    return %arg0, %c0_i32 : i32, i32
  }
  func.func @transform_4(%arg0: i32, %arg1: i32) -> (i32, i32) {
    %c0_i32 = arith.constant 0 : i32
    %c0_i32_0 = arith.constant 0 : i32
    %c0_i32_1 = arith.constant 0 : i32
    return %c0_i32, %c0_i32_0 : i32, i32
  }
  func.func @transform_5(%arg0: i32, %arg1: i32) -> (i32, i32) {
    %c0_i32 = arith.constant 0 : i32
    %c0_i32_0 = arith.constant 0 : i32
    %c0_i32_1 = arith.constant 0 : i32
    return %c0_i32, %c0_i32_0 : i32, i32
  }
  func.func @transform_6(%arg0: i32, %arg1: i32) -> (i32, i32) {
    %c0_i32 = arith.constant 0 : i32
    %c0_i32_0 = arith.constant 0 : i32
    return %arg0, %c0_i32 : i32, i32
  }
}

module attributes {stable_mosaic.version = 11 : i64} {
  func.func @_linear_kernel(%arg0: i32, %arg1: i32, %arg2: i32, %arg3: memref<16x32xbf16, #tpu.memory_space<vmem>>, %arg4: memref<32x128xbf16, #tpu.memory_space<vmem>>, %arg5: memref<1x128xf32, #tpu.memory_space<vmem>>, %arg6: memref<16x128xbf16, #tpu.memory_space<vmem>>, %arg7: memref<16x128xf32, #tpu.memory_space<vmem>>) attributes {dimension_semantics = [#tpu.dimension_semantics<parallel>, #tpu.dimension_semantics<parallel>, #tpu.dimension_semantics<arbitrary>], iteration_bounds = array<i64: 1, 1, 1>, scalar_prefetch = 0 : i64, scratch_operands = 1 : i64, tpu.core_type = #tpu.core_type<tc>, window_params = [{transform_indices = @transform_0, window_bounds = array<i64: 16, 32>}, {transform_indices = @transform_1, window_bounds = array<i64: 32, 128>}, {transform_indices = @transform_2, window_bounds = array<i64: 1, 128>}, {transform_indices = @transform_3, window_bounds = array<i64: 16, 128>}]} {
    %c0_i32 = arith.constant 0 : i32
    %0 = arith.cmpi eq, %arg2, %c0_i32 : i32
    %1 = arith.extui %0 : i1 to i32
    %c0_i32_0 = arith.constant 0 : i32
    %2 = arith.cmpi ne, %1, %c0_i32_0 : i32
    scf.if %2 {
      %cst_10 = arith.constant 0.000000e+00 : f32
      %12 = vector.broadcast %cst_10 : f32 to vector<16x128xf32>
      %c0_11 = arith.constant 0 : index
      %c0_12 = arith.constant 0 : index
      %13 = vector.load %arg7[%c0_11, %c0_12] : memref<16x128xf32, #tpu.memory_space<vmem>>, vector<16x128xf32>
      tpu.vector_store %arg7[%c0_11, %c0_12], %12 {strides = array<i32>} : memref<16x128xf32, #tpu.memory_space<vmem>>, vector<16x128xf32>,
    } else {
    }
    %c0 = arith.constant 0 : index
    %c0_1 = arith.constant 0 : index
    %3 = vector.load %arg7[%c0, %c0_1] : memref<16x128xf32, #tpu.memory_space<vmem>>, vector<16x128xf32>
    %c0_2 = arith.constant 0 : index
    %c0_3 = arith.constant 0 : index
    %4 = vector.load %arg3[%c0_2, %c0_3] : memref<16x32xbf16, #tpu.memory_space<vmem>>, vector<16x32xbf16>
    %c0_4 = arith.constant 0 : index
    %c0_5 = arith.constant 0 : index
    %5 = vector.load %arg4[%c0_4, %c0_5] : memref<32x128xbf16, #tpu.memory_space<vmem>>, vector<32x128xbf16>
    %cst = arith.constant dense<0.000000e+00> : vector<16x128xf32>
    %6 = tpu.matmul %4, %5, %cst {dimension_numbers = #tpu.dot_dimension_numbers<[1], [0], [0], [1], [0, 0, 1, 1], [], []>} : vector<16x32xbf16>, vector<32x128xbf16>, vector<16x128xf32> -> vector<16x128xf32>
    %7 = arith.addf %3, %6 : vector<16x128xf32>
    %c0_6 = arith.constant 0 : index
    %c0_7 = arith.constant 0 : index
    %8 = vector.load %arg7[%c0_6, %c0_7] : memref<16x128xf32, #tpu.memory_space<vmem>>, vector<16x128xf32>
    tpu.vector_store %arg7[%c0_6, %c0_7], %7 {strides = array<i32>} : memref<16x128xf32, #tpu.memory_space<vmem>>, vector<16x128xf32>,
    %c0_i32_8 = arith.constant 0 : i32
    %9 = arith.cmpi eq, %arg2, %c0_i32_8 : i32
    %10 = arith.extui %9 : i1 to i32
    %c0_i32_9 = arith.constant 0 : i32
    %11 = arith.cmpi ne, %10, %c0_i32_9 : i32
    scf.if %11 {
      %c0_10 = arith.constant 0 : index
      %c0_11 = arith.constant 0 : index
      %12 = vector.load %arg7[%c0_10, %c0_11] : memref<16x128xf32, #tpu.memory_space<vmem>>, vector<16x128xf32>
      %c0_12 = arith.constant 0 : index
      %c0_13 = arith.constant 0 : index
      %13 = vector.load %arg5[%c0_12, %c0_13] : memref<1x128xf32, #tpu.memory_space<vmem>>, vector<1x128xf32>
      %14 = vector.broadcast %13 : vector<1x128xf32> to vector<16x128xf32>
      %15 = arith.addf %12, %14 : vector<16x128xf32>
      %16 = arith.truncf %15 : vector<16x128xf32> to vector<16x128xbf16>
      %c0_14 = arith.constant 0 : index
      %c0_15 = arith.constant 0 : index
      %17 = vector.load %arg6[%c0_14, %c0_15] : memref<16x128xbf16, #tpu.memory_space<vmem>>, vector<16x128xbf16>
      tpu.vector_store %arg6[%c0_14, %c0_15], %16 {strides = array<i32>} : memref<16x128xbf16, #tpu.memory_space<vmem>>, vector<16x128xbf16>,
    } else {
    }
    return
  }
  func.func @transform_0(%arg0: i32, %arg1: i32, %arg2: i32) -> (i32, i32) {
    %c0_i32 = arith.constant 0 : i32
    return %arg0, %arg2 : i32, i32
  }
  func.func @transform_1(%arg0: i32, %arg1: i32, %arg2: i32) -> (i32, i32) {
    %c0_i32 = arith.constant 0 : i32
    return %arg2, %arg1 : i32, i32
  }
  func.func @transform_2(%arg0: i32, %arg1: i32, %arg2: i32) -> (i32, i32) {
    %c0_i32 = arith.constant 0 : i32
    %c0_i32_0 = arith.constant 0 : i32
    return %c0_i32, %arg1 : i32, i32
  }
  func.func @transform_3(%arg0: i32, %arg1: i32, %arg2: i32) -> (i32, i32) {
    %c0_i32 = arith.constant 0 : i32
    return %arg0, %arg1 : i32, i32
  }
}

module attributes {stable_mosaic.version = 11 : i64} {
  func.func @_bilstm_kernel(%arg0: memref<8x2x128xbf16, #tpu.memory_space<vmem>>, %arg1: memref<16x64xbf16, #tpu.memory_space<vmem>>, %arg2: memref<16x64xbf16, #tpu.memory_space<vmem>>, %arg3: memref<8x2x32xf32, #tpu.memory_space<vmem>>) attributes {dimension_semantics = [], scalar_prefetch = 0 : i64, scratch_operands = 0 : i64, tpu.core_type = #tpu.core_type<tc>} {
    %c0 = arith.constant 0 : index
    %c0_0 = arith.constant 0 : index
    %0 = vector.load %arg1[%c0, %c0_0] : memref<16x64xbf16, #tpu.memory_space<vmem>>, vector<16x64xbf16>
    %c0_1 = arith.constant 0 : index
    %c0_2 = arith.constant 0 : index
    %1 = vector.load %arg2[%c0_1, %c0_2] : memref<16x64xbf16, #tpu.memory_space<vmem>>, vector<16x64xbf16>
    %cst = arith.constant 0.000000e+00 : f32
    %2 = vector.broadcast %cst : f32 to vector<2x16xf32>
    %c0_i32 = arith.constant 0 : i32
    %c8_i32 = arith.constant 8 : i32
    %3 = arith.addi %c0_i32, %c8_i32 : i32
    %c1_i32 = arith.constant 1 : i32
    %4:4 = scf.for %arg4 = %c0_i32 to %3 step %c1_i32 iter_args(%arg5 = %2, %arg6 = %2, %arg7 = %2, %arg8 = %2) -> (vector<2x16xf32>, vector<2x16xf32>, vector<2x16xf32>, vector<2x16xf32>)  : i32 {
      %c7_i32 = arith.constant 7 : i32
      %5 = arith.subi %c7_i32, %arg4 : i32
      %6 = arith.index_cast %arg4 : i32 to index
      %c0_4 = arith.constant 0 : index
      %c0_5 = arith.constant 0 : index
      %7 = vector.load %arg0[%6, %c0_4, %c0_5] : memref<8x2x128xbf16, #tpu.memory_space<vmem>>, vector<1x2x128xbf16>
      %8 = vector.shape_cast %7 : vector<1x2x128xbf16> to vector<2x128xbf16>
      %9 = arith.extf %8 : vector<2x128xbf16> to vector<2x128xf32>
      %10 = arith.index_cast %5 : i32 to index
      %c0_6 = arith.constant 0 : index
      %c0_7 = arith.constant 0 : index
      %11 = vector.load %arg0[%10, %c0_6, %c0_7] : memref<8x2x128xbf16, #tpu.memory_space<vmem>>, vector<1x2x128xbf16>
      %12 = vector.shape_cast %11 : vector<1x2x128xbf16> to vector<2x128xbf16>
      %13 = arith.extf %12 : vector<2x128xbf16> to vector<2x128xf32>
      %14 = vector.extract_strided_slice %9 {offsets = [0, 0], sizes = [2, 64], strides = [1, 1]} : vector<2x128xf32> to vector<2x64xf32>
      %15 = arith.truncf %arg5 : vector<2x16xf32> to vector<2x16xbf16>
      %cst_8 = arith.constant dense<0.000000e+00> : vector<2x64xf32>
      %16 = tpu.matmul %15, %0, %cst_8 {dimension_numbers = #tpu.dot_dimension_numbers<[1], [0], [0], [1], [0, 0, 1, 1], [], []>} : vector<2x16xbf16>, vector<16x64xbf16>, vector<2x64xf32> -> vector<2x64xf32>
      %17 = arith.addf %14, %16 : vector<2x64xf32>
      %18 = vector.extract_strided_slice %13 {offsets = [0, 64], sizes = [2, 64], strides = [1, 1]} : vector<2x128xf32> to vector<2x64xf32>
      %19 = arith.truncf %arg6 : vector<2x16xf32> to vector<2x16xbf16>
      %cst_9 = arith.constant dense<0.000000e+00> : vector<2x64xf32>
      %20 = tpu.matmul %19, %1, %cst_9 {dimension_numbers = #tpu.dot_dimension_numbers<[1], [0], [0], [1], [0, 0, 1, 1], [], []>} : vector<2x16xbf16>, vector<16x64xbf16>, vector<2x64xf32> -> vector<2x64xf32>
      %21 = arith.addf %18, %20 : vector<2x64xf32>
      %22 = vector.extract_strided_slice %17 {offsets = [0, 0], sizes = [2, 16], strides = [1, 1]} : vector<2x64xf32> to vector<2x16xf32>
      %23 = arith.negf %22 : vector<2x16xf32>
      %24 = math.exp %23 : vector<2x16xf32>
      %cst_10 = arith.constant 1.000000e+00 : f32
      %25 = vector.broadcast %cst_10 : f32 to vector<2x16xf32>
      %26 = arith.addf %25, %24 : vector<2x16xf32>
      %27 = arith.divf %25, %26 : vector<2x16xf32>
      %28 = vector.extract_strided_slice %17 {offsets = [0, 16], sizes = [2, 16], strides = [1, 1]} : vector<2x64xf32> to vector<2x16xf32>
      %29 = arith.negf %28 : vector<2x16xf32>
      %30 = math.exp %29 : vector<2x16xf32>
      %cst_11 = arith.constant 1.000000e+00 : f32
      %31 = vector.broadcast %cst_11 : f32 to vector<2x16xf32>
      %32 = arith.addf %31, %30 : vector<2x16xf32>
      %33 = arith.divf %31, %32 : vector<2x16xf32>
      %34 = vector.extract_strided_slice %17 {offsets = [0, 32], sizes = [2, 16], strides = [1, 1]} : vector<2x64xf32> to vector<2x16xf32>
      %35 = math.tanh %34 : vector<2x16xf32>
      %36 = vector.extract_strided_slice %17 {offsets = [0, 48], sizes = [2, 16], strides = [1, 1]} : vector<2x64xf32> to vector<2x16xf32>
      %37 = arith.negf %36 : vector<2x16xf32>
      %38 = math.exp %37 : vector<2x16xf32>
      %cst_12 = arith.constant 1.000000e+00 : f32
      %39 = vector.broadcast %cst_12 : f32 to vector<2x16xf32>
      %40 = arith.addf %39, %38 : vector<2x16xf32>
      %41 = arith.divf %39, %40 : vector<2x16xf32>
      %42 = arith.mulf %33, %arg7 : vector<2x16xf32>
      %43 = arith.mulf %27, %35 : vector<2x16xf32>
      %44 = arith.addf %42, %43 : vector<2x16xf32>
      %45 = math.tanh %44 : vector<2x16xf32>
      %46 = arith.mulf %41, %45 : vector<2x16xf32>
      %47 = vector.extract_strided_slice %21 {offsets = [0, 0], sizes = [2, 16], strides = [1, 1]} : vector<2x64xf32> to vector<2x16xf32>
      %48 = arith.negf %47 : vector<2x16xf32>
      %49 = math.exp %48 : vector<2x16xf32>
      %cst_13 = arith.constant 1.000000e+00 : f32
      %50 = vector.broadcast %cst_13 : f32 to vector<2x16xf32>
      %51 = arith.addf %50, %49 : vector<2x16xf32>
      %52 = arith.divf %50, %51 : vector<2x16xf32>
      %53 = vector.extract_strided_slice %21 {offsets = [0, 16], sizes = [2, 16], strides = [1, 1]} : vector<2x64xf32> to vector<2x16xf32>
      %54 = arith.negf %53 : vector<2x16xf32>
      %55 = math.exp %54 : vector<2x16xf32>
      %cst_14 = arith.constant 1.000000e+00 : f32
      %56 = vector.broadcast %cst_14 : f32 to vector<2x16xf32>
      %57 = arith.addf %56, %55 : vector<2x16xf32>
      %58 = arith.divf %56, %57 : vector<2x16xf32>
      %59 = vector.extract_strided_slice %21 {offsets = [0, 32], sizes = [2, 16], strides = [1, 1]} : vector<2x64xf32> to vector<2x16xf32>
      %60 = math.tanh %59 : vector<2x16xf32>
      %61 = vector.extract_strided_slice %21 {offsets = [0, 48], sizes = [2, 16], strides = [1, 1]} : vector<2x64xf32> to vector<2x16xf32>
      %62 = arith.negf %61 : vector<2x16xf32>
      %63 = math.exp %62 : vector<2x16xf32>
      %cst_15 = arith.constant 1.000000e+00 : f32
      %64 = vector.broadcast %cst_15 : f32 to vector<2x16xf32>
      %65 = arith.addf %64, %63 : vector<2x16xf32>
      %66 = arith.divf %64, %65 : vector<2x16xf32>
      %67 = arith.mulf %58, %arg8 : vector<2x16xf32>
      %68 = arith.mulf %52, %60 : vector<2x16xf32>
      %69 = arith.addf %67, %68 : vector<2x16xf32>
      %70 = math.tanh %69 : vector<2x16xf32>
      %71 = arith.mulf %66, %70 : vector<2x16xf32>
      %72 = arith.index_cast %arg4 : i32 to index
      %c0_16 = arith.constant 0 : index
      %c0_17 = arith.constant 0 : index
      %73 = vector.load %arg3[%72, %c0_16, %c0_17] : memref<8x2x32xf32, #tpu.memory_space<vmem>>, vector<1x2x16xf32>
      %74 = vector.shape_cast %73 : vector<1x2x16xf32> to vector<2x16xf32>
      %75 = vector.shape_cast %46 : vector<2x16xf32> to vector<1x2x16xf32>
      tpu.vector_store %arg3[%72, %c0_16, %c0_17], %75 {strides = array<i32>} : memref<8x2x32xf32, #tpu.memory_space<vmem>>, vector<1x2x16xf32>,
      %76 = arith.index_cast %5 : i32 to index
      %c0_18 = arith.constant 0 : index
      %c16 = arith.constant 16 : index
      %77 = vector.load %arg3[%76, %c0_18, %c16] : memref<8x2x32xf32, #tpu.memory_space<vmem>>, vector<1x2x16xf32>
      %78 = vector.shape_cast %77 : vector<1x2x16xf32> to vector<2x16xf32>
      %79 = vector.shape_cast %71 : vector<2x16xf32> to vector<1x2x16xf32>
      tpu.vector_store %arg3[%76, %c0_18, %c16], %79 {strides = array<i32>} : memref<8x2x32xf32, #tpu.memory_space<vmem>>, vector<1x2x16xf32>,
      scf.yield %46, %71, %44, %69 : vector<2x16xf32>, vector<2x16xf32>, vector<2x16xf32>, vector<2x16xf32>
    }
    %c8_i32_3 = arith.constant 8 : i32
    return
  }
}

module attributes {stable_mosaic.version = 11 : i64} {
  func.func @_linear_kernel(%arg0: i32, %arg1: i32, %arg2: i32, %arg3: memref<16x32xbf16, #tpu.memory_space<vmem>>, %arg4: memref<32x128xbf16, #tpu.memory_space<vmem>>, %arg5: memref<1x128xf32, #tpu.memory_space<vmem>>, %arg6: memref<16x128xf32, #tpu.memory_space<vmem>>, %arg7: memref<16x128xf32, #tpu.memory_space<vmem>>) attributes {dimension_semantics = [#tpu.dimension_semantics<parallel>, #tpu.dimension_semantics<parallel>, #tpu.dimension_semantics<arbitrary>], iteration_bounds = array<i64: 1, 1, 1>, scalar_prefetch = 0 : i64, scratch_operands = 1 : i64, tpu.core_type = #tpu.core_type<tc>, window_params = [{transform_indices = @transform_0, window_bounds = array<i64: 16, 32>}, {transform_indices = @transform_1, window_bounds = array<i64: 32, 128>}, {transform_indices = @transform_2, window_bounds = array<i64: 1, 128>}, {transform_indices = @transform_3, window_bounds = array<i64: 16, 128>}]} {
    %c0_i32 = arith.constant 0 : i32
    %0 = arith.cmpi eq, %arg2, %c0_i32 : i32
    %1 = arith.extui %0 : i1 to i32
    %c0_i32_0 = arith.constant 0 : i32
    %2 = arith.cmpi ne, %1, %c0_i32_0 : i32
    scf.if %2 {
      %cst_10 = arith.constant 0.000000e+00 : f32
      %12 = vector.broadcast %cst_10 : f32 to vector<16x128xf32>
      %c0_11 = arith.constant 0 : index
      %c0_12 = arith.constant 0 : index
      %13 = vector.load %arg7[%c0_11, %c0_12] : memref<16x128xf32, #tpu.memory_space<vmem>>, vector<16x128xf32>
      tpu.vector_store %arg7[%c0_11, %c0_12], %12 {strides = array<i32>} : memref<16x128xf32, #tpu.memory_space<vmem>>, vector<16x128xf32>,
    } else {
    }
    %c0 = arith.constant 0 : index
    %c0_1 = arith.constant 0 : index
    %3 = vector.load %arg7[%c0, %c0_1] : memref<16x128xf32, #tpu.memory_space<vmem>>, vector<16x128xf32>
    %c0_2 = arith.constant 0 : index
    %c0_3 = arith.constant 0 : index
    %4 = vector.load %arg3[%c0_2, %c0_3] : memref<16x32xbf16, #tpu.memory_space<vmem>>, vector<16x32xbf16>
    %c0_4 = arith.constant 0 : index
    %c0_5 = arith.constant 0 : index
    %5 = vector.load %arg4[%c0_4, %c0_5] : memref<32x128xbf16, #tpu.memory_space<vmem>>, vector<32x128xbf16>
    %cst = arith.constant dense<0.000000e+00> : vector<16x128xf32>
    %6 = tpu.matmul %4, %5, %cst {dimension_numbers = #tpu.dot_dimension_numbers<[1], [0], [0], [1], [0, 0, 1, 1], [], []>} : vector<16x32xbf16>, vector<32x128xbf16>, vector<16x128xf32> -> vector<16x128xf32>
    %7 = arith.addf %3, %6 : vector<16x128xf32>
    %c0_6 = arith.constant 0 : index
    %c0_7 = arith.constant 0 : index
    %8 = vector.load %arg7[%c0_6, %c0_7] : memref<16x128xf32, #tpu.memory_space<vmem>>, vector<16x128xf32>
    tpu.vector_store %arg7[%c0_6, %c0_7], %7 {strides = array<i32>} : memref<16x128xf32, #tpu.memory_space<vmem>>, vector<16x128xf32>,
    %c0_i32_8 = arith.constant 0 : i32
    %9 = arith.cmpi eq, %arg2, %c0_i32_8 : i32
    %10 = arith.extui %9 : i1 to i32
    %c0_i32_9 = arith.constant 0 : i32
    %11 = arith.cmpi ne, %10, %c0_i32_9 : i32
    scf.if %11 {
      %c0_10 = arith.constant 0 : index
      %c0_11 = arith.constant 0 : index
      %12 = vector.load %arg7[%c0_10, %c0_11] : memref<16x128xf32, #tpu.memory_space<vmem>>, vector<16x128xf32>
      %c0_12 = arith.constant 0 : index
      %c0_13 = arith.constant 0 : index
      %13 = vector.load %arg5[%c0_12, %c0_13] : memref<1x128xf32, #tpu.memory_space<vmem>>, vector<1x128xf32>
      %14 = vector.broadcast %13 : vector<1x128xf32> to vector<16x128xf32>
      %15 = arith.addf %12, %14 : vector<16x128xf32>
      %c0_14 = arith.constant 0 : index
      %c0_15 = arith.constant 0 : index
      %16 = vector.load %arg6[%c0_14, %c0_15] : memref<16x128xf32, #tpu.memory_space<vmem>>, vector<16x128xf32>
      tpu.vector_store %arg6[%c0_14, %c0_15], %15 {strides = array<i32>} : memref<16x128xf32, #tpu.memory_space<vmem>>, vector<16x128xf32>,
    } else {
    }
    return
  }
  func.func @transform_0(%arg0: i32, %arg1: i32, %arg2: i32) -> (i32, i32) {
    %c0_i32 = arith.constant 0 : i32
    return %arg0, %arg2 : i32, i32
  }
  func.func @transform_1(%arg0: i32, %arg1: i32, %arg2: i32) -> (i32, i32) {
    %c0_i32 = arith.constant 0 : i32
    return %arg2, %arg1 : i32, i32
  }
  func.func @transform_2(%arg0: i32, %arg1: i32, %arg2: i32) -> (i32, i32) {
    %c0_i32 = arith.constant 0 : i32
    %c0_i32_0 = arith.constant 0 : i32
    return %c0_i32, %arg1 : i32, i32
  }
  func.func @transform_3(%arg0: i32, %arg1: i32, %arg2: i32) -> (i32, i32) {
    %c0_i32 = arith.constant 0 : i32
    return %arg0, %arg1 : i32, i32
  }
}

module attributes {stable_mosaic.version = 11 : i64} {
  func.func @_crf_forward_kernel(%arg0: memref<8x2x128xf32, #tpu.memory_space<vmem>>, %arg1: memref<8x2x1xf32, #tpu.memory_space<vmem>>, %arg2: memref<2x1xf32, #tpu.memory_space<vmem>>, %arg3: memref<128x128xf32, #tpu.memory_space<vmem>>, %arg4: memref<1x128xf32, #tpu.memory_space<vmem>>, %arg5: memref<1x128xf32, #tpu.memory_space<vmem>>, %arg6: memref<1x1xf32, #tpu.memory_space<vmem>>) attributes {dimension_semantics = [], scalar_prefetch = 0 : i64, scratch_operands = 0 : i64, tpu.core_type = #tpu.core_type<tc>} {
    %c0 = arith.constant 0 : index
    %c0_0 = arith.constant 0 : index
    %0 = vector.load %arg3[%c0, %c0_0] : memref<128x128xf32, #tpu.memory_space<vmem>>, vector<128x128xf32>
    %c0_1 = arith.constant 0 : index
    %c0_2 = arith.constant 0 : index
    %1 = vector.load %arg4[%c0_1, %c0_2] : memref<1x128xf32, #tpu.memory_space<vmem>>, vector<1x128xf32>
    %c0_3 = arith.constant 0 : index
    %c0_4 = arith.constant 0 : index
    %c0_5 = arith.constant 0 : index
    %2 = vector.load %arg0[%c0_3, %c0_4, %c0_5] : memref<8x2x128xf32, #tpu.memory_space<vmem>>, vector<1x2x128xf32>
    %3 = vector.shape_cast %2 : vector<1x2x128xf32> to vector<2x128xf32>
    %4 = vector.broadcast %1 : vector<1x128xf32> to vector<2x128xf32>
    %5 = arith.addf %4, %3 : vector<2x128xf32>
    %c1_i32 = arith.constant 1 : i32
    %c7_i32 = arith.constant 7 : i32
    %6 = arith.addi %c1_i32, %c7_i32 : i32
    %c1_i32_6 = arith.constant 1 : i32
    %7 = scf.for %arg7 = %c1_i32 to %6 step %c1_i32_6 iter_args(%arg8 = %5) -> (vector<2x128xf32>)  : i32 {
      %cst_17 = arith.constant dense<0xFF800000> : vector<2xf32>
      %29 = vector.multi_reduction <maximumf>, %arg8, %cst_17 [1] : vector<2x128xf32> to vector<2xf32>
      %30 = vector.shape_cast %29 : vector<2xf32> to vector<2x1xf32>
      %31 = vector.broadcast %30 : vector<2x1xf32> to vector<2x128xf32>
      %32 = arith.subf %arg8, %31 : vector<2x128xf32>
      %33 = math.exp %32 : vector<2x128xf32>
      %cst_18 = arith.constant dense<0.000000e+00> : vector<2x128xf32>
      %34 = tpu.matmul %33, %0, %cst_18 {dimension_numbers = #tpu.dot_dimension_numbers<[1], [0], [0], [1], [0, 0, 1, 1], [], []>} : vector<2x128xf32>, vector<128x128xf32>, vector<2x128xf32> -> vector<2x128xf32>
      %cst_19 = arith.constant 1.000000e-30 : f32
      %35 = vector.broadcast %cst_19 : f32 to vector<2x128xf32>
      %36 = arith.maximumf %34, %35 : vector<2x128xf32>
      %37 = math.log %36 : vector<2x128xf32>
      %38 = vector.broadcast %30 : vector<2x1xf32> to vector<2x128xf32>
      %39 = arith.addf %38, %37 : vector<2x128xf32>
      %40 = arith.index_cast %arg7 : i32 to index
      %c0_20 = arith.constant 0 : index
      %c0_21 = arith.constant 0 : index
      %41 = vector.load %arg0[%40, %c0_20, %c0_21] : memref<8x2x128xf32, #tpu.memory_space<vmem>>, vector<1x2x128xf32>
      %42 = vector.shape_cast %41 : vector<1x2x128xf32> to vector<2x128xf32>
      %43 = arith.addf %39, %42 : vector<2x128xf32>
      %44 = arith.index_cast %arg7 : i32 to index
      %c0_22 = arith.constant 0 : index
      %c0_23 = arith.constant 0 : index
      %45 = vector.load %arg1[%44, %c0_22, %c0_23] : memref<8x2x1xf32, #tpu.memory_space<vmem>>, vector<1x2x1xf32>
      %46 = vector.shape_cast %45 : vector<1x2x1xf32> to vector<2x1xf32>
      %cst_24 = arith.constant 0.000000e+00 : f32
      %47 = vector.broadcast %cst_24 : f32 to vector<2x1xf32>
      %48 = arith.cmpf ogt, %46, %47 : vector<2x1xf32>
      %49 = vector.shape_cast %48 : vector<2x1xi1> to vector<2x1xi1>
      %50 = vector.broadcast %49 : vector<2x1xi1> to vector<2x128xi1>
      %51 = arith.select %50, %43, %arg8 : vector<2x128xi1>, vector<2x128xf32>
      scf.yield %51 : vector<2x128xf32>
    }
    %c7_i32_7 = arith.constant 7 : i32
    %c0_8 = arith.constant 0 : index
    %c0_9 = arith.constant 0 : index
    %8 = vector.load %arg5[%c0_8, %c0_9] : memref<1x128xf32, #tpu.memory_space<vmem>>, vector<1x128xf32>
    %9 = vector.broadcast %8 : vector<1x128xf32> to vector<2x128xf32>
    %10 = arith.addf %7, %9 : vector<2x128xf32>
    %cst = arith.constant dense<0xFF800000> : vector<2xf32>
    %11 = vector.multi_reduction <maximumf>, %10, %cst [1] : vector<2x128xf32> to vector<2xf32>
    %12 = vector.shape_cast %11 : vector<2xf32> to vector<2x1xf32>
    %13 = vector.broadcast %12 : vector<2x1xf32> to vector<2x128xf32>
    %14 = arith.subf %10, %13 : vector<2x128xf32>
    %15 = math.exp %14 : vector<2x128xf32>
    %cst_10 = arith.constant dense<0.000000e+00> : vector<2xf32>
    %16 = vector.multi_reduction <add>, %15, %cst_10 [1] : vector<2x128xf32> to vector<2xf32>
    %17 = vector.shape_cast %16 : vector<2xf32> to vector<2x1xf32>
    %18 = math.log %17 : vector<2x1xf32>
    %19 = arith.addf %12, %18 : vector<2x1xf32>
    %c0_11 = arith.constant 0 : index
    %c0_12 = arith.constant 0 : index
    %20 = vector.load %arg2[%c0_11, %c0_12] : memref<2x1xf32, #tpu.memory_space<vmem>>, vector<2x1xf32>
    %21 = arith.subf %19, %20 : vector<2x1xf32>
    %22 = vector.shape_cast %21 : vector<2x1xf32> to vector<1x2x1xf32>
    %cst_13 = arith.constant dense<0.000000e+00> : vector<1xf32>
    %23 = vector.multi_reduction <add>, %22, %cst_13 [1, 2] : vector<1x2x1xf32> to vector<1xf32>
    %24 = vector.shape_cast %23 : vector<1xf32> to vector<1x1x1xf32>
    %25 = vector.extract %24[0, 0, 0] : f32 from vector<1x1x1xf32>
    %cst_14 = arith.constant 2.000000e+00 : f32
    %26 = arith.divf %25, %cst_14 : f32
    %27 = vector.broadcast %26 : f32 to vector<1x1xf32>
    %c0_15 = arith.constant 0 : index
    %c0_16 = arith.constant 0 : index
    %28 = vector.load %arg6[%c0_15, %c0_16] : memref<1x1xf32, #tpu.memory_space<vmem>>, vector<1x1xf32>
    tpu.vector_store %arg6[%c0_15, %c0_16], %27 {strides = array<i32>} : memref<1x1xf32, #tpu.memory_space<vmem>>, vector<1x1xf32>,
    return
  }
}

module attributes {stable_mosaic.version = 11 : i64} {
  func.func @_focal_loss_kernel(%arg0: memref<16x128xf32, #tpu.memory_space<vmem>>, %arg1: memref<16x1xi32, #tpu.memory_space<vmem>>, %arg2: memref<16x1xf32, #tpu.memory_space<vmem>>, %arg3: memref<1x1xf32, #tpu.memory_space<vmem>>) attributes {dimension_semantics = [], scalar_prefetch = 0 : i64, scratch_operands = 0 : i64, tpu.core_type = #tpu.core_type<tc>} {
    %c0 = arith.constant 0 : index
    %c0_0 = arith.constant 0 : index
    %0 = vector.load %arg0[%c0, %c0_0] : memref<16x128xf32, #tpu.memory_space<vmem>>, vector<16x128xf32>
    %c0_1 = arith.constant 0 : index
    %c0_2 = arith.constant 0 : index
    %1 = vector.load %arg1[%c0_1, %c0_2] : memref<16x1xi32, #tpu.memory_space<vmem>>, vector<16x1xi32>
    %c0_3 = arith.constant 0 : index
    %c0_4 = arith.constant 0 : index
    %2 = vector.load %arg2[%c0_3, %c0_4] : memref<16x1xf32, #tpu.memory_space<vmem>>, vector<16x1xf32>
    %cst = arith.constant dense<0xFF800000> : vector<16xf32>
    %3 = vector.multi_reduction <maximumf>, %0, %cst [1] : vector<16x128xf32> to vector<16xf32>
    %4 = vector.shape_cast %3 : vector<16xf32> to vector<16x1xf32>
    %5 = vector.broadcast %4 : vector<16x1xf32> to vector<16x128xf32>
    %6 = arith.subf %0, %5 : vector<16x128xf32>
    %7 = math.exp %6 : vector<16x128xf32>
    %cst_5 = arith.constant dense<0.000000e+00> : vector<16xf32>
    %8 = vector.multi_reduction <add>, %7, %cst_5 [1] : vector<16x128xf32> to vector<16xf32>
    %9 = vector.shape_cast %8 : vector<16xf32> to vector<16x1xf32>
    %10 = math.log %9 : vector<16x1xf32>
    %11 = arith.addf %4, %10 : vector<16x1xf32>
    %12 = tpu.iota {dimensions = array<i32: 1>} : vector<16x128xi32>
    %13 = vector.broadcast %1 : vector<16x1xi32> to vector<16x128xi32>
    %14 = arith.cmpi eq, %12, %13 : vector<16x128xi32>
    %cst_6 = arith.constant 0.000000e+00 : f32
    %15 = vector.broadcast %cst_6 : f32 to vector<16x128xf32>
    %16 = arith.select %14, %0, %15 : vector<16x128xi1>, vector<16x128xf32>
    %cst_7 = arith.constant dense<0.000000e+00> : vector<16xf32>
    %17 = vector.multi_reduction <add>, %16, %cst_7 [1] : vector<16x128xf32> to vector<16xf32>
    %18 = vector.shape_cast %17 : vector<16xf32> to vector<16x1xf32>
    %19 = arith.subf %11, %18 : vector<16x1xf32>
    %cst_8 = arith.constant 0.000000e+00 : f32
    %20 = vector.broadcast %cst_8 : f32 to vector<16x1xf32>
    %21 = arith.subf %20, %19 : vector<16x1xf32>
    %22 = math.exp %21 : vector<16x1xf32>
    %cst_9 = arith.constant 1.000000e+00 : f32
    %23 = vector.broadcast %cst_9 : f32 to vector<16x1xf32>
    %24 = arith.subf %23, %22 : vector<16x1xf32>
    %25 = arith.mulf %24, %24 : vector<16x1xf32>
    %26 = arith.mulf %25, %19 : vector<16x1xf32>
    %27 = arith.mulf %26, %2 : vector<16x1xf32>
    %28 = vector.shape_cast %27 : vector<16x1xf32> to vector<1x16x1xf32>
    %cst_10 = arith.constant dense<0.000000e+00> : vector<1xf32>
    %29 = vector.multi_reduction <add>, %28, %cst_10 [1, 2] : vector<1x16x1xf32> to vector<1xf32>
    %30 = vector.shape_cast %29 : vector<1xf32> to vector<1x1x1xf32>
    %31 = vector.extract %30[0, 0, 0] : f32 from vector<1x1x1xf32>
    %32 = vector.shape_cast %2 : vector<16x1xf32> to vector<1x16x1xf32>
    %cst_11 = arith.constant dense<0.000000e+00> : vector<1xf32>
    %33 = vector.multi_reduction <add>, %32, %cst_11 [1, 2] : vector<1x16x1xf32> to vector<1xf32>
    %34 = vector.shape_cast %33 : vector<1xf32> to vector<1x1x1xf32>
    %35 = vector.extract %34[0, 0, 0] : f32 from vector<1x1x1xf32>
    %36 = arith.divf %31, %35 : f32
    %37 = vector.broadcast %36 : f32 to vector<1x1xf32>
    %c0_12 = arith.constant 0 : index
    %c0_13 = arith.constant 0 : index
    %38 = vector.load %arg3[%c0_12, %c0_13] : memref<1x1xf32, #tpu.memory_space<vmem>>, vector<1x1xf32>
    tpu.vector_store %arg3[%c0_12, %c0_13], %37 {strides = array<i32>} : memref<1x1xf32, #tpu.memory_space<vmem>>, vector<1x1xf32>,
    return
  }
}

</mosaic_0001>

<llo_original>
// kernel: forward.16
$region0: #{forward.16}
  #allocation0 [shape = 'u32[]', space=smem, size = 0x4, offset = 0x4, fixed_abs, tag = 'smem constant byte address 0x4 - core index']
  #allocation1 [shape = 'u32[144,128]{1,0:T(1,128)}', space=vmem, size = 0x12000, scoped, tag = 'internal scratch']
  %s0 = inlined_call_operand.vmem [shape: f32[16,32], index: 0, kind: input, shape index: {}]
  %s1 = inlined_call_operand.vmem [shape: f32[1,32], index: 1, kind: input, shape index: {}]
  %s2 = inlined_call_operand.vmem [shape: f32[1,32], index: 2, kind: input, shape index: {}]
  %s3 = inlined_call_operand.vmem [shape: f32[16,32], index: 3, kind: output, shape index: {}]
  %s4 = sld [smem:[#allocation0]]
  $region22: #{forward.16} parent=0
    _
  %s6 = ssub.s32 1, %s4
  %s7 = scalar_select 0, %s6, %s4
  // Predicated region
  $region2: #{forward.16} parent=0 // pred_check
    _
  $region3: #{forward.16} parent=0 // pred_check_branch
    %9 = sbr.rel (0) target = $region5
  $region4: #{forward.16} parent=0 // pred_region
    _
  $region5: #{forward.16} parent=0 // pred_fallthru
    _
  // Predicated region
  $region6: #{forward.16} parent=0 // pred_check
    _
  $region7: #{forward.16} parent=0 // pred_check_branch
    %11 = sbr.rel (0) target = $region9
  $region8: #{forward.16} parent=0 // pred_region
    _
  $region9: #{forward.16} parent=0 // pred_fallthru
    _
  // Predicated region
  $region10: #{forward.16} parent=0 // pred_check
    _
  $region11: #{forward.16} parent=0 // pred_check_branch
    %13 = sbr.rel (0) target = $region13
  $region12: #{forward.16} parent=0 // pred_region
    _
  $region13: #{forward.16} parent=0 // pred_fallthru
    _
  %v14 = vld [vmem:[%s0] sm:$0xff]
  %v15 = vld [vmem:[%s0 + $0x8] sm:$0xff]
  %vm16 = vcmask 261120
  %v17 = vsel %vm16, %v14, 0.0
  %18 = vadd.xlane.f32.xlu0 %v17
  %v19 = vpop.xlane.xlu0 %18
  %v20 = vsel %vm16, %v15, 0.0
  %21 = vadd.xlane.f32.xlu0 %v20
  %v22 = vpop.xlane.xlu0 %21
  %v23 = vrcp.pop 32.0
  %v24 = vmul.f32 %v19, %v23
  %v25 = vmul.f32 %v22, %v23
  %v26 = vsub.f32 %v14, %v24
  %v27 = vsub.f32 %v15, %v25
  %v28 = vmul.f32 %v26, %v26
  %v29 = vmul.f32 %v27, %v27
  %v30 = vsel %vm16, %v28, 0.0
  %31 = vadd.xlane.f32.xlu0 %v30
  %v32 = vpop.xlane.xlu0 %31
  %v33 = vsel %vm16, %v29, 0.0
  %34 = vadd.xlane.f32.xlu0 %v33
  %v35 = vpop.xlane.xlu0 %34
  %v36 = vmul.f32 %v32, %v23
  %v37 = vmul.f32 %v35, %v23
  %v38 = vadd.f32 %v36, 1e-12
  %v39 = vadd.f32 %v37, 1e-12
  %v40 = vrsqrt.pop %v38
  %v41 = vrsqrt.pop %v39
  %v42 = vmul.f32 %v26, %v40
  %v43 = vmul.f32 %v27, %v41
  %v44 = vld [vmem:[%s1] sm:$0x1]
  %v46 = vlaneseq
  %v47 = vshrl.u32 %v46, 7
  %v48 = vsub.s32 0, %v47
  %v49 = vrot.slane %v44, %v48
  %v51 = vmul.f32 %v42, %v49
  %v52 = vmul.f32 %v43, %v49
  %v53 = vld [vmem:[%s2] sm:$0x1]
  %v55 = vlaneseq
  %v56 = vshrl.u32 %v55, 7
  %v57 = vsub.s32 0, %v56
  %v58 = vrot.slane %v53, %v57
  %v60 = vadd.f32 %v51, %v58
  %v61 = vadd.f32 %v52, %v58
  %62 = vst.msk [vmem:[%s3] sm:$0xff] %vm16, %v60
  %63 = vst.msk [vmem:[%s3 + $0x8] sm:$0xff] %vm16, %v61
  // Predicated region
  $region14: #{forward.16} parent=0 // pred_check
    _
  $region15: #{forward.16} parent=0 // pred_check_branch
    %65 = sbr.rel (0) target = $region17
  $region16: #{forward.16} parent=0 // pred_region
    _
  $region17: #{forward.16} parent=0 // pred_fallthru
    _
  // Predicated region
  $region18: #{forward.16} parent=0 // pred_check
    _
  $region19: #{forward.16} parent=0 // pred_check_branch
    %67 = sbr.rel (0) target = $region21
  $region20: #{forward.16} parent=0 // pred_region
    _
  $region21: #{forward.16} parent=0 // pred_fallthru
    _

// kernel: forward.19
$region0: #{forward.19}
  #allocation0 [shape = 'u32[]', space=smem, size = 0x4, offset = 0x4, fixed_abs, tag = 'smem constant byte address 0x4 - core index']
  #allocation1 [shape = 'u32[144,128]{1,0:T(1,128)}', space=vmem, size = 0x12000, scoped, tag = 'internal scratch']
  #allocation2 [shape = 'f32[16,32]{1,0:T(8,128)}', space=vmem, size = 0x2000, scoped, tag = 'scratch operand']
  %s0 = inlined_call_operand.vmem [shape: bf16[16,32], index: 0, kind: input, shape index: {}]
  %s1 = inlined_call_operand.vmem [shape: bf16[32,32], index: 1, kind: input, shape index: {}]
  %s2 = inlined_call_operand.vmem [shape: f32[1,32], index: 2, kind: input, shape index: {}]
  %s3 = inlined_call_operand.vmem [shape: f32[16,32], index: 3, kind: input, shape index: {}]
  %s4 = inlined_call_operand.vmem [shape: f32[1,32], index: 4, kind: input, shape index: {}]
  %s5 = inlined_call_operand.vmem [shape: f32[1,32], index: 5, kind: input, shape index: {}]
  %s6 = inlined_call_operand.vmem [shape: f32[16,32], index: 6, kind: output, shape index: {}]
  %s7 = sld [smem:[#allocation0]]
  $region42: #{forward.19} parent=0
    _
  %s9 = ssub.s32 1, %s7
  %s10 = scalar_select 0, %s9, %s7
  // Predicated region
  $region2: #{forward.19} parent=0 // pred_check
    _
  $region3: #{forward.19} parent=0 // pred_check_branch
    %12 = sbr.rel (0) target = $region5
  $region4: #{forward.19} parent=0 // pred_region
    _
  $region5: #{forward.19} parent=0 // pred_fallthru
    _
  // Predicated region
  $region6: #{forward.19} parent=0 // pred_check
    _
  $region7: #{forward.19} parent=0 // pred_check_branch
    %14 = sbr.rel (0) target = $region9
  $region8: #{forward.19} parent=0 // pred_region
    _
  $region9: #{forward.19} parent=0 // pred_fallthru
    _
  // Predicated region
  $region10: #{forward.19} parent=0 // pred_check
    _
  $region11: #{forward.19} parent=0 // pred_check_branch
    %16 = sbr.rel (0) target = $region13
  $region12: #{forward.19} parent=0 // pred_region
    _
  $region13: #{forward.19} parent=0 // pred_fallthru
    _
  // Predicated region
  $region14: #{forward.19} parent=0 // pred_check
    _
  $region15: #{forward.19} parent=0 // pred_check_branch
    %18 = sbr.rel (0) target = $region17
  $region16: #{forward.19} parent=0 // pred_region
    _
  $region17: #{forward.19} parent=0 // pred_fallthru
    _
  // Predicated region
  $region18: #{forward.19} parent=0 // pred_check
    _
  $region19: #{forward.19} parent=0 // pred_check_branch
    %20 = sbr.rel (0) target = $region21
  $region20: #{forward.19} parent=0 // pred_region
    _
  $region21: #{forward.19} parent=0 // pred_fallthru
    _
  // Predicated region
  $region22: #{forward.19} parent=0 // pred_check
    _
  $region23: #{forward.19} parent=0 // pred_check_branch
    %22 = sbr.rel (0) target = $region25
  $region24: #{forward.19} parent=0 // pred_region
    _
  $region25: #{forward.19} parent=0 // pred_fallthru
    _
  %p24 = scmp.eq.s32.totalorder 0, 0
  // Predicated region
  $region26: #{forward.19} parent=0 // pred_check
    %p25 = pneg %p24
  $region27: #{forward.19} parent=0 // pred_check_branch
    %27 = sbr.rel (%p25) target = $region29
  $region28: #{forward.19} parent=0 // pred_region
    %vm28 = vcmask 261120
    %29 = vst.msk [vmem:[#allocation2] sm:$0xff] %vm28, 0.0
    %30 = vst.msk [vmem:[#allocation2 + $0x8] sm:$0xff] %vm28, 0.0
  $region29: #{forward.19} parent=0 // pred_fallthru
    _
  %v31 = vld [vmem:[#allocation2] sm:$0xff]
  %v32 = vld [vmem:[#allocation2 + $0x8] sm:$0xff]
  %v33 = vld [vmem:[%s0] sm:$0xf]
  %v34 = vld [vmem:[%s0 + $0x4] sm:$0xf]
  %v35 = vld [vmem:[%s1] sm:$0xf]
  %v36 = vld [vmem:[%s1 + $0x4] sm:$0xf]
  %v37 = vld [vmem:[%s1 + $0x8] sm:$0xf]
  %v38 = vld [vmem:[%s1 + $0xc] sm:$0xf]
  %v41 = vunpack.c.l.b16 %v33
  %v42 = vunpack.c.l.b16 %v34
  %v43 = vpack.c.b16 %v42, %v41
  %v48 = vunpack.c.l.b16 %v35
  %v49 = vunpack.c.l.b16 %v36
  %v50 = vunpack.c.l.b16 %v37
  %v51 = vunpack.c.l.b16 %v38
  %v52 = vpack.c.b16 %v49, %v48
  %v53 = vpack.c.b16 %v51, %v50
  %vm56 = vcmask 261120
  %v58 = vsel %vm56, %v43, 0
  %60 = vmatprep.subr.bf16.mxu0 0
  %61 = vmatpush1.bf16.msra.mxu0 %v52
  %62 = vmatprep.subr.bf16.mxu0 0
  %63 = vmatpush1.bf16.msra.mxu0 %v53
  %64 = vmatprep.subr.bf16.mxu0 0
  %65 = vmatpush1.bf16.msra.mxu0 0
  %66 = vmatprep.subr.bf16.mxu0 0
  %67 = vmatpush1.bf16.msra.mxu0 0
  %68 = vmatprep.subr.bf16.mxu0 0
  %69 = vmatpush1.bf16.msra.mxu0 0
  %70 = vmatprep.subr.bf16.mxu0 0
  %71 = vmatpush1.bf16.msra.mxu0 0
  %72 = vmatprep.subr.bf16.mxu0 0
  %73 = vmatpush1.bf16.msra.mxu0 0
  %74 = vmatprep.subr.bf16.mxu0 0
  %75 = vmatpush1.bf16.msra.mxu0 0
  %76 = vmatprep.subr.bf16.mxu0 0
  %77 = vmatpush1.bf16.msra.mxu0 0
  %78 = vmatprep.subr.bf16.mxu0 0
  %79 = vmatpush1.bf16.msra.mxu0 0
  %80 = vmatprep.subr.bf16.mxu0 0
  %81 = vmatpush1.bf16.msra.mxu0 0
  %82 = vmatprep.subr.bf16.mxu0 0
  %83 = vmatpush1.bf16.msra.mxu0 0
  %84 = vmatprep.subr.bf16.mxu0 0
  %85 = vmatpush1.bf16.msra.mxu0 0
  %86 = vmatprep.subr.bf16.mxu0 0
  %87 = vmatpush1.bf16.msra.mxu0 0
  %88 = vmatprep.subr.bf16.mxu0 0
  %89 = vmatpush1.bf16.msra.mxu0 0
  %90 = vmatprep.subr.bf16.mxu0 0
  %91 = vmatpush1.bf16.msra.mxu0 0
  %92 = vmatprep.mubr.bf16.mxu0 0
  %93 = vmatmul.mubr.bf16.gmra.mrb[0].mxu0 %v58
  %v94 = vpop.f32.mrb[0].mxu0
  %v95 = vadd.f32 0.0, %v94
  %v96 = vpop.f32.mrb[0].mxu0
  %v97 = vpop.f32.mrb[0].mxu0
  %v98 = vadd.f32 0.0, %v97
  %v99 = vpop.f32.mrb[0].mxu0
  %100 = vdwg.mxu0
  %v101 = vadd.f32 %v31, %v95
  %v102 = vadd.f32 %v32, %v98
  %103 = vst.msk [vmem:[#allocation2] sm:$0xff] %vm56, %v101
  %104 = vst.msk [vmem:[#allocation2 + $0x8] sm:$0xff] %vm56, %v102
  // Predicated region
  $region30: #{forward.19} parent=0 // pred_check
    %p105 = pneg %p24
  $region31: #{forward.19} parent=0 // pred_check_branch
    %107 = sbr.rel (%p105) target = $region33
  $region32: #{forward.19} parent=0 // pred_region
    %v108 = vld [vmem:[#allocation2] sm:$0xff]
    %v109 = vld [vmem:[#allocation2 + $0x8] sm:$0xff]
    %v110 = vld [vmem:[%s2] sm:$0x1]
    %v112 = vlaneseq
    %v113 = vshrl.u32 %v112, 7
    %v114 = vsub.s32 0, %v113
    %v115 = vrot.slane %v110, %v114
    %v117 = vadd.f32 %v108, %v115
    %v118 = vadd.f32 %v109, %v115
    %v119 = vld [vmem:[%s3] sm:$0xff]
    %v120 = vld [vmem:[%s3 + $0x8] sm:$0xff]
    %v121 = vadd.f32 %v117, %v119
    %v122 = vadd.f32 %v118, %v120
    %v123 = vsel %vm56, %v121, 0.0
    %124 = vadd.xlane.f32.xlu0 %v123
    %v125 = vpop.xlane.xlu0 %124
    %v126 = vsel %vm56, %v122, 0.0
    %127 = vadd.xlane.f32.xlu0 %v126
    %v128 = vpop.xlane.xlu0 %127
    %v129 = vrcp.pop 32.0
    %v130 = vmul.f32 %v125, %v129
    %v131 = vmul.f32 %v128, %v129
    %v132 = vsub.f32 %v121, %v130
    %v133 = vsub.f32 %v122, %v131
    %v134 = vmul.f32 %v132, %v132
    %v135 = vmul.f32 %v133, %v133
    %v136 = vsel %vm56, %v134, 0.0
    %137 = vadd.xlane.f32.xlu0 %v136
    %v138 = vpop.xlane.xlu0 %137
    %v139 = vsel %vm56, %v135, 0.0
    %140 = vadd.xlane.f32.xlu0 %v139
    %v141 = vpop.xlane.xlu0 %140
    %v142 = vmul.f32 %v138, %v129
    %v143 = vmul.f32 %v141, %v129
    %v144 = vadd.f32 %v142, 1e-12
    %v145 = vadd.f32 %v143, 1e-12
    %v146 = vrsqrt.pop %v144
    %v147 = vrsqrt.pop %v145
    %v148 = vmul.f32 %v132, %v146
    %v149 = vmul.f32 %v133, %v147
    %v150 = vld [vmem:[%s4] sm:$0x1]
    %v152 = vlaneseq
    %v153 = vshrl.u32 %v152, 7
    %v154 = vsub.s32 0, %v153
    %v155 = vrot.slane %v150, %v154
    %v157 = vmul.f32 %v148, %v155
    %v158 = vmul.f32 %v149, %v155
    %v159 = vld [vmem:[%s5] sm:$0x1]
    %v161 = vlaneseq
    %v162 = vshrl.u32 %v161, 7
    %v163 = vsub.s32 0, %v162
    %v164 = vrot.slane %v159, %v163
    %v166 = vadd.f32 %v157, %v164
    %v167 = vadd.f32 %v158, %v164
    %168 = vst.msk [vmem:[%s6] sm:$0xff] %vm56, %v166
    %169 = vst.msk [vmem:[%s6 + $0x8] sm:$0xff] %vm56, %v167
  $region33: #{forward.19} parent=0 // pred_fallthru
    _
  // Predicated region
  $region34: #{forward.19} parent=0 // pred_check
    _
  $region35: #{forward.19} parent=0 // pred_check_branch
    %171 = sbr.rel (0) target = $region37
  $region36: #{forward.19} parent=0 // pred_region
    _
  $region37: #{forward.19} parent=0 // pred_fallthru
    _
  // Predicated region
  $region38: #{forward.19} parent=0 // pred_check
    _
  $region39: #{forward.19} parent=0 // pred_check_branch
    %173 = sbr.rel (0) target = $region41
  $region40: #{forward.19} parent=0 // pred_region
    _
  $region41: #{forward.19} parent=0 // pred_fallthru
    _

// kernel: forward.17
$region0: #{forward.17}
  #allocation0 [shape = 'u32[]', space=smem, size = 0x4, offset = 0x4, fixed_abs, tag = 'smem constant byte address 0x4 - core index']
  #allocation1 [shape = 'u32[144,128]{1,0:T(1,128)}', space=vmem, size = 0x12000, scoped, tag = 'internal scratch']
  #allocation2 [shape = 'f32[16,96]{1,0:T(8,128)}', space=vmem, size = 0x2000, scoped, tag = 'scratch operand']
  %s0 = inlined_call_operand.vmem [shape: bf16[16,32], index: 0, kind: input, shape index: {}]
  %s1 = inlined_call_operand.vmem [shape: bf16[32,96], index: 1, kind: input, shape index: {}]
  %s2 = inlined_call_operand.vmem [shape: f32[1,96], index: 2, kind: input, shape index: {}]
  %s3 = inlined_call_operand.vmem [shape: bf16[16,96], index: 3, kind: output, shape index: {}]
  %s4 = sld [smem:[#allocation0]]
  $region30: #{forward.17} parent=0
    _
  %s6 = ssub.s32 1, %s4
  %s7 = scalar_select 0, %s6, %s4
  // Predicated region
  $region2: #{forward.17} parent=0 // pred_check
    _
  $region3: #{forward.17} parent=0 // pred_check_branch
    %9 = sbr.rel (0) target = $region5
  $region4: #{forward.17} parent=0 // pred_region
    _
  $region5: #{forward.17} parent=0 // pred_fallthru
    _
  // Predicated region
  $region6: #{forward.17} parent=0 // pred_check
    _
  $region7: #{forward.17} parent=0 // pred_check_branch
    %11 = sbr.rel (0) target = $region9
  $region8: #{forward.17} parent=0 // pred_region
    _
  $region9: #{forward.17} parent=0 // pred_fallthru
    _
  // Predicated region
  $region10: #{forward.17} parent=0 // pred_check
    _
  $region11: #{forward.17} parent=0 // pred_check_branch
    %13 = sbr.rel (0) target = $region13
  $region12: #{forward.17} parent=0 // pred_region
    _
  $region13: #{forward.17} parent=0 // pred_fallthru
    _
  %p15 = scmp.eq.s32.totalorder 0, 0
  // Predicated region
  $region14: #{forward.17} parent=0 // pred_check
    %p16 = pneg %p15
  $region15: #{forward.17} parent=0 // pred_check_branch
    %18 = sbr.rel (%p16) target = $region17
  $region16: #{forward.17} parent=0 // pred_region
    %vm19 = vcmask 785408
    %20 = vst.msk [vmem:[#allocation2] sm:$0xff] %vm19, 0.0
    %21 = vst.msk [vmem:[#allocation2 + $0x8] sm:$0xff] %vm19, 0.0
  $region17: #{forward.17} parent=0 // pred_fallthru
    _
  %v22 = vld [vmem:[#allocation2] sm:$0xff]
  %v23 = vld [vmem:[#allocation2 + $0x8] sm:$0xff]
  %v24 = vld [vmem:[%s0] sm:$0xf]
  %v25 = vld [vmem:[%s0 + $0x4] sm:$0xf]
  %v26 = vld [vmem:[%s1] sm:$0xf]
  %v27 = vld [vmem:[%s1 + $0x4] sm:$0xf]
  %v28 = vld [vmem:[%s1 + $0x8] sm:$0xf]
  %v29 = vld [vmem:[%s1 + $0xc] sm:$0xf]
  %v32 = vunpack.c.l.b16 %v24
  %v33 = vunpack.c.l.b16 %v25
  %v34 = vpack.c.b16 %v33, %v32
  %v39 = vunpack.c.l.b16 %v26
  %v40 = vunpack.c.l.b16 %v27
  %v41 = vunpack.c.l.b16 %v28
  %v42 = vunpack.c.l.b16 %v29
  %v43 = vpack.c.b16 %v40, %v39
  %v44 = vpack.c.b16 %v42, %v41
  %vm47 = vcmask 261120
  %v49 = vsel %vm47, %v34, 0
  %51 = vmatprep.subr.bf16.mxu0 0
  %52 = vmatpush1.bf16.msra.mxu0 %v43
  %53 = vmatprep.subr.bf16.mxu0 0
  %54 = vmatpush1.bf16.msra.mxu0 %v44
  %55 = vmatprep.subr.bf16.mxu0 0
  %56 = vmatpush1.bf16.msra.mxu0 0
  %57 = vmatprep.subr.bf16.mxu0 0
  %58 = vmatpush1.bf16.msra.mxu0 0
  %59 = vmatprep.subr.bf16.mxu0 0
  %60 = vmatpush1.bf16.msra.mxu0 0
  %61 = vmatprep.subr.bf16.mxu0 0
  %62 = vmatpush1.bf16.msra.mxu0 0
  %63 = vmatprep.subr.bf16.mxu0 0
  %64 = vmatpush1.bf16.msra.mxu0 0
  %65 = vmatprep.subr.bf16.mxu0 0
  %66 = vmatpush1.bf16.msra.mxu0 0
  %67 = vmatprep.subr.bf16.mxu0 0
  %68 = vmatpush1.bf16.msra.mxu0 0
  %69 = vmatprep.subr.bf16.mxu0 0
  %70 = vmatpush1.bf16.msra.mxu0 0
  %71 = vmatprep.subr.bf16.mxu0 0
  %72 = vmatpush1.bf16.msra.mxu0 0
  %73 = vmatprep.subr.bf16.mxu0 0
  %74 = vmatpush1.bf16.msra.mxu0 0
  %75 = vmatprep.subr.bf16.mxu0 0
  %76 = vmatpush1.bf16.msra.mxu0 0
  %77 = vmatprep.subr.bf16.mxu0 0
  %78 = vmatpush1.bf16.msra.mxu0 0
  %79 = vmatprep.subr.bf16.mxu0 0
  %80 = vmatpush1.bf16.msra.mxu0 0
  %81 = vmatprep.subr.bf16.mxu0 0
  %82 = vmatpush1.bf16.msra.mxu0 0
  %83 = vmatprep.mubr.bf16.mxu0 0
  %84 = vmatmul.mubr.bf16.gmra.mrb[0].mxu0 %v49
  %v85 = vpop.f32.mrb[0].mxu0
  %v86 = vadd.f32 0.0, %v85
  %v87 = vpop.f32.mrb[0].mxu0
  %v88 = vpop.f32.mrb[0].mxu0
  %v89 = vadd.f32 0.0, %v88
  %v90 = vpop.f32.mrb[0].mxu0
  %91 = vdwg.mxu0
  %v92 = vadd.f32 %v22, %v86
  %v93 = vadd.f32 %v23, %v89
  %vm94 = vcmask 785408
  %95 = vst.msk [vmem:[#allocation2] sm:$0xff] %vm94, %v92
  %96 = vst.msk [vmem:[#allocation2 + $0x8] sm:$0xff] %vm94, %v93
  // Predicated region
  $region18: #{forward.17} parent=0 // pred_check
    %p97 = pneg %p15
  $region19: #{forward.17} parent=0 // pred_check_branch
    %99 = sbr.rel (%p97) target = $region21
  $region20: #{forward.17} parent=0 // pred_region
    %v100 = vld [vmem:[#allocation2] sm:$0xff]
    %v101 = vld [vmem:[#allocation2 + $0x8] sm:$0xff]
    %v102 = vld [vmem:[%s2] sm:$0x1]
    %v104 = vlaneseq
    %v105 = vshrl.u32 %v104, 7
    %v106 = vsub.s32 0, %v105
    %v107 = vrot.slane %v102, %v106
    %v109 = vadd.f32 %v100, %v107
    %v110 = vadd.f32 %v101, %v107
    %v111 = vpack.c.bf16 %v110, %v109
    %v113 = vunpack.c.l.b16 %v111
    %v114 = vunpack.c.h.b16 %v111
    %v115 = vpack.c.b16 %v113, %v113
    %v116 = vpack.c.b16 %v114, %v114
    %vm119 = vcmask 781312
    %120 = vst.msk [vmem:[%s3] sm:$0xf] %vm119, %v115
    %121 = vst.msk [vmem:[%s3 + $0x4] sm:$0xf] %vm119, %v116
  $region21: #{forward.17} parent=0 // pred_fallthru
    _
  // Predicated region
  $region22: #{forward.17} parent=0 // pred_check
    _
  $region23: #{forward.17} parent=0 // pred_check_branch
    %123 = sbr.rel (0) target = $region25
  $region24: #{forward.17} parent=0 // pred_region
    _
  $region25: #{forward.17} parent=0 // pred_fallthru
    _
  // Predicated region
  $region26: #{forward.17} parent=0 // pred_check
    _
  $region27: #{forward.17} parent=0 // pred_check_branch
    %125 = sbr.rel (0) target = $region29
  $region28: #{forward.17} parent=0 // pred_region
    _
  $region29: #{forward.17} parent=0 // pred_fallthru
    _

// kernel: forward.18
$region0: #{forward.18}
  #allocation0 [shape = 'u32[]', space=smem, size = 0x4, offset = 0x4, fixed_abs, tag = 'smem constant byte address 0x4 - core index']
  #allocation1 [shape = 'u32[144,128]{1,0:T(1,128)}', space=vmem, size = 0x12000, scoped, tag = 'internal scratch']
  %s0 = inlined_call_operand.vmem [shape: bf16[2,8,96], index: 0, kind: input, shape index: {}]
  %s1 = inlined_call_operand.vmem [shape: f32[2,1,8], index: 1, kind: input, shape index: {}]
  %s2 = inlined_call_operand.vmem [shape: bf16[2,8,32], index: 2, kind: output, shape index: {}]
  %s3 = sld [smem:[#allocation0]]
  $region41: #{forward.18} parent=0
    _
  %s5 = ssub.s32 1, %s3
  %s6 = scalar_select 0, %s5, %s3
  loop: start=0, step=1, limit=4
  $region2: #{forward.18} parent=0 // loop_pre_header
    _
  $region3: #{forward.18} parent=0 // loop_header
    %s8 = sphi 0, %s12
    %p9 = scmp.ge.s32.totalorder %s8, 4
    %s18 = sphi 0, %s20
    %s21 = sphi 0, %s18
    %s22 = sphi 0, %s21
    %s38 = sphi 0, %s22
    %s44 = sphi 0, %s46
    %s47 = sphi 0, %s44
    %s48 = sphi 0, %s47
    %s64 = sphi 0, %s48
    %s70 = sphi 0, %s72
    %s73 = sphi 0, %s70
    %s74 = sphi 0, %s73
    %s90 = sphi 0, %s74
  $region4: #{forward.18} parent=0 // loop_header_branch
    %11 = sbr.rel (%p9) target = $region8
  $region5: #{forward.18} parent=0 // loop_body
    %s13 = ssub.s32 %s8, 1
    %s14 = ssub.s32 %s8, 2
    %s15 = sadd.s32 %s8, 1
    %s16 = ssub.s32 %s8, %s15
    %p17 = scmp.eq.s32.totalorder %s16, 0
    %s19 = sadd.s32 %s18, 1
    %s20 = scalar_select %p17, %s18, %s19
    %p23 = pneg %p17
    %p24 = scmp.eq.s32.totalorder %s8, 1
    %p25 = por %p23, %p24
    %p26 = scmp.ne.s32.totalorder %s18, %s21
    %p27 = scmp.eq.s32.totalorder %s8, 0
    %p28 = por %p26, %p27
    %p29 = scmp.ne.s32.totalorder %s18, %s21
    %p30 = scmp.eq.s32.totalorder %s13, 1
    %p31 = por %p29, %p30
    %p32 = scmp.ne.s32.totalorder %s21, %s22
    %p33 = scmp.eq.s32.totalorder %s13, 0
    %p34 = por %p32, %p33
    %p35 = scmp.ne.s32.totalorder %s21, %s22
    %p36 = scmp.eq.s32.totalorder %s14, 1
    %p37 = por %p35, %p36
    %p39 = scmp.ne.s32.totalorder %s22, %s38
    %p40 = scmp.eq.s32.totalorder %s14, 0
    %p41 = por %p39, %p40
    %s42 = ssub.s32 %s8, %s15
    %p43 = scmp.eq.s32.totalorder %s42, 0
    %s45 = sadd.s32 %s44, 1
    %s46 = scalar_select %p43, %s44, %s45
    %p49 = pneg %p43
    %p50 = scmp.eq.s32.totalorder %s8, 1
    %p51 = por %p49, %p50
    %p52 = scmp.ne.s32.totalorder %s44, %s47
    %p53 = scmp.eq.s32.totalorder %s8, 0
    %p54 = por %p52, %p53
    %p55 = scmp.ne.s32.totalorder %s44, %s47
    %p56 = scmp.eq.s32.totalorder %s13, 1
    %p57 = por %p55, %p56
    %p58 = scmp.ne.s32.totalorder %s47, %s48
    %p59 = scmp.eq.s32.totalorder %s13, 0
    %p60 = por %p58, %p59
    %p61 = scmp.ne.s32.totalorder %s47, %s48
    %p62 = scmp.eq.s32.totalorder %s14, 1
    %p63 = por %p61, %p62
    %p65 = scmp.ne.s32.totalorder %s48, %s64
    %p66 = scmp.eq.s32.totalorder %s14, 0
    %p67 = por %p65, %p66
    %s68 = ssub.s32 %s8, %s15
    %p69 = scmp.eq.s32.totalorder %s68, 0
    %s71 = sadd.s32 %s70, 1
    %s72 = scalar_select %p69, %s70, %s71
    %p75 = pneg %p69
    %p76 = scmp.eq.s32.totalorder %s8, 1
    %p77 = por %p75, %p76
    %p78 = scmp.ne.s32.totalorder %s70, %s73
    %p79 = scmp.eq.s32.totalorder %s8, 0
    %p80 = por %p78, %p79
    %p81 = scmp.ne.s32.totalorder %s70, %s73
    %p82 = scmp.eq.s32.totalorder %s13, 1
    %p83 = por %p81, %p82
    %p84 = scmp.ne.s32.totalorder %s73, %s74
    %p85 = scmp.eq.s32.totalorder %s13, 0
    %p86 = por %p84, %p85
    %p87 = scmp.ne.s32.totalorder %s73, %s74
    %p88 = scmp.eq.s32.totalorder %s14, 1
    %p89 = por %p87, %p88
    %p91 = scmp.ne.s32.totalorder %s74, %s90
    %p92 = scmp.eq.s32.totalorder %s14, 0
    %p93 = por %p91, %p92
    %p94 = scmp.le.s32.totalorder 1, %s8
    %p95 = scmp.lt.s32.totalorder %s8, 3
    %p96 = pnand %p94, %p95
    %p97 = pneg %p96
    // Predicated region
    $region9: #{forward.18} parent=5 // pred_check
      _
    $region10: #{forward.18} parent=5 // pred_check_branch
      %99 = sbr.rel (%p96) target = $region12
    $region11: #{forward.18} parent=5 // pred_region
      %s100 = ssub.s32 %s8, 1
    $region12: #{forward.18} parent=5 // pred_fallthru
      _
    %p101 = scmp.lt.s32.totalorder %s8, 2
    // Predicated region
    $region13: #{forward.18} parent=5 // pred_check
      %p102 = pneg %p101
    $region14: #{forward.18} parent=5 // pred_check_branch
      %104 = sbr.rel (%p102) target = $region16
    $region15: #{forward.18} parent=5 // pred_region
      // Predicated region
      $region17: #{forward.18} parent=15 // pred_check
        %p105 = pneg %p28
      $region18: #{forward.18} parent=15 // pred_check_branch
        %107 = sbr.rel (%p105) target = $region20
      $region19: #{forward.18} parent=15 // pred_region
        %p108 = scmp.lt.s32.totalorder %s8, 1
        %s109 = scalar_select %p108, %s8, 1
        %s110 = smul.addr %s109, 4
        %s111 = scalar_lea.vmem %s0, %s110
      $region20: #{forward.18} parent=15 // pred_fallthru
        _
      // Predicated region
      $region21: #{forward.18} parent=15 // pred_check
        %p112 = pneg %p54
      $region22: #{forward.18} parent=15 // pred_check_branch
        %114 = sbr.rel (%p112) target = $region24
      $region23: #{forward.18} parent=15 // pred_region
        %p115 = scmp.lt.s32.totalorder %s8, 1
        %s116 = scalar_select %p115, %s8, 1
        %s117 = scalar_lea.vmem %s1, %s116
      $region24: #{forward.18} parent=15 // pred_fallthru
        _
    $region16: #{forward.18} parent=5 // pred_fallthru
      _
    %p118 = scmp.le.s32.totalorder 1, %s8
    %p119 = scmp.lt.s32.totalorder %s8, 3
    %p120 = pnand %p118, %p119
    %p121 = pneg %p120
    // Predicated region
    $region25: #{forward.18} parent=5 // pred_check
      _
    $region26: #{forward.18} parent=5 // pred_check_branch
      %123 = sbr.rel (%p120) target = $region28
    $region27: #{forward.18} parent=5 // pred_region
      %s124 = ssub.s32 %s8, 1
      %p125 = scmp.lt.s32.totalorder %s13, 1
      %s126 = scalar_select %p125, %s13, 1
      %s127 = smul.addr %s126, 4
      %s128 = scalar_lea.vmem %s0, %s127
      %p129 = pneg %p34
      %p130 = pneg %p31
      %p131 = scmp.lt.s32.totalorder %s13, 1
      %s132 = scalar_select %p131, %s13, 1
      %s133 = scalar_lea.vmem %s1, %s132
      %p134 = pneg %p60
      %p135 = pneg %p57
      %p136 = pneg %p86
      %p137 = pneg %p83
      %p138 = scmp.lt.s32.totalorder %s13, 1
      %s139 = scalar_select %p138, %s13, 1
      %s140 = smul.addr %s139, 4
      %s141 = scalar_lea.vmem %s2, %s140
      %p142 = scmp.lt.s32.totalorder %s13, 1
      %s143 = scalar_select %p142, %s13, 1
      %s144 = smul.addr %s143, 4
      %s145 = scalar_lea.vmem %s0, %s144
      %p146 = scmp.lt.s32.totalorder %s13, 1
      %s147 = scalar_select %p146, %s13, 1
      %s148 = scalar_lea.vmem %s1, %s147
      %p149 = scmp.lt.s32.totalorder %s13, 1
      %s150 = scalar_select %p149, %s13, 1
      %s151 = smul.addr %s150, 4
      %s152 = scalar_lea.vmem %s2, %s151
      %v154 = vld [vmem:[%s145] sm:$0xf]
      %v155 = vld [vmem:[%s148] sm:$0x1]
      %v157 = vunpack.c.l.b16 %v154
      %v158 = vpack.c.b16 %v157, %v157
      %159 = vrot.lane.b32.xlu0 %v158, 96
      %v160 = vpop.permute.xlu0 %159
      %vm161 = vcmask 130048
      %v163 = vsel %vm161, %v154, 0
      %v166 = vsel %vm161, %v160, 0
      %168 = vmatprep.subr.bf16.mxu0 0
      %169 = vmatpush1.bf16.xpose.msra.mxu0 %v166
      %170 = vmatprep.subr.bf16.mxu0 0
      %171 = vmatpush1.bf16.xpose.msra.mxu0 0
      %172 = vmatprep.subr.bf16.mxu0 0
      %173 = vmatpush1.bf16.xpose.msra.mxu0 0
      %174 = vmatprep.subr.bf16.mxu0 0
      %175 = vmatpush1.bf16.xpose.msra.mxu0 0
      %176 = vmatprep.subr.bf16.mxu0 0
      %177 = vmatpush1.bf16.xpose.msra.mxu0 0
      %178 = vmatprep.subr.bf16.mxu0 0
      %179 = vmatpush1.bf16.xpose.msra.mxu0 0
      %180 = vmatprep.subr.bf16.mxu0 0
      %181 = vmatpush1.bf16.xpose.msra.mxu0 0
      %182 = vmatprep.subr.bf16.mxu0 0
      %183 = vmatpush1.bf16.xpose.msra.mxu0 0
      %184 = vmatprep.subr.bf16.mxu0 0
      %185 = vmatpush1.bf16.xpose.msra.mxu0 0
      %186 = vmatprep.subr.bf16.mxu0 0
      %187 = vmatpush1.bf16.xpose.msra.mxu0 0
      %188 = vmatprep.subr.bf16.mxu0 0
      %189 = vmatpush1.bf16.xpose.msra.mxu0 0
      %190 = vmatprep.subr.bf16.mxu0 0
      %191 = vmatpush1.bf16.xpose.msra.mxu0 0
      %192 = vmatprep.subr.bf16.mxu0 0
      %193 = vmatpush1.bf16.xpose.msra.mxu0 0
      %194 = vmatprep.subr.bf16.mxu0 0
      %195 = vmatpush1.bf16.xpose.msra.mxu0 0
      %196 = vmatprep.subr.bf16.mxu0 0
      %197 = vmatpush1.bf16.xpose.msra.mxu0 0
      %198 = vmatprep.subr.bf16.mxu0 0
      %199 = vmatpush1.bf16.xpose.msra.mxu0 0
      %200 = vmatprep.mubr.bf16.mxu0 0
      %201 = vmatmul.mubr.bf16.gmra.mrb[0].mxu0 %v163
      %v202 = vpop.f32.mrb[0].mxu0
      %v203 = vadd.f32 0.0, %v202
      %v204 = vpop.f32.mrb[0].mxu0
      %v205 = vpop.f32.mrb[0].mxu0
      %v206 = vpop.f32.mrb[0].mxu0
      %207 = vdwg.mxu0
      %v208 = vmul.f32 %v203, 0.25
      %v210 = vlaneseq
      %v211 = vshrl.u32 %v210, 7
      %v212 = vsub.s32 0, %v211
      %v213 = vrot.slane %v155, %v212
      %v215 = vadd.f32 %v208, %v213
      %vm216 = vcmask 64512
      %v217 = vsel %vm216, %v215, -inf
      %218 = vmax.xlane.f32.xlu0 %v217
      %v219 = vpop.xlane.xlu0 %218
      %v220 = vsub.f32 %v215, %v219
      %v221 = vmul.f32 %v220, 1.442695
      %v222 = vpow.pop %v221
      %v223 = vsel %vm216, %v222, 0.0
      %224 = vadd.xlane.f32.xlu0 %v223
      %v225 = vpop.xlane.xlu0 %224
      %v226 = vrcp.pop %v225
      %v227 = vmul.f32 %v222, %v226
      %v228 = vpack.c.bf16 %v227, %v227
      %229 = vrot.lane.b32.xlu0 %v158, 64
      %v230 = vpop.permute.xlu0 %229
      %v232 = vsel %vm216, %v228, 0
      %vm234 = vcmask 1043456
      %v236 = vsel %vm234, %v230, 0
      %238 = vmatprep.subr.bf16.mxu0 0
      %239 = vmatpush1.bf16.msra.mxu0 %v236
      %240 = vmatprep.subr.bf16.mxu0 0
      %241 = vmatpush1.bf16.msra.mxu0 0
      %242 = vmatprep.subr.bf16.mxu0 0
      %243 = vmatpush1.bf16.msra.mxu0 0
      %244 = vmatprep.subr.bf16.mxu0 0
      %245 = vmatpush1.bf16.msra.mxu0 0
      %246 = vmatprep.subr.bf16.mxu0 0
      %247 = vmatpush1.bf16.msra.mxu0 0
      %248 = vmatprep.subr.bf16.mxu0 0
      %249 = vmatpush1.bf16.msra.mxu0 0
      %250 = vmatprep.subr.bf16.mxu0 0
      %251 = vmatpush1.bf16.msra.mxu0 0
      %252 = vmatprep.subr.bf16.mxu0 0
      %253 = vmatpush1.bf16.msra.mxu0 0
      %254 = vmatprep.subr.bf16.mxu0 0
      %255 = vmatpush1.bf16.msra.mxu0 0
      %256 = vmatprep.subr.bf16.mxu0 0
      %257 = vmatpush1.bf16.msra.mxu0 0
      %258 = vmatprep.subr.bf16.mxu0 0
      %259 = vmatpush1.bf16.msra.mxu0 0
      %260 = vmatprep.subr.bf16.mxu0 0
      %261 = vmatpush1.bf16.msra.mxu0 0
      %262 = vmatprep.subr.bf16.mxu0 0
      %263 = vmatpush1.bf16.msra.mxu0 0
      %264 = vmatprep.subr.bf16.mxu0 0
      %265 = vmatpush1.bf16.msra.mxu0 0
      %266 = vmatprep.subr.bf16.mxu0 0
      %267 = vmatpush1.bf16.msra.mxu0 0
      %268 = vmatprep.subr.bf16.mxu0 0
      %269 = vmatpush1.bf16.msra.mxu0 0
      %270 = vmatprep.mubr.bf16.mxu0 0
      %271 = vmatmul.mubr.bf16.gmra.mrb[0].mxu0 %v232
      %v272 = vpop.f32.mrb[0].mxu0
      %v273 = vadd.f32 0.0, %v272
      %v274 = vpop.f32.mrb[0].mxu0
      %v275 = vpop.f32.mrb[0].mxu0
      %v276 = vpop.f32.mrb[0].mxu0
      %277 = vdwg.mxu0
      %278 = vrot.lane.b32.xlu0 %v158, 112
      %v279 = vpop.permute.xlu0 %278
      %280 = vrot.lane.b32.xlu0 %v158, 80
      %v281 = vpop.permute.xlu0 %280
      %v283 = vsel %vm161, %v279, 0
      %v286 = vsel %vm161, %v281, 0
      %288 = vmatprep.subr.bf16.mxu0 0
      %289 = vmatpush1.bf16.xpose.msra.mxu0 %v286
      %290 = vmatprep.subr.bf16.mxu0 0
      %291 = vmatpush1.bf16.xpose.msra.mxu0 0
      %292 = vmatprep.subr.bf16.mxu0 0
      %293 = vmatpush1.bf16.xpose.msra.mxu0 0
      %294 = vmatprep.subr.bf16.mxu0 0
      %295 = vmatpush1.bf16.xpose.msra.mxu0 0
      %296 = vmatprep.subr.bf16.mxu0 0
      %297 = vmatpush1.bf16.xpose.msra.mxu0 0
      %298 = vmatprep.subr.bf16.mxu0 0
      %299 = vmatpush1.bf16.xpose.msra.mxu0 0
      %300 = vmatprep.subr.bf16.mxu0 0
      %301 = vmatpush1.bf16.xpose.msra.mxu0 0
      %302 = vmatprep.subr.bf16.mxu0 0
      %303 = vmatpush1.bf16.xpose.msra.mxu0 0
      %304 = vmatprep.subr.bf16.mxu0 0
      %305 = vmatpush1.bf16.xpose.msra.mxu0 0
      %306 = vmatprep.subr.bf16.mxu0 0
      %307 = vmatpush1.bf16.xpose.msra.mxu0 0
      %308 = vmatprep.subr.bf16.mxu0 0
      %309 = vmatpush1.bf16.xpose.msra.mxu0 0
      %310 = vmatprep.subr.bf16.mxu0 0
      %311 = vmatpush1.bf16.xpose.msra.mxu0 0
      %312 = vmatprep.subr.bf16.mxu0 0
      %313 = vmatpush1.bf16.xpose.msra.mxu0 0
      %314 = vmatprep.subr.bf16.mxu0 0
      %315 = vmatpush1.bf16.xpose.msra.mxu0 0
      %316 = vmatprep.subr.bf16.mxu0 0
      %317 = vmatpush1.bf16.xpose.msra.mxu0 0
      %318 = vmatprep.subr.bf16.mxu0 0
      %319 = vmatpush1.bf16.xpose.msra.mxu0 0
      %320 = vmatprep.mubr.bf16.mxu0 0
      %321 = vmatmul.mubr.bf16.gmra.mrb[0].mxu0 %v283
      %v322 = vpop.f32.mrb[0].mxu0
      %v323 = vadd.f32 0.0, %v322
      %v324 = vpop.f32.mrb[0].mxu0
      %v325 = vpop.f32.mrb[0].mxu0
      %v326 = vpop.f32.mrb[0].mxu0
      %327 = vdwg.mxu0
      %v328 = vmul.f32 %v323, 0.25
      %v329 = vadd.f32 %v328, %v213
      %v330 = vsel %vm216, %v329, -inf
      %331 = vmax.xlane.f32.xlu0 %v330
      %v332 = vpop.xlane.xlu0 %331
      %v333 = vsub.f32 %v329, %v332
      %v334 = vmul.f32 %v333, 1.442695
      %v335 = vpow.pop %v334
      %v336 = vsel %vm216, %v335, 0.0
      %337 = vadd.xlane.f32.xlu0 %v336
      %v338 = vpop.xlane.xlu0 %337
      %v339 = vrcp.pop %v338
      %v340 = vmul.f32 %v335, %v339
      %v341 = vpack.c.bf16 %v340, %v340
      %342 = vrot.lane.b32.xlu0 %v158, 48
      %v343 = vpop.permute.xlu0 %342
      %v345 = vsel %vm216, %v341, 0
      %v348 = vsel %vm234, %v343, 0
      %350 = vmatprep.subr.bf16.mxu0 0
      %351 = vmatpush1.bf16.msra.mxu0 %v348
      %352 = vmatprep.subr.bf16.mxu0 0
      %353 = vmatpush1.bf16.msra.mxu0 0
      %354 = vmatprep.subr.bf16.mxu0 0
      %355 = vmatpush1.bf16.msra.mxu0 0
      %356 = vmatprep.subr.bf16.mxu0 0
      %357 = vmatpush1.bf16.msra.mxu0 0
      %358 = vmatprep.subr.bf16.mxu0 0
      %359 = vmatpush1.bf16.msra.mxu0 0
      %360 = vmatprep.subr.bf16.mxu0 0
      %361 = vmatpush1.bf16.msra.mxu0 0
      %362 = vmatprep.subr.bf16.mxu0 0
      %363 = vmatpush1.bf16.msra.mxu0 0
      %364 = vmatprep.subr.bf16.mxu0 0
      %365 = vmatpush1.bf16.msra.mxu0 0
      %366 = vmatprep.subr.bf16.mxu0 0
      %367 = vmatpush1.bf16.msra.mxu0 0
      %368 = vmatprep.subr.bf16.mxu0 0
      %369 = vmatpush1.bf16.msra.mxu0 0
      %370 = vmatprep.subr.bf16.mxu0 0
      %371 = vmatpush1.bf16.msra.mxu0 0
      %372 = vmatprep.subr.bf16.mxu0 0
      %373 = vmatpush1.bf16.msra.mxu0 0
      %374 = vmatprep.subr.bf16.mxu0 0
      %375 = vmatpush1.bf16.msra.mxu0 0
      %376 = vmatprep.subr.bf16.mxu0 0
      %377 = vmatpush1.bf16.msra.mxu0 0
      %378 = vmatprep.subr.bf16.mxu0 0
      %379 = vmatpush1.bf16.msra.mxu0 0
      %380 = vmatprep.subr.bf16.mxu0 0
      %381 = vmatpush1.bf16.msra.mxu0 0
      %382 = vmatprep.mubr.bf16.mxu0 0
      %383 = vmatmul.mubr.bf16.gmra.mrb[0].mxu0 %v345
      %v384 = vpop.f32.mrb[0].mxu0
      %v385 = vadd.f32 0.0, %v384
      %v386 = vpop.f32.mrb[0].mxu0
      %v387 = vpop.f32.mrb[0].mxu0
      %v388 = vpop.f32.mrb[0].mxu0
      %389 = vdwg.mxu0
      %391 = vrot.lane.b32.xlu0 %v385, 16
      %v392 = vpop.permute.xlu0 %391
      %v394 = vsel %vm161, %v273, %v392
      %v395 = vpack.c.bf16 %v394, %v394
      %vm396 = vcmask 257024
      %397 = vst.msk [vmem:[%s152] sm:$0xf] %vm396, %v395
      %p398 = scmp.lt.s32.totalorder %s13, 1
      %s399 = scalar_select %p398, %s13, 1
      %s400 = smul.addr %s399, 4
      %s401 = scalar_lea.vmem %s2, %s400
      // Predicated region
      $region29: #{forward.18} parent=27 // pred_check
        %p402 = pneg %p83
      $region30: #{forward.18} parent=27 // pred_check_branch
        %404 = sbr.rel (%p402) target = $region32
      $region31: #{forward.18} parent=27 // pred_region
        _
      $region32: #{forward.18} parent=27 // pred_fallthru
        _
    $region28: #{forward.18} parent=5 // pred_fallthru
      _
    %p405 = scmp.le.s32.totalorder 2, %s8
    // Predicated region
    $region33: #{forward.18} parent=5 // pred_check
      %p406 = pneg %p405
    $region34: #{forward.18} parent=5 // pred_check_branch
      %408 = sbr.rel (%p406) target = $region36
    $region35: #{forward.18} parent=5 // pred_region
      %s409 = ssub.s32 %s8, 2
      // Predicated region
      $region37: #{forward.18} parent=35 // pred_check
        %p410 = pneg %p89
      $region38: #{forward.18} parent=35 // pred_check_branch
        %412 = sbr.rel (%p410) target = $region40
      $region39: #{forward.18} parent=35 // pred_region
        %p413 = scmp.lt.s32.totalorder %s14, 1
        %s414 = scalar_select %p413, %s14, 1
        %s415 = smul.addr %s414, 4
        %s416 = scalar_lea.vmem %s2, %s415
      $region40: #{forward.18} parent=35 // pred_fallthru
        _
    $region36: #{forward.18} parent=5 // pred_fallthru
      _
  $region6: #{forward.18} parent=0 // loop_footer
    %s12 = sadd.s32 1, %s8
  $region7: #{forward.18} parent=0 // loop_footer_branch
    %7 = sbr.rel target = $region3
  $region8: #{forward.18} parent=0 // loop_exit
    _

// kernel: forward.20
$region0: #{forward.20}
  #allocation0 [shape = 'u32[]', space=smem, size = 0x4, offset = 0x4, fixed_abs, tag = 'smem constant byte address 0x4 - core index']
  #allocation1 [shape = 'u32[144,128]{1,0:T(1,128)}', space=vmem, size = 0x12000, scoped, tag = 'internal scratch']
  #allocation2 [shape = 'f32[16,64]{1,0:T(8,128)}', space=vmem, size = 0x2000, scoped, tag = 'scratch operand']
  %s0 = inlined_call_operand.vmem [shape: bf16[16,32], index: 0, kind: input, shape index: {}]
  %s1 = inlined_call_operand.vmem [shape: bf16[32,64], index: 1, kind: input, shape index: {}]
  %s2 = inlined_call_operand.vmem [shape: f32[1,64], index: 2, kind: input, shape index: {}]
  %s3 = inlined_call_operand.vmem [shape: bf16[16,64], index: 3, kind: output, shape index: {}]
  %s4 = sld [smem:[#allocation0]]
  $region30: #{forward.20} parent=0
    _
  %s6 = ssub.s32 1, %s4
  %s7 = scalar_select 0, %s6, %s4
  // Predicated region
  $region2: #{forward.20} parent=0 // pred_check
    _
  $region3: #{forward.20} parent=0 // pred_check_branch
    %9 = sbr.rel (0) target = $region5
  $region4: #{forward.20} parent=0 // pred_region
    _
  $region5: #{forward.20} parent=0 // pred_fallthru
    _
  // Predicated region
  $region6: #{forward.20} parent=0 // pred_check
    _
  $region7: #{forward.20} parent=0 // pred_check_branch
    %11 = sbr.rel (0) target = $region9
  $region8: #{forward.20} parent=0 // pred_region
    _
  $region9: #{forward.20} parent=0 // pred_fallthru
    _
  // Predicated region
  $region10: #{forward.20} parent=0 // pred_check
    _
  $region11: #{forward.20} parent=0 // pred_check_branch
    %13 = sbr.rel (0) target = $region13
  $region12: #{forward.20} parent=0 // pred_region
    _
  $region13: #{forward.20} parent=0 // pred_fallthru
    _
  %p15 = scmp.eq.s32.totalorder 0, 0
  // Predicated region
  $region14: #{forward.20} parent=0 // pred_check
    %p16 = pneg %p15
  $region15: #{forward.20} parent=0 // pred_check_branch
    %18 = sbr.rel (%p16) target = $region17
  $region16: #{forward.20} parent=0 // pred_region
    %vm19 = vcmask 523264
    %20 = vst.msk [vmem:[#allocation2] sm:$0xff] %vm19, 0.0
    %21 = vst.msk [vmem:[#allocation2 + $0x8] sm:$0xff] %vm19, 0.0
  $region17: #{forward.20} parent=0 // pred_fallthru
    _
  %v22 = vld [vmem:[#allocation2] sm:$0xff]
  %v23 = vld [vmem:[#allocation2 + $0x8] sm:$0xff]
  %v24 = vld [vmem:[%s0] sm:$0xf]
  %v25 = vld [vmem:[%s0 + $0x4] sm:$0xf]
  %v26 = vld [vmem:[%s1] sm:$0xf]
  %v27 = vld [vmem:[%s1 + $0x4] sm:$0xf]
  %v28 = vld [vmem:[%s1 + $0x8] sm:$0xf]
  %v29 = vld [vmem:[%s1 + $0xc] sm:$0xf]
  %v32 = vunpack.c.l.b16 %v24
  %v33 = vunpack.c.l.b16 %v25
  %v34 = vpack.c.b16 %v33, %v32
  %v39 = vunpack.c.l.b16 %v26
  %v40 = vunpack.c.l.b16 %v27
  %v41 = vunpack.c.l.b16 %v28
  %v42 = vunpack.c.l.b16 %v29
  %v43 = vpack.c.b16 %v40, %v39
  %v44 = vpack.c.b16 %v42, %v41
  %vm47 = vcmask 261120
  %v49 = vsel %vm47, %v34, 0
  %51 = vmatprep.subr.bf16.mxu0 0
  %52 = vmatpush1.bf16.msra.mxu0 %v43
  %53 = vmatprep.subr.bf16.mxu0 0
  %54 = vmatpush1.bf16.msra.mxu0 %v44
  %55 = vmatprep.subr.bf16.mxu0 0
  %56 = vmatpush1.bf16.msra.mxu0 0
  %57 = vmatprep.subr.bf16.mxu0 0
  %58 = vmatpush1.bf16.msra.mxu0 0
  %59 = vmatprep.subr.bf16.mxu0 0
  %60 = vmatpush1.bf16.msra.mxu0 0
  %61 = vmatprep.subr.bf16.mxu0 0
  %62 = vmatpush1.bf16.msra.mxu0 0
  %63 = vmatprep.subr.bf16.mxu0 0
  %64 = vmatpush1.bf16.msra.mxu0 0
  %65 = vmatprep.subr.bf16.mxu0 0
  %66 = vmatpush1.bf16.msra.mxu0 0
  %67 = vmatprep.subr.bf16.mxu0 0
  %68 = vmatpush1.bf16.msra.mxu0 0
  %69 = vmatprep.subr.bf16.mxu0 0
  %70 = vmatpush1.bf16.msra.mxu0 0
  %71 = vmatprep.subr.bf16.mxu0 0
  %72 = vmatpush1.bf16.msra.mxu0 0
  %73 = vmatprep.subr.bf16.mxu0 0
  %74 = vmatpush1.bf16.msra.mxu0 0
  %75 = vmatprep.subr.bf16.mxu0 0
  %76 = vmatpush1.bf16.msra.mxu0 0
  %77 = vmatprep.subr.bf16.mxu0 0
  %78 = vmatpush1.bf16.msra.mxu0 0
  %79 = vmatprep.subr.bf16.mxu0 0
  %80 = vmatpush1.bf16.msra.mxu0 0
  %81 = vmatprep.subr.bf16.mxu0 0
  %82 = vmatpush1.bf16.msra.mxu0 0
  %83 = vmatprep.mubr.bf16.mxu0 0
  %84 = vmatmul.mubr.bf16.gmra.mrb[0].mxu0 %v49
  %v85 = vpop.f32.mrb[0].mxu0
  %v86 = vadd.f32 0.0, %v85
  %v87 = vpop.f32.mrb[0].mxu0
  %v88 = vpop.f32.mrb[0].mxu0
  %v89 = vadd.f32 0.0, %v88
  %v90 = vpop.f32.mrb[0].mxu0
  %91 = vdwg.mxu0
  %v92 = vadd.f32 %v22, %v86
  %v93 = vadd.f32 %v23, %v89
  %vm94 = vcmask 523264
  %95 = vst.msk [vmem:[#allocation2] sm:$0xff] %vm94, %v92
  %96 = vst.msk [vmem:[#allocation2 + $0x8] sm:$0xff] %vm94, %v93
  // Predicated region
  $region18: #{forward.20} parent=0 // pred_check
    %p97 = pneg %p15
  $region19: #{forward.20} parent=0 // pred_check_branch
    %99 = sbr.rel (%p97) target = $region21
  $region20: #{forward.20} parent=0 // pred_region
    %v100 = vld [vmem:[#allocation2] sm:$0xff]
    %v101 = vld [vmem:[#allocation2 + $0x8] sm:$0xff]
    %v102 = vld [vmem:[%s2] sm:$0x1]
    %v104 = vlaneseq
    %v105 = vshrl.u32 %v104, 7
    %v106 = vsub.s32 0, %v105
    %v107 = vrot.slane %v102, %v106
    %v109 = vadd.f32 %v100, %v107
    %v110 = vadd.f32 %v101, %v107
    %v111 = vmul.f32 %v109, %v109
    %v112 = vmul.f32 %v110, %v110
    %v113 = vmul.f32 %v109, %v111
    %v114 = vmul.f32 %v110, %v112
    %v115 = vmul.f32 %v113, 0.044715
    %v116 = vmul.f32 %v114, 0.044715
    %v117 = vadd.f32 %v109, %v115
    %v118 = vadd.f32 %v110, %v116
    %v119 = vmul.f32 %v117, 0.7978846
    %v120 = vmul.f32 %v118, 0.7978846
    %v121 = vtanh.pop %v119
    %v122 = vtanh.pop %v120
    %v123 = vadd.f32 %v121, 1.0
    %v124 = vadd.f32 %v122, 1.0
    %v125 = vmul.f32 %v123, 0.5
    %v126 = vmul.f32 %v124, 0.5
    %v127 = vmul.f32 %v109, %v125
    %v128 = vmul.f32 %v110, %v126
    %v129 = vpack.c.bf16 %v128, %v127
    %v131 = vunpack.c.l.b16 %v129
    %v132 = vunpack.c.h.b16 %v129
    %v133 = vpack.c.b16 %v131, %v131
    %v134 = vpack.c.b16 %v132, %v132
    %vm137 = vcmask 519168
    %138 = vst.msk [vmem:[%s3] sm:$0xf] %vm137, %v133
    %139 = vst.msk [vmem:[%s3 + $0x4] sm:$0xf] %vm137, %v134
  $region21: #{forward.20} parent=0 // pred_fallthru
    _
  // Predicated region
  $region22: #{forward.20} parent=0 // pred_check
    _
  $region23: #{forward.20} parent=0 // pred_check_branch
    %141 = sbr.rel (0) target = $region25
  $region24: #{forward.20} parent=0 // pred_region
    _
  $region25: #{forward.20} parent=0 // pred_fallthru
    _
  // Predicated region
  $region26: #{forward.20} parent=0 // pred_check
    _
  $region27: #{forward.20} parent=0 // pred_check_branch
    %143 = sbr.rel (0) target = $region29
  $region28: #{forward.20} parent=0 // pred_region
    _
  $region29: #{forward.20} parent=0 // pred_fallthru
    _

// kernel: forward.27
$region0: #{forward.27}
  #allocation0 [shape = 'u32[]', space=smem, size = 0x4, offset = 0x4, fixed_abs, tag = 'smem constant byte address 0x4 - core index']
  #allocation1 [shape = 'u32[144,128]{1,0:T(1,128)}', space=vmem, size = 0x12000, scoped, tag = 'internal scratch']
  #allocation2 [shape = 'f32[16,128]{1,0:T(8,128)}', space=vmem, size = 0x2000, scoped, tag = 'scratch operand']
  %s0 = inlined_call_operand.vmem [shape: bf16[16,32], index: 0, kind: input, shape index: {}]
  %s1 = inlined_call_operand.vmem [shape: bf16[32,128], index: 1, kind: input, shape index: {}]
  %s2 = inlined_call_operand.vmem [shape: f32[1,128], index: 2, kind: input, shape index: {}]
  %s3 = inlined_call_operand.vmem [shape: bf16[16,128], index: 3, kind: output, shape index: {}]
  %s4 = sld [smem:[#allocation0]]
  $region30: #{forward.27} parent=0
    _
  %s6 = ssub.s32 1, %s4
  %s7 = scalar_select 0, %s6, %s4
  // Predicated region
  $region2: #{forward.27} parent=0 // pred_check
    _
  $region3: #{forward.27} parent=0 // pred_check_branch
    %9 = sbr.rel (0) target = $region5
  $region4: #{forward.27} parent=0 // pred_region
    _
  $region5: #{forward.27} parent=0 // pred_fallthru
    _
  // Predicated region
  $region6: #{forward.27} parent=0 // pred_check
    _
  $region7: #{forward.27} parent=0 // pred_check_branch
    %11 = sbr.rel (0) target = $region9
  $region8: #{forward.27} parent=0 // pred_region
    _
  $region9: #{forward.27} parent=0 // pred_fallthru
    _
  // Predicated region
  $region10: #{forward.27} parent=0 // pred_check
    _
  $region11: #{forward.27} parent=0 // pred_check_branch
    %13 = sbr.rel (0) target = $region13
  $region12: #{forward.27} parent=0 // pred_region
    _
  $region13: #{forward.27} parent=0 // pred_fallthru
    _
  %p15 = scmp.eq.s32.totalorder 0, 0
  // Predicated region
  $region14: #{forward.27} parent=0 // pred_check
    %p16 = pneg %p15
  $region15: #{forward.27} parent=0 // pred_check_branch
    %18 = sbr.rel (%p16) target = $region17
  $region16: #{forward.27} parent=0 // pred_region
    %19 = vst [vmem:[#allocation2] sm:$0xff] 0.0
    %20 = vst [vmem:[#allocation2 + $0x8] sm:$0xff] 0.0
  $region17: #{forward.27} parent=0 // pred_fallthru
    _
  %v21 = vld [vmem:[#allocation2] sm:$0xff]
  %v22 = vld [vmem:[#allocation2 + $0x8] sm:$0xff]
  %v23 = vld [vmem:[%s0] sm:$0xf]
  %v24 = vld [vmem:[%s0 + $0x4] sm:$0xf]
  %v25 = vld [vmem:[%s1] sm:$0xf]
  %v26 = vld [vmem:[%s1 + $0x4] sm:$0xf]
  %v27 = vld [vmem:[%s1 + $0x8] sm:$0xf]
  %v28 = vld [vmem:[%s1 + $0xc] sm:$0xf]
  %v31 = vunpack.c.l.b16 %v23
  %v32 = vunpack.c.l.b16 %v24
  %v33 = vpack.c.b16 %v32, %v31
  %v38 = vunpack.c.l.b16 %v25
  %v39 = vunpack.c.l.b16 %v26
  %v40 = vunpack.c.l.b16 %v27
  %v41 = vunpack.c.l.b16 %v28
  %v42 = vpack.c.b16 %v39, %v38
  %v43 = vpack.c.b16 %v41, %v40
  %vm46 = vcmask 261120
  %v48 = vsel %vm46, %v33, 0
  %50 = vmatprep.subr.bf16.mxu0 0
  %51 = vmatpush1.bf16.msra.mxu0 %v42
  %52 = vmatprep.subr.bf16.mxu0 0
  %53 = vmatpush1.bf16.msra.mxu0 %v43
  %54 = vmatprep.subr.bf16.mxu0 0
  %55 = vmatpush1.bf16.msra.mxu0 0
  %56 = vmatprep.subr.bf16.mxu0 0
  %57 = vmatpush1.bf16.msra.mxu0 0
  %58 = vmatprep.subr.bf16.mxu0 0
  %59 = vmatpush1.bf16.msra.mxu0 0
  %60 = vmatprep.subr.bf16.mxu0 0
  %61 = vmatpush1.bf16.msra.mxu0 0
  %62 = vmatprep.subr.bf16.mxu0 0
  %63 = vmatpush1.bf16.msra.mxu0 0
  %64 = vmatprep.subr.bf16.mxu0 0
  %65 = vmatpush1.bf16.msra.mxu0 0
  %66 = vmatprep.subr.bf16.mxu0 0
  %67 = vmatpush1.bf16.msra.mxu0 0
  %68 = vmatprep.subr.bf16.mxu0 0
  %69 = vmatpush1.bf16.msra.mxu0 0
  %70 = vmatprep.subr.bf16.mxu0 0
  %71 = vmatpush1.bf16.msra.mxu0 0
  %72 = vmatprep.subr.bf16.mxu0 0
  %73 = vmatpush1.bf16.msra.mxu0 0
  %74 = vmatprep.subr.bf16.mxu0 0
  %75 = vmatpush1.bf16.msra.mxu0 0
  %76 = vmatprep.subr.bf16.mxu0 0
  %77 = vmatpush1.bf16.msra.mxu0 0
  %78 = vmatprep.subr.bf16.mxu0 0
  %79 = vmatpush1.bf16.msra.mxu0 0
  %80 = vmatprep.subr.bf16.mxu0 0
  %81 = vmatpush1.bf16.msra.mxu0 0
  %82 = vmatprep.mubr.bf16.mxu0 0
  %83 = vmatmul.mubr.bf16.gmra.mrb[0].mxu0 %v48
  %v84 = vpop.f32.mrb[0].mxu0
  %v85 = vadd.f32 0.0, %v84
  %v86 = vpop.f32.mrb[0].mxu0
  %v87 = vpop.f32.mrb[0].mxu0
  %v88 = vadd.f32 0.0, %v87
  %v89 = vpop.f32.mrb[0].mxu0
  %90 = vdwg.mxu0
  %v91 = vadd.f32 %v21, %v85
  %v92 = vadd.f32 %v22, %v88
  %93 = vst [vmem:[#allocation2] sm:$0xff] %v91
  %94 = vst [vmem:[#allocation2 + $0x8] sm:$0xff] %v92
  // Predicated region
  $region18: #{forward.27} parent=0 // pred_check
    %p95 = pneg %p15
  $region19: #{forward.27} parent=0 // pred_check_branch
    %97 = sbr.rel (%p95) target = $region21
  $region20: #{forward.27} parent=0 // pred_region
    %v98 = vld [vmem:[#allocation2] sm:$0xff]
    %v99 = vld [vmem:[#allocation2 + $0x8] sm:$0xff]
    %v100 = vld [vmem:[%s2] sm:$0x1]
    %v102 = vlaneseq
    %v103 = vshrl.u32 %v102, 7
    %v104 = vsub.s32 0, %v103
    %v105 = vrot.slane %v100, %v104
    %v107 = vadd.f32 %v98, %v105
    %v108 = vadd.f32 %v99, %v105
    %v109 = vpack.c.bf16 %v108, %v107
    %v111 = vunpack.c.l.b16 %v109
    %v112 = vunpack.c.h.b16 %v109
    %v113 = vpack.c.b16 %v111, %v111
    %v114 = vpack.c.b16 %v112, %v112
    %117 = vst [vmem:[%s3] sm:$0xf] %v113
    %118 = vst [vmem:[%s3 + $0x4] sm:$0xf] %v114
  $region21: #{forward.27} parent=0 // pred_fallthru
    _
  // Predicated region
  $region22: #{forward.27} parent=0 // pred_check
    _
  $region23: #{forward.27} parent=0 // pred_check_branch
    %120 = sbr.rel (0) target = $region25
  $region24: #{forward.27} parent=0 // pred_region
    _
  $region25: #{forward.27} parent=0 // pred_fallthru
    _
  // Predicated region
  $region26: #{forward.27} parent=0 // pred_check
    _
  $region27: #{forward.27} parent=0 // pred_check_branch
    %122 = sbr.rel (0) target = $region29
  $region28: #{forward.27} parent=0 // pred_region
    _
  $region29: #{forward.27} parent=0 // pred_fallthru
    _

// kernel: forward.21
$region0: #{forward.21}
  #allocation0 [shape = 'u32[]', space=smem, size = 0x4, offset = 0x4, fixed_abs, tag = 'smem constant byte address 0x4 - core index']
  #allocation1 [shape = 'u32[144,128]{1,0:T(1,128)}', space=vmem, size = 0x12000, scoped, tag = 'internal scratch']
  #allocation2 [shape = 'f32[16,32]{1,0:T(8,128)}', space=vmem, size = 0x2000, scoped, tag = 'scratch operand']
  %s0 = inlined_call_operand.vmem [shape: bf16[16,64], index: 0, kind: input, shape index: {}]
  %s1 = inlined_call_operand.vmem [shape: bf16[64,32], index: 1, kind: input, shape index: {}]
  %s2 = inlined_call_operand.vmem [shape: f32[1,32], index: 2, kind: input, shape index: {}]
  %s3 = inlined_call_operand.vmem [shape: f32[16,32], index: 3, kind: input, shape index: {}]
  %s4 = inlined_call_operand.vmem [shape: f32[1,32], index: 4, kind: input, shape index: {}]
  %s5 = inlined_call_operand.vmem [shape: f32[1,32], index: 5, kind: input, shape index: {}]
  %s6 = inlined_call_operand.vmem [shape: f32[16,32], index: 6, kind: output, shape index: {}]
  %s7 = sld [smem:[#allocation0]]
  $region42: #{forward.21} parent=0
    _
  %s9 = ssub.s32 1, %s7
  %s10 = scalar_select 0, %s9, %s7
  // Predicated region
  $region2: #{forward.21} parent=0 // pred_check
    _
  $region3: #{forward.21} parent=0 // pred_check_branch
    %12 = sbr.rel (0) target = $region5
  $region4: #{forward.21} parent=0 // pred_region
    _
  $region5: #{forward.21} parent=0 // pred_fallthru
    _
  // Predicated region
  $region6: #{forward.21} parent=0 // pred_check
    _
  $region7: #{forward.21} parent=0 // pred_check_branch
    %14 = sbr.rel (0) target = $region9
  $region8: #{forward.21} parent=0 // pred_region
    _
  $region9: #{forward.21} parent=0 // pred_fallthru
    _
  // Predicated region
  $region10: #{forward.21} parent=0 // pred_check
    _
  $region11: #{forward.21} parent=0 // pred_check_branch
    %16 = sbr.rel (0) target = $region13
  $region12: #{forward.21} parent=0 // pred_region
    _
  $region13: #{forward.21} parent=0 // pred_fallthru
    _
  // Predicated region
  $region14: #{forward.21} parent=0 // pred_check
    _
  $region15: #{forward.21} parent=0 // pred_check_branch
    %18 = sbr.rel (0) target = $region17
  $region16: #{forward.21} parent=0 // pred_region
    _
  $region17: #{forward.21} parent=0 // pred_fallthru
    _
  // Predicated region
  $region18: #{forward.21} parent=0 // pred_check
    _
  $region19: #{forward.21} parent=0 // pred_check_branch
    %20 = sbr.rel (0) target = $region21
  $region20: #{forward.21} parent=0 // pred_region
    _
  $region21: #{forward.21} parent=0 // pred_fallthru
    _
  // Predicated region
  $region22: #{forward.21} parent=0 // pred_check
    _
  $region23: #{forward.21} parent=0 // pred_check_branch
    %22 = sbr.rel (0) target = $region25
  $region24: #{forward.21} parent=0 // pred_region
    _
  $region25: #{forward.21} parent=0 // pred_fallthru
    _
  %p24 = scmp.eq.s32.totalorder 0, 0
  // Predicated region
  $region26: #{forward.21} parent=0 // pred_check
    %p25 = pneg %p24
  $region27: #{forward.21} parent=0 // pred_check_branch
    %27 = sbr.rel (%p25) target = $region29
  $region28: #{forward.21} parent=0 // pred_region
    %vm28 = vcmask 261120
    %29 = vst.msk [vmem:[#allocation2] sm:$0xff] %vm28, 0.0
    %30 = vst.msk [vmem:[#allocation2 + $0x8] sm:$0xff] %vm28, 0.0
  $region29: #{forward.21} parent=0 // pred_fallthru
    _
  %v31 = vld [vmem:[#allocation2] sm:$0xff]
  %v32 = vld [vmem:[#allocation2 + $0x8] sm:$0xff]
  %v33 = vld [vmem:[%s0] sm:$0xf]
  %v34 = vld [vmem:[%s0 + $0x4] sm:$0xf]
  %v35 = vld [vmem:[%s1] sm:$0xf]
  %v36 = vld [vmem:[%s1 + $0x4] sm:$0xf]
  %v37 = vld [vmem:[%s1 + $0x8] sm:$0xf]
  %v38 = vld [vmem:[%s1 + $0xc] sm:$0xf]
  %v39 = vld [vmem:[%s1 + $0x10] sm:$0xf]
  %v40 = vld [vmem:[%s1 + $0x14] sm:$0xf]
  %v41 = vld [vmem:[%s1 + $0x18] sm:$0xf]
  %v42 = vld [vmem:[%s1 + $0x1c] sm:$0xf]
  %v45 = vunpack.c.l.b16 %v33
  %v46 = vunpack.c.l.b16 %v34
  %v47 = vpack.c.b16 %v46, %v45
  %v56 = vunpack.c.l.b16 %v35
  %v57 = vunpack.c.l.b16 %v36
  %v58 = vunpack.c.l.b16 %v37
  %v59 = vunpack.c.l.b16 %v38
  %v60 = vunpack.c.l.b16 %v39
  %v61 = vunpack.c.l.b16 %v40
  %v62 = vunpack.c.l.b16 %v41
  %v63 = vunpack.c.l.b16 %v42
  %v64 = vpack.c.b16 %v57, %v56
  %v65 = vpack.c.b16 %v59, %v58
  %v66 = vpack.c.b16 %v61, %v60
  %v67 = vpack.c.b16 %v63, %v62
  %vm72 = vcmask 523264
  %v74 = vsel %vm72, %v47, 0
  %76 = vmatprep.subr.bf16.mxu0 0
  %77 = vmatpush1.bf16.msra.mxu0 %v64
  %78 = vmatprep.subr.bf16.mxu0 0
  %79 = vmatpush1.bf16.msra.mxu0 %v65
  %80 = vmatprep.subr.bf16.mxu0 0
  %81 = vmatpush1.bf16.msra.mxu0 %v66
  %82 = vmatprep.subr.bf16.mxu0 0
  %83 = vmatpush1.bf16.msra.mxu0 %v67
  %84 = vmatprep.subr.bf16.mxu0 0
  %85 = vmatpush1.bf16.msra.mxu0 0
  %86 = vmatprep.subr.bf16.mxu0 0
  %87 = vmatpush1.bf16.msra.mxu0 0
  %88 = vmatprep.subr.bf16.mxu0 0
  %89 = vmatpush1.bf16.msra.mxu0 0
  %90 = vmatprep.subr.bf16.mxu0 0
  %91 = vmatpush1.bf16.msra.mxu0 0
  %92 = vmatprep.subr.bf16.mxu0 0
  %93 = vmatpush1.bf16.msra.mxu0 0
  %94 = vmatprep.subr.bf16.mxu0 0
  %95 = vmatpush1.bf16.msra.mxu0 0
  %96 = vmatprep.subr.bf16.mxu0 0
  %97 = vmatpush1.bf16.msra.mxu0 0
  %98 = vmatprep.subr.bf16.mxu0 0
  %99 = vmatpush1.bf16.msra.mxu0 0
  %100 = vmatprep.subr.bf16.mxu0 0
  %101 = vmatpush1.bf16.msra.mxu0 0
  %102 = vmatprep.subr.bf16.mxu0 0
  %103 = vmatpush1.bf16.msra.mxu0 0
  %104 = vmatprep.subr.bf16.mxu0 0
  %105 = vmatpush1.bf16.msra.mxu0 0
  %106 = vmatprep.subr.bf16.mxu0 0
  %107 = vmatpush1.bf16.msra.mxu0 0
  %108 = vmatprep.mubr.bf16.mxu0 0
  %109 = vmatmul.mubr.bf16.gmra.mrb[0].mxu0 %v74
  %v110 = vpop.f32.mrb[0].mxu0
  %v111 = vadd.f32 0.0, %v110
  %v112 = vpop.f32.mrb[0].mxu0
  %v113 = vpop.f32.mrb[0].mxu0
  %v114 = vadd.f32 0.0, %v113
  %v115 = vpop.f32.mrb[0].mxu0
  %116 = vdwg.mxu0
  %v117 = vadd.f32 %v31, %v111
  %v118 = vadd.f32 %v32, %v114
  %vm119 = vcmask 261120
  %120 = vst.msk [vmem:[#allocation2] sm:$0xff] %vm119, %v117
  %121 = vst.msk [vmem:[#allocation2 + $0x8] sm:$0xff] %vm119, %v118
  // Predicated region
  $region30: #{forward.21} parent=0 // pred_check
    %p122 = pneg %p24
  $region31: #{forward.21} parent=0 // pred_check_branch
    %124 = sbr.rel (%p122) target = $region33
  $region32: #{forward.21} parent=0 // pred_region
    %v125 = vld [vmem:[#allocation2] sm:$0xff]
    %v126 = vld [vmem:[#allocation2 + $0x8] sm:$0xff]
    %v127 = vld [vmem:[%s2] sm:$0x1]
    %v129 = vlaneseq
    %v130 = vshrl.u32 %v129, 7
    %v131 = vsub.s32 0, %v130
    %v132 = vrot.slane %v127, %v131
    %v134 = vadd.f32 %v125, %v132
    %v135 = vadd.f32 %v126, %v132
    %v136 = vld [vmem:[%s3] sm:$0xff]
    %v137 = vld [vmem:[%s3 + $0x8] sm:$0xff]
    %v138 = vadd.f32 %v134, %v136
    %v139 = vadd.f32 %v135, %v137
    %v140 = vsel %vm119, %v138, 0.0
    %141 = vadd.xlane.f32.xlu0 %v140
    %v142 = vpop.xlane.xlu0 %141
    %v143 = vsel %vm119, %v139, 0.0
    %144 = vadd.xlane.f32.xlu0 %v143
    %v145 = vpop.xlane.xlu0 %144
    %v146 = vrcp.pop 32.0
    %v147 = vmul.f32 %v142, %v146
    %v148 = vmul.f32 %v145, %v146
    %v149 = vsub.f32 %v138, %v147
    %v150 = vsub.f32 %v139, %v148
    %v151 = vmul.f32 %v149, %v149
    %v152 = vmul.f32 %v150, %v150
    %v153 = vsel %vm119, %v151, 0.0
    %154 = vadd.xlane.f32.xlu0 %v153
    %v155 = vpop.xlane.xlu0 %154
    %v156 = vsel %vm119, %v152, 0.0
    %157 = vadd.xlane.f32.xlu0 %v156
    %v158 = vpop.xlane.xlu0 %157
    %v159 = vmul.f32 %v155, %v146
    %v160 = vmul.f32 %v158, %v146
    %v161 = vadd.f32 %v159, 1e-12
    %v162 = vadd.f32 %v160, 1e-12
    %v163 = vrsqrt.pop %v161
    %v164 = vrsqrt.pop %v162
    %v165 = vmul.f32 %v149, %v163
    %v166 = vmul.f32 %v150, %v164
    %v167 = vld [vmem:[%s4] sm:$0x1]
    %v169 = vlaneseq
    %v170 = vshrl.u32 %v169, 7
    %v171 = vsub.s32 0, %v170
    %v172 = vrot.slane %v167, %v171
    %v174 = vmul.f32 %v165, %v172
    %v175 = vmul.f32 %v166, %v172
    %v176 = vld [vmem:[%s5] sm:$0x1]
    %v178 = vlaneseq
    %v179 = vshrl.u32 %v178, 7
    %v180 = vsub.s32 0, %v179
    %v181 = vrot.slane %v176, %v180
    %v183 = vadd.f32 %v174, %v181
    %v184 = vadd.f32 %v175, %v181
    %185 = vst.msk [vmem:[%s6] sm:$0xff] %vm119, %v183
    %186 = vst.msk [vmem:[%s6 + $0x8] sm:$0xff] %vm119, %v184
  $region33: #{forward.21} parent=0 // pred_fallthru
    _
  // Predicated region
  $region34: #{forward.21} parent=0 // pred_check
    _
  $region35: #{forward.21} parent=0 // pred_check_branch
    %188 = sbr.rel (0) target = $region37
  $region36: #{forward.21} parent=0 // pred_region
    _
  $region37: #{forward.21} parent=0 // pred_fallthru
    _
  // Predicated region
  $region38: #{forward.21} parent=0 // pred_check
    _
  $region39: #{forward.21} parent=0 // pred_check_branch
    %190 = sbr.rel (0) target = $region41
  $region40: #{forward.21} parent=0 // pred_region
    _
  $region41: #{forward.21} parent=0 // pred_fallthru
    _

// kernel: forward.28
$region0: #{forward.28}
  #allocation0 [shape = 'u32[]', space=smem, size = 0x4, offset = 0x4, fixed_abs, tag = 'smem constant byte address 0x4 - core index']
  #allocation1 [shape = 'u32[144,128]{1,0:T(1,128)}', space=vmem, size = 0x12000, scoped, tag = 'internal scratch']
  %s0 = inlined_call_operand.vmem [shape: bf16[8,2,128], index: 0, kind: input, shape index: {}]
  %s1 = inlined_call_operand.vmem [shape: bf16[16,64], index: 1, kind: input, shape index: {}]
  %s2 = inlined_call_operand.vmem [shape: bf16[16,64], index: 2, kind: input, shape index: {}]
  %s3 = inlined_call_operand.vmem [shape: f32[8,2,32], index: 3, kind: output, shape index: {}]
  %s4 = sld [smem:[#allocation0]]
  $region29: #{forward.28} parent=0
    _
  %s6 = ssub.s32 1, %s4
  %s7 = scalar_select 0, %s6, %s4
  // Predicated region
  $region2: #{forward.28} parent=0 // pred_check
    _
  $region3: #{forward.28} parent=0 // pred_check_branch
    %9 = sbr.rel (0) target = $region5
  $region4: #{forward.28} parent=0 // pred_region
    _
  $region5: #{forward.28} parent=0 // pred_fallthru
    _
  // Predicated region
  $region6: #{forward.28} parent=0 // pred_check
    _
  $region7: #{forward.28} parent=0 // pred_check_branch
    %11 = sbr.rel (0) target = $region9
  $region8: #{forward.28} parent=0 // pred_region
    _
  $region9: #{forward.28} parent=0 // pred_fallthru
    _
  // Predicated region
  $region10: #{forward.28} parent=0 // pred_check
    _
  $region11: #{forward.28} parent=0 // pred_check_branch
    %13 = sbr.rel (0) target = $region13
  $region12: #{forward.28} parent=0 // pred_region
    _
  $region13: #{forward.28} parent=0 // pred_fallthru
    _
  %v15 = vld [vmem:[%s1] sm:$0xf]
  %v16 = vld [vmem:[%s1 + $0x4] sm:$0xf]
  %v17 = vld [vmem:[%s2] sm:$0xf]
  %v18 = vld [vmem:[%s2 + $0x4] sm:$0xf]
  loop: start=0, step=1, limit=8
  $region14: #{forward.28} parent=0 // loop_pre_header
    _
  $region15: #{forward.28} parent=0 // loop_header
    %s20 = sphi 0, %s24
    %p21 = scmp.ge.s32.totalorder %s20, 8
    %v25 = vphi 0.0, %v179
    %v26 = vphi 0.0, %v203
    %v27 = vphi 0.0, %v173
    %v28 = vphi 0.0, %v197
  $region16: #{forward.28} parent=0 // loop_header_branch
    %23 = sbr.rel (%p21) target = $region20
  $region17: #{forward.28} parent=0 // loop_body
    %s29 = ssub.s32 7, %s20
    %s30 = scalar_lea.vmem %s0, %s20
    %v31 = vld [vmem:[%s30] sm:$0x1]
    %v32 = vunpack.c.l.bf16 %v31
    %s33 = scalar_lea.vmem %s0, %s29
    %v34 = vld [vmem:[%s33] sm:$0x1]
    %v35 = vunpack.c.l.bf16 %v34
    %v36 = vpack.c.bf16 %v25, %v25
    %38 = vrot.lane.b32.xlu0 %v36, 80
    %v39 = vpop.permute.xlu0 %38
    %v42 = vunpack.c.l.b16 %v15
    %v43 = vunpack.c.l.b16 %v16
    %v44 = vpack.c.b16 %v43, %v42
    %vm46 = vcmask 130048
    %v48 = vsel %vm46, %v39, 0
    %50 = vmatprep.subr.bf16.mxu0 0
    %51 = vmatpush1.bf16.msra.mxu0 %v44
    %52 = vmatprep.subr.bf16.mxu0 0
    %53 = vmatpush1.bf16.msra.mxu0 0
    %54 = vmatprep.subr.bf16.mxu0 0
    %55 = vmatpush1.bf16.msra.mxu0 0
    %56 = vmatprep.subr.bf16.mxu0 0
    %57 = vmatpush1.bf16.msra.mxu0 0
    %58 = vmatprep.subr.bf16.mxu0 0
    %59 = vmatpush1.bf16.msra.mxu0 0
    %60 = vmatprep.subr.bf16.mxu0 0
    %61 = vmatpush1.bf16.msra.mxu0 0
    %62 = vmatprep.subr.bf16.mxu0 0
    %63 = vmatpush1.bf16.msra.mxu0 0
    %64 = vmatprep.subr.bf16.mxu0 0
    %65 = vmatpush1.bf16.msra.mxu0 0
    %66 = vmatprep.subr.bf16.mxu0 0
    %67 = vmatpush1.bf16.msra.mxu0 0
    %68 = vmatprep.subr.bf16.mxu0 0
    %69 = vmatpush1.bf16.msra.mxu0 0
    %70 = vmatprep.subr.bf16.mxu0 0
    %71 = vmatpush1.bf16.msra.mxu0 0
    %72 = vmatprep.subr.bf16.mxu0 0
    %73 = vmatpush1.bf16.msra.mxu0 0
    %74 = vmatprep.subr.bf16.mxu0 0
    %75 = vmatpush1.bf16.msra.mxu0 0
    %76 = vmatprep.subr.bf16.mxu0 0
    %77 = vmatpush1.bf16.msra.mxu0 0
    %78 = vmatprep.subr.bf16.mxu0 0
    %79 = vmatpush1.bf16.msra.mxu0 0
    %80 = vmatprep.subr.bf16.mxu0 0
    %81 = vmatpush1.bf16.msra.mxu0 0
    %82 = vmatprep.mubr.bf16.mxu0 0
    %83 = vmatmul.mubr.bf16.gmra.mrb[0].mxu0 %v48
    %v84 = vpop.f32.mrb[0].mxu0
    %v85 = vadd.f32 0.0, %v84
    %v86 = vpop.f32.mrb[0].mxu0
    %v87 = vpop.f32.mrb[0].mxu0
    %v88 = vpop.f32.mrb[0].mxu0
    %89 = vdwg.mxu0
    %v90 = vadd.f32 %v32, %v85
    %v91 = vpack.c.bf16 %v26, %v26
    %93 = vrot.lane.b32.xlu0 %v91, 16
    %v94 = vpop.permute.xlu0 %93
    %v97 = vunpack.c.l.b16 %v17
    %v98 = vunpack.c.l.b16 %v18
    %v99 = vpack.c.b16 %v98, %v97
    %v102 = vsel %vm46, %v94, 0
    %104 = vmatprep.subr.bf16.mxu0 0
    %105 = vmatpush1.bf16.msra.mxu0 %v99
    %106 = vmatprep.subr.bf16.mxu0 0
    %107 = vmatpush1.bf16.msra.mxu0 0
    %108 = vmatprep.subr.bf16.mxu0 0
    %109 = vmatpush1.bf16.msra.mxu0 0
    %110 = vmatprep.subr.bf16.mxu0 0
    %111 = vmatpush1.bf16.msra.mxu0 0
    %112 = vmatprep.subr.bf16.mxu0 0
    %113 = vmatpush1.bf16.msra.mxu0 0
    %114 = vmatprep.subr.bf16.mxu0 0
    %115 = vmatpush1.bf16.msra.mxu0 0
    %116 = vmatprep.subr.bf16.mxu0 0
    %117 = vmatpush1.bf16.msra.mxu0 0
    %118 = vmatprep.subr.bf16.mxu0 0
    %119 = vmatpush1.bf16.msra.mxu0 0
    %120 = vmatprep.subr.bf16.mxu0 0
    %121 = vmatpush1.bf16.msra.mxu0 0
    %122 = vmatprep.subr.bf16.mxu0 0
    %123 = vmatpush1.bf16.msra.mxu0 0
    %124 = vmatprep.subr.bf16.mxu0 0
    %125 = vmatpush1.bf16.msra.mxu0 0
    %126 = vmatprep.subr.bf16.mxu0 0
    %127 = vmatpush1.bf16.msra.mxu0 0
    %128 = vmatprep.subr.bf16.mxu0 0
    %129 = vmatpush1.bf16.msra.mxu0 0
    %130 = vmatprep.subr.bf16.mxu0 0
    %131 = vmatpush1.bf16.msra.mxu0 0
    %132 = vmatprep.subr.bf16.mxu0 0
    %133 = vmatpush1.bf16.msra.mxu0 0
    %134 = vmatprep.subr.bf16.mxu0 0
    %135 = vmatpush1.bf16.msra.mxu0 0
    %136 = vmatprep.mubr.bf16.mxu0 0
    %137 = vmatmul.mubr.bf16.gmra.mrb[0].mxu0 %v102
    %v138 = vpop.f32.mrb[0].mxu0
    %v139 = vadd.f32 0.0, %v138
    %v140 = vpop.f32.mrb[0].mxu0
    %v141 = vpop.f32.mrb[0].mxu0
    %v142 = vpop.f32.mrb[0].mxu0
    %143 = vdwg.mxu0
    %v146 = vunpack.c.l.s4 1983009808
    %v147 = vunpack.c.0.s8 %v146
    %v148 = vlaneseq
    %v149 = vshrl.u32 %v148, 7
    %v150 = vsub.s32 %v147, %v149
    %v151 = vrot.slane %v139, %v150
    %152 = vrot.lane.b32.xlu0 %v151, 64
    %v153 = vpop.permute.xlu0 %152
    %v155 = vadd.f32 %v35, %v153
    %v156 = vxor.u32 %v90, 2147483648
    %v157 = vmul.f32 %v156, 1.442695
    %v158 = vpow.pop %v157
    %v159 = vadd.f32 %v158, 1.0
    %v160 = vrcp.pop %v159
    %v161 = vmul.f32 1.0, %v160
    %v162 = vtanh.pop %v90
    %v163 = vmul.f32 %v161, %v27
    %165 = vrot.lane.b32.xlu0 %v162, 96
    %v166 = vpop.permute.xlu0 %165
    %v168 = vmul.f32 %v161, %v166
    %170 = vrot.lane.b32.xlu0 %v168, 16
    %v171 = vpop.permute.xlu0 %170
    %v173 = vadd.f32 %v163, %v171
    %v174 = vtanh.pop %v173
    %176 = vrot.lane.b32.xlu0 %v174, 32
    %v177 = vpop.permute.xlu0 %176
    %v179 = vmul.f32 %v161, %v177
    %v180 = vxor.u32 %v155, 2147483648
    %v181 = vmul.f32 %v180, 1.442695
    %v182 = vpow.pop %v181
    %v183 = vadd.f32 %v182, 1.0
    %v184 = vrcp.pop %v183
    %v185 = vmul.f32 1.0, %v184
    %v186 = vtanh.pop %v155
    %v187 = vmul.f32 %v185, %v28
    %189 = vrot.lane.b32.xlu0 %v186, 96
    %v190 = vpop.permute.xlu0 %189
    %v192 = vmul.f32 %v185, %v190
    %194 = vrot.lane.b32.xlu0 %v192, 16
    %v195 = vpop.permute.xlu0 %194
    %v197 = vadd.f32 %v187, %v195
    %v198 = vtanh.pop %v197
    %200 = vrot.lane.b32.xlu0 %v198, 32
    %v201 = vpop.permute.xlu0 %200
    %v203 = vmul.f32 %v185, %v201
    %v206 = vunpack.c.l.s4 1983009808
    %v207 = vunpack.c.0.s8 %v206
    %v208 = vlaneseq
    %v209 = vshrl.u32 %v208, 7
    %v210 = vsub.s32 %v207, %v209
    %v211 = vrot.slane %v179, %v210
    %212 = vrot.lane.b32.xlu0 %v211, 80
    %v213 = vpop.permute.xlu0 %212
    %s215 = smul.u32 %s20, 2
    %s216 = scalar_lea.vmem %s3, %s215
    %vm217 = vcmask 123904
    %218 = vst.msk [vmem:[%s216] sm:$0x3] %vm217, %v213
    %v221 = vunpack.c.l.s4 1983009808
    %v222 = vunpack.c.0.s8 %v221
    %v223 = vlaneseq
    %v224 = vshrl.u32 %v223, 7
    %v225 = vsub.s32 %v222, %v224
    %v226 = vrot.slane %v203, %v225
    %227 = vrot.lane.b32.xlu0 %v226, 32
    %v228 = vpop.permute.xlu0 %227
    %s230 = smul.u32 %s29, 2
    %s231 = scalar_lea.vmem %s3, %s230
    %vm232 = vcmask 255104
    %233 = vst.msk [vmem:[%s231] sm:$0x3] %vm232, %v228
  $region18: #{forward.28} parent=0 // loop_footer
    %s24 = sadd.s32 1, %s20
  $region19: #{forward.28} parent=0 // loop_footer_branch
    %19 = sbr.rel target = $region15
  $region20: #{forward.28} parent=0 // loop_exit
    _
  // Predicated region
  $region21: #{forward.28} parent=0 // pred_check
    _
  $region22: #{forward.28} parent=0 // pred_check_branch
    %235 = sbr.rel (0) target = $region24
  $region23: #{forward.28} parent=0 // pred_region
    _
  $region24: #{forward.28} parent=0 // pred_fallthru
    _
  // Predicated region
  $region25: #{forward.28} parent=0 // pred_check
    _
  $region26: #{forward.28} parent=0 // pred_check_branch
    %237 = sbr.rel (0) target = $region28
  $region27: #{forward.28} parent=0 // pred_region
    _
  $region28: #{forward.28} parent=0 // pred_fallthru
    _

// kernel: forward.29
$region0: #{forward.29}
  #allocation0 [shape = 'u32[]', space=smem, size = 0x4, offset = 0x4, fixed_abs, tag = 'smem constant byte address 0x4 - core index']
  #allocation1 [shape = 'u32[144,128]{1,0:T(1,128)}', space=vmem, size = 0x12000, scoped, tag = 'internal scratch']
  #allocation2 [shape = 'f32[16,128]{1,0:T(8,128)}', space=vmem, size = 0x2000, scoped, tag = 'scratch operand']
  %s0 = inlined_call_operand.vmem [shape: bf16[16,32], index: 0, kind: input, shape index: {}]
  %s1 = inlined_call_operand.vmem [shape: bf16[32,128], index: 1, kind: input, shape index: {}]
  %s2 = inlined_call_operand.vmem [shape: f32[1,128], index: 2, kind: input, shape index: {}]
  %s3 = inlined_call_operand.vmem [shape: f32[16,128], index: 3, kind: output, shape index: {}]
  %s4 = sld [smem:[#allocation0]]
  $region30: #{forward.29} parent=0
    _
  %s6 = ssub.s32 1, %s4
  %s7 = scalar_select 0, %s6, %s4
  // Predicated region
  $region2: #{forward.29} parent=0 // pred_check
    _
  $region3: #{forward.29} parent=0 // pred_check_branch
    %9 = sbr.rel (0) target = $region5
  $region4: #{forward.29} parent=0 // pred_region
    _
  $region5: #{forward.29} parent=0 // pred_fallthru
    _
  // Predicated region
  $region6: #{forward.29} parent=0 // pred_check
    _
  $region7: #{forward.29} parent=0 // pred_check_branch
    %11 = sbr.rel (0) target = $region9
  $region8: #{forward.29} parent=0 // pred_region
    _
  $region9: #{forward.29} parent=0 // pred_fallthru
    _
  // Predicated region
  $region10: #{forward.29} parent=0 // pred_check
    _
  $region11: #{forward.29} parent=0 // pred_check_branch
    %13 = sbr.rel (0) target = $region13
  $region12: #{forward.29} parent=0 // pred_region
    _
  $region13: #{forward.29} parent=0 // pred_fallthru
    _
  %p15 = scmp.eq.s32.totalorder 0, 0
  // Predicated region
  $region14: #{forward.29} parent=0 // pred_check
    %p16 = pneg %p15
  $region15: #{forward.29} parent=0 // pred_check_branch
    %18 = sbr.rel (%p16) target = $region17
  $region16: #{forward.29} parent=0 // pred_region
    %19 = vst [vmem:[#allocation2] sm:$0xff] 0.0
    %20 = vst [vmem:[#allocation2 + $0x8] sm:$0xff] 0.0
  $region17: #{forward.29} parent=0 // pred_fallthru
    _
  %v21 = vld [vmem:[#allocation2] sm:$0xff]
  %v22 = vld [vmem:[#allocation2 + $0x8] sm:$0xff]
  %v23 = vld [vmem:[%s0] sm:$0xf]
  %v24 = vld [vmem:[%s0 + $0x4] sm:$0xf]
  %v25 = vld [vmem:[%s1] sm:$0xf]
  %v26 = vld [vmem:[%s1 + $0x4] sm:$0xf]
  %v27 = vld [vmem:[%s1 + $0x8] sm:$0xf]
  %v28 = vld [vmem:[%s1 + $0xc] sm:$0xf]
  %v31 = vunpack.c.l.b16 %v23
  %v32 = vunpack.c.l.b16 %v24
  %v33 = vpack.c.b16 %v32, %v31
  %v38 = vunpack.c.l.b16 %v25
  %v39 = vunpack.c.l.b16 %v26
  %v40 = vunpack.c.l.b16 %v27
  %v41 = vunpack.c.l.b16 %v28
  %v42 = vpack.c.b16 %v39, %v38
  %v43 = vpack.c.b16 %v41, %v40
  %vm46 = vcmask 261120
  %v48 = vsel %vm46, %v33, 0
  %50 = vmatprep.subr.bf16.mxu0 0
  %51 = vmatpush1.bf16.msra.mxu0 %v42
  %52 = vmatprep.subr.bf16.mxu0 0
  %53 = vmatpush1.bf16.msra.mxu0 %v43
  %54 = vmatprep.subr.bf16.mxu0 0
  %55 = vmatpush1.bf16.msra.mxu0 0
  %56 = vmatprep.subr.bf16.mxu0 0
  %57 = vmatpush1.bf16.msra.mxu0 0
  %58 = vmatprep.subr.bf16.mxu0 0
  %59 = vmatpush1.bf16.msra.mxu0 0
  %60 = vmatprep.subr.bf16.mxu0 0
  %61 = vmatpush1.bf16.msra.mxu0 0
  %62 = vmatprep.subr.bf16.mxu0 0
  %63 = vmatpush1.bf16.msra.mxu0 0
  %64 = vmatprep.subr.bf16.mxu0 0
  %65 = vmatpush1.bf16.msra.mxu0 0
  %66 = vmatprep.subr.bf16.mxu0 0
  %67 = vmatpush1.bf16.msra.mxu0 0
  %68 = vmatprep.subr.bf16.mxu0 0
  %69 = vmatpush1.bf16.msra.mxu0 0
  %70 = vmatprep.subr.bf16.mxu0 0
  %71 = vmatpush1.bf16.msra.mxu0 0
  %72 = vmatprep.subr.bf16.mxu0 0
  %73 = vmatpush1.bf16.msra.mxu0 0
  %74 = vmatprep.subr.bf16.mxu0 0
  %75 = vmatpush1.bf16.msra.mxu0 0
  %76 = vmatprep.subr.bf16.mxu0 0
  %77 = vmatpush1.bf16.msra.mxu0 0
  %78 = vmatprep.subr.bf16.mxu0 0
  %79 = vmatpush1.bf16.msra.mxu0 0
  %80 = vmatprep.subr.bf16.mxu0 0
  %81 = vmatpush1.bf16.msra.mxu0 0
  %82 = vmatprep.mubr.bf16.mxu0 0
  %83 = vmatmul.mubr.bf16.gmra.mrb[0].mxu0 %v48
  %v84 = vpop.f32.mrb[0].mxu0
  %v85 = vadd.f32 0.0, %v84
  %v86 = vpop.f32.mrb[0].mxu0
  %v87 = vpop.f32.mrb[0].mxu0
  %v88 = vadd.f32 0.0, %v87
  %v89 = vpop.f32.mrb[0].mxu0
  %90 = vdwg.mxu0
  %v91 = vadd.f32 %v21, %v85
  %v92 = vadd.f32 %v22, %v88
  %93 = vst [vmem:[#allocation2] sm:$0xff] %v91
  %94 = vst [vmem:[#allocation2 + $0x8] sm:$0xff] %v92
  // Predicated region
  $region18: #{forward.29} parent=0 // pred_check
    %p95 = pneg %p15
  $region19: #{forward.29} parent=0 // pred_check_branch
    %97 = sbr.rel (%p95) target = $region21
  $region20: #{forward.29} parent=0 // pred_region
    %v98 = vld [vmem:[#allocation2] sm:$0xff]
    %v99 = vld [vmem:[#allocation2 + $0x8] sm:$0xff]
    %v100 = vld [vmem:[%s2] sm:$0x1]
    %v102 = vlaneseq
    %v103 = vshrl.u32 %v102, 7
    %v104 = vsub.s32 0, %v103
    %v105 = vrot.slane %v100, %v104
    %v107 = vadd.f32 %v98, %v105
    %v108 = vadd.f32 %v99, %v105
    %109 = vst [vmem:[%s3] sm:$0xff] %v107
    %110 = vst [vmem:[%s3 + $0x8] sm:$0xff] %v108
  $region21: #{forward.29} parent=0 // pred_fallthru
    _
  // Predicated region
  $region22: #{forward.29} parent=0 // pred_check
    _
  $region23: #{forward.29} parent=0 // pred_check_branch
    %112 = sbr.rel (0) target = $region25
  $region24: #{forward.29} parent=0 // pred_region
    _
  $region25: #{forward.29} parent=0 // pred_fallthru
    _
  // Predicated region
  $region26: #{forward.29} parent=0 // pred_check
    _
  $region27: #{forward.29} parent=0 // pred_check_branch
    %114 = sbr.rel (0) target = $region29
  $region28: #{forward.29} parent=0 // pred_region
    _
  $region29: #{forward.29} parent=0 // pred_fallthru
    _

// kernel: forward.30
$region0: #{forward.30}
  #allocation0 [shape = 'u32[]', space=smem, size = 0x4, offset = 0x4, fixed_abs, tag = 'smem constant byte address 0x4 - core index']
  #allocation1 [shape = 'u32[144,128]{1,0:T(1,128)}', space=vmem, size = 0x12000, scoped, tag = 'internal scratch']
  %s0 = inlined_call_operand.vmem [shape: f32[8,2,128], index: 0, kind: input, shape index: {}]
  %s1 = inlined_call_operand.vmem [shape: f32[8,2,1], index: 1, kind: input, shape index: {}]
  %s2 = inlined_call_operand.vmem [shape: f32[2,1], index: 2, kind: input, shape index: {}]
  %s3 = inlined_call_operand.vmem [shape: f32[128,128], index: 3, kind: input, shape index: {}]
  %s4 = inlined_call_operand.vmem [shape: f32[1,128], index: 4, kind: input, shape index: {}]
  %s5 = inlined_call_operand.vmem [shape: f32[1,128], index: 5, kind: input, shape index: {}]
  %s6 = inlined_call_operand.hbm [shape: f32[1,1], index: 6, kind: output, shape index: {}]
  %s7 = sld [smem:[#allocation0]]
  $region41: #{forward.30} parent=0
    _
  %s9 = ssub.s32 1, %s7
  %s10 = scalar_select 0, %s9, %s7
  $region1: #{forward.30} parent=0
    #allocation2 [shape = 'u8[512]{0}', space=vmem, size = 0x400, scoped, tag = 'output window, operand 0, single buffered']
    #allocation3 [shape = 's32[1]{0}', space=sflag, size = 0x4, scoped, tag = 'scoped memory for forward.30']
    %11 = vsyncpa [#allocation3], 0
    // Predicated region
    $region2: #{forward.30} parent=1 // pred_check
      _
    $region3: #{forward.30} parent=1 // pred_check_branch
      %13 = sbr.rel (0) target = $region5
    $region4: #{forward.30} parent=1 // pred_region
      _
    $region5: #{forward.30} parent=1 // pred_fallthru
      _
    // Predicated region
    $region6: #{forward.30} parent=1 // pred_check
      _
    $region7: #{forward.30} parent=1 // pred_check_branch
      %15 = sbr.rel (0) target = $region9
    $region8: #{forward.30} parent=1 // pred_region
      _
    $region9: #{forward.30} parent=1 // pred_fallthru
      _
    // Predicated region
    $region10: #{forward.30} parent=1 // pred_check
      _
    $region11: #{forward.30} parent=1 // pred_check_branch
      %17 = sbr.rel (0) target = $region13
    $region12: #{forward.30} parent=1 // pred_region
      _
    $region13: #{forward.30} parent=1 // pred_fallthru
      _
    // Predicated region
    $region14: #{forward.30} parent=1 // pred_check
      _
    $region15: #{forward.30} parent=1 // pred_check_branch
      %19 = sbr.rel (0) target = $region17
    $region16: #{forward.30} parent=1 // pred_region
      _
    $region17: #{forward.30} parent=1 // pred_fallthru
      _
    // Predicated region
    $region18: #{forward.30} parent=1 // pred_check
      _
    $region19: #{forward.30} parent=1 // pred_check_branch
      %21 = sbr.rel (0) target = $region21
    $region20: #{forward.30} parent=1 // pred_region
      _
    $region21: #{forward.30} parent=1 // pred_fallthru
      _
    // Predicated region
    $region22: #{forward.30} parent=1 // pred_check
      _
    $region23: #{forward.30} parent=1 // pred_check_branch
      %23 = sbr.rel (0) target = $region25
    $region24: #{forward.30} parent=1 // pred_region
      _
    $region25: #{forward.30} parent=1 // pred_fallthru
      _
    %v24 = vld [vmem:[%s3] sm:$0xff]
    %v25 = vld [vmem:[%s3 + $0x8] sm:$0xff]
    %v26 = vld [vmem:[%s3 + $0x10] sm:$0xff]
    %v27 = vld [vmem:[%s3 + $0x18] sm:$0xff]
    %v28 = vld [vmem:[%s3 + $0x20] sm:$0xff]
    %v29 = vld [vmem:[%s3 + $0x28] sm:$0xff]
    %v30 = vld [vmem:[%s3 + $0x30] sm:$0xff]
    %v31 = vld [vmem:[%s3 + $0x38] sm:$0xff]
    %v32 = vld [vmem:[%s3 + $0x40] sm:$0xff]
    %v33 = vld [vmem:[%s3 + $0x48] sm:$0xff]
    %v34 = vld [vmem:[%s3 + $0x50] sm:$0xff]
    %v35 = vld [vmem:[%s3 + $0x58] sm:$0xff]
    %v36 = vld [vmem:[%s3 + $0x60] sm:$0xff]
    %v37 = vld [vmem:[%s3 + $0x68] sm:$0xff]
    %v38 = vld [vmem:[%s3 + $0x70] sm:$0xff]
    %v39 = vld [vmem:[%s3 + $0x78] sm:$0xff]
    %v40 = vld [vmem:[%s4] sm:$0x1]
    %v41 = vld [vmem:[%s0] sm:$0x3]
    %v43 = vlaneseq
    %v44 = vshrl.u32 %v43, 7
    %v45 = vsub.s32 0, %v44
    %v46 = vrot.slane %v40, %v45
    %v48 = vadd.f32 %v46, %v41
    loop: start=1, step=1, limit=8
    $region26: #{forward.30} parent=1 // loop_pre_header
      _
    $region27: #{forward.30} parent=1 // loop_header
      %s50 = sphi 1, %s54
      %p51 = scmp.ge.s32.totalorder %s50, 8
      %v55 = vphi %v48, %v149
    $region28: #{forward.30} parent=1 // loop_header_branch
      %53 = sbr.rel (%p51) target = $region32
    $region29: #{forward.30} parent=1 // loop_body
      %vm56 = vcmask 1041408
      %v57 = vsel %vm56, %v55, -inf
      %58 = vmax.xlane.f32.xlu0 %v57
      %v59 = vpop.xlane.xlu0 %58
      %v60 = vsub.f32 %v55, %v59
      %v61 = vmul.f32 %v60, 1.442695
      %v62 = vpow.pop %v61
      %63 = vmatprep.subr.mxu0 0.0
      %64 = vmatpush1.msra.mxu0 %v24
      %65 = vmatprep.subr.mxu0 0.0
      %66 = vmatpush1.msra.mxu0 %v25
      %67 = vmatprep.subr.mxu0 0.0
      %68 = vmatpush1.msra.mxu0 %v26
      %69 = vmatprep.subr.mxu0 0.0
      %70 = vmatpush1.msra.mxu0 %v27
      %71 = vmatprep.subr.mxu0 0.0
      %72 = vmatpush1.msra.mxu0 %v28
      %73 = vmatprep.subr.mxu0 0.0
      %74 = vmatpush1.msra.mxu0 %v29
      %75 = vmatprep.subr.mxu0 0.0
      %76 = vmatpush1.msra.mxu0 %v30
      %77 = vmatprep.subr.mxu0 0.0
      %78 = vmatpush1.msra.mxu0 %v31
      %79 = vmatprep.subr.mxu0 0.0
      %80 = vmatpush1.msra.mxu0 %v32
      %81 = vmatprep.subr.mxu0 0.0
      %82 = vmatpush1.msra.mxu0 %v33
      %83 = vmatprep.subr.mxu0 0.0
      %84 = vmatpush1.msra.mxu0 %v34
      %85 = vmatprep.subr.mxu0 0.0
      %86 = vmatpush1.msra.mxu0 %v35
      %87 = vmatprep.subr.mxu0 0.0
      %88 = vmatpush1.msra.mxu0 %v36
      %89 = vmatprep.subr.mxu0 0.0
      %90 = vmatpush1.msra.mxu0 %v37
      %91 = vmatprep.subr.mxu0 0.0
      %92 = vmatpush1.msra.mxu0 %v38
      %93 = vmatprep.subr.mxu0 0.0
      %94 = vmatpush1.msra.mxu0 %v39
      %95 = vmatprep.subr.mxu0 0.0
      %96 = vmatpush1.msra.mxu0 0.0
      %97 = vmatprep.subr.mxu0 0.0
      %98 = vmatpush1.msra.mxu0 0.0
      %99 = vmatprep.subr.mxu0 0.0
      %100 = vmatpush1.msra.mxu0 0.0
      %101 = vmatprep.subr.mxu0 0.0
      %102 = vmatpush1.msra.mxu0 0.0
      %103 = vmatprep.subr.mxu0 0.0
      %104 = vmatpush1.msra.mxu0 0.0
      %105 = vmatprep.subr.mxu0 0.0
      %106 = vmatpush1.msra.mxu0 0.0
      %107 = vmatprep.subr.mxu0 0.0
      %108 = vmatpush1.msra.mxu0 0.0
      %109 = vmatprep.subr.mxu0 0.0
      %110 = vmatpush1.msra.mxu0 0.0
      %111 = vmatprep.subr.mxu0 0.0
      %112 = vmatpush1.msra.mxu0 0.0
      %113 = vmatprep.subr.mxu0 0.0
      %114 = vmatpush1.msra.mxu0 0.0
      %115 = vmatprep.subr.mxu0 0.0
      %116 = vmatpush1.msra.mxu0 0.0
      %117 = vmatprep.subr.mxu0 0.0
      %118 = vmatpush1.msra.mxu0 0.0
      %119 = vmatprep.subr.mxu0 0.0
      %120 = vmatpush1.msra.mxu0 0.0
      %121 = vmatprep.subr.mxu0 0.0
      %122 = vmatpush1.msra.mxu0 0.0
      %123 = vmatprep.subr.mxu0 0.0
      %124 = vmatpush1.msra.mxu0 0.0
      %125 = vmatprep.subr.mxu0 0.0
      %126 = vmatpush1.msra.mxu0 0.0
      %127 = vmatprep.mubr.f32.mxu0 0.0
      %128 = vmatmul.mubr.f32.gmra.mrb[0].mxu0 %v62
      %v129 = vpop.f32.mrb[0].mxu0
      %v130 = vadd.f32 0.0, %v129
      %v131 = vpop.f32.mrb[0].mxu0
      %132 = vdwg.mxu0
      %v133 = vmax.f32 %v130, 1e-30
      %v134 = vlog2.pop %v133
      %v135 = vmul.f32 %v134, 0.6931472
      %v136 = vadd.f32 %v59, %v135
      %s137 = smul.u32 %s50, 2
      %s138 = scalar_lea.vmem %s0, %s137
      %v139 = vld [vmem:[%s138] sm:$0x3]
      %v140 = vadd.f32 %v136, %v139
      %s141 = scalar_lea.vmem %s1, %s137
      %v142 = vld [vmem:[%s141] sm:$0x3]
      %vm143 = vcmp.gt.f32.partialorder %v142, 0.0
      %v144 = vsel %vm143, 1, 0
      %145 = vset.pattern.permute.xlu0 0
      %146 = vperm.xlu0 %145, %v144
      %v147 = vpop.permute.xlu0 %146
      %vm148 = vcmp.eq.s32.totalorder %v147, 1
      %v149 = vsel %vm148, %v140, %v55
    $region30: #{forward.30} parent=1 // loop_footer
      %s54 = sadd.s32 1, %s50
    $region31: #{forward.30} parent=1 // loop_footer_branch
      %49 = sbr.rel target = $region27
    $region32: #{forward.30} parent=1 // loop_exit
      _
    %v150 = vld [vmem:[%s5] sm:$0x1]
    %v152 = vlaneseq
    %v153 = vshrl.u32 %v152, 7
    %v154 = vsub.s32 0, %v153
    %v155 = vrot.slane %v150, %v154
    %v157 = vadd.f32 %v55, %v155
    %vm158 = vcmask 1041408
    %v159 = vsel %vm158, %v157, -inf
    %160 = vmax.xlane.f32.xlu0 %v159
    %v161 = vpop.xlane.xlu0 %160
    %v162 = vsub.f32 %v157, %v161
    %v163 = vmul.f32 %v162, 1.442695
    %v164 = vpow.pop %v163
    %v165 = vsel %vm158, %v164, 0.0
    %166 = vadd.xlane.f32.xlu0 %v165
    %v167 = vpop.xlane.xlu0 %166
    %v168 = vlog2.pop %v167
    %v169 = vmul.f32 %v168, 0.6931472
    %v170 = vadd.f32 %v161, %v169
    %v171 = vld [vmem:[%s2] sm:$0x3]
    %v172 = vsub.f32 %v170, %v171
    %vm173 = vcmask 1024
    %v174 = vsel %vm173, %v172, 0.0
    %175 = vadd.xlane.f32.xlu0 %v174
    %v176 = vpop.xlane.xlu0 %175
    %v177 = vrot.slane %v176, 4
    %v178 = vadd.f32 %v176, %v177
    %v179 = vrot.slane %v178, 2
    %v180 = vadd.f32 %v178, %v179
    %v181 = vrot.slane %v180, 1
    %v182 = vadd.f32 %v180, %v181
    %s183 = vtos %v182
    %v184 = vrcp.pop 2.0
    %s185 = vtos %v184
    %s186 = smul.f32 %s183, %s185
    %v187 = vstv %s186
    %vm188 = vcmask 0
    %189 = vst.msk [vmem:[#allocation2] sm:$0x1] %vm188, %v187
    // Predicated region
    $region33: #{forward.30} parent=1 // pred_check
      _
    $region34: #{forward.30} parent=1 // pred_check_branch
      %191 = sbr.rel (0) target = $region36
    $region35: #{forward.30} parent=1 // pred_region
      %s193 = ssub.s32 16, 16
      %194 = vsyncadd [#allocation3], %s193
      %s196 = sshll.u32 [#allocation2], 4
      %s197 = int_to_ptr.vmem [resolvable:$true] %s196
      %199 = dma.vmem_to_hbm [thread:$0]  %s197, 16, %s6, [#allocation3]
    $region36: #{forward.30} parent=1 // pred_fallthru
      _
    // Predicated region
    $region37: #{forward.30} parent=1 // pred_check
      _
    $region38: #{forward.30} parent=1 // pred_check_branch
      %201 = sbr.rel (0) target = $region40
    $region39: #{forward.30} parent=1 // pred_region
      %202 = dma.done [#allocation3], 16
    $region40: #{forward.30} parent=1 // pred_fallthru
      _
    %203 = vsyncpa [#allocation3], 1

// kernel: forward.31
$region0: #{forward.31}
  #allocation0 [shape = 'u32[]', space=smem, size = 0x4, offset = 0x4, fixed_abs, tag = 'smem constant byte address 0x4 - core index']
  #allocation1 [shape = 'u32[144,128]{1,0:T(1,128)}', space=vmem, size = 0x12000, scoped, tag = 'internal scratch']
  %s0 = inlined_call_operand.vmem [shape: f32[16,128], index: 0, kind: input, shape index: {}]
  %s1 = inlined_call_operand.vmem [shape: s32[16,1], index: 1, kind: input, shape index: {}]
  %s2 = inlined_call_operand.vmem [shape: f32[16,1], index: 2, kind: input, shape index: {}]
  %s3 = inlined_call_operand.hbm [shape: f32[1,1], index: 3, kind: output, shape index: {}]
  %s4 = sld [smem:[#allocation0]]
  $region22: #{forward.31} parent=0
    _
  %s6 = ssub.s32 1, %s4
  %s7 = scalar_select 0, %s6, %s4
  $region1: #{forward.31} parent=0
    #allocation2 [shape = 'u8[512]{0}', space=vmem, size = 0x400, scoped, tag = 'output window, operand 0, single buffered']
    #allocation3 [shape = 's32[1]{0}', space=sflag, size = 0x4, scoped, tag = 'scoped memory for forward.31']
    %8 = vsyncpa [#allocation3], 0
    // Predicated region
    $region2: #{forward.31} parent=1 // pred_check
      _
    $region3: #{forward.31} parent=1 // pred_check_branch
      %10 = sbr.rel (0) target = $region5
    $region4: #{forward.31} parent=1 // pred_region
      _
    $region5: #{forward.31} parent=1 // pred_fallthru
      _
    // Predicated region
    $region6: #{forward.31} parent=1 // pred_check
      _
    $region7: #{forward.31} parent=1 // pred_check_branch
      %12 = sbr.rel (0) target = $region9
    $region8: #{forward.31} parent=1 // pred_region
      _
    $region9: #{forward.31} parent=1 // pred_fallthru
      _
    // Predicated region
    $region10: #{forward.31} parent=1 // pred_check
      _
    $region11: #{forward.31} parent=1 // pred_check_branch
      %14 = sbr.rel (0) target = $region13
    $region12: #{forward.31} parent=1 // pred_region
      _
    $region13: #{forward.31} parent=1 // pred_fallthru
      _
    %v15 = vld [vmem:[%s0] sm:$0xff]
    %v16 = vld [vmem:[%s0 + $0x8] sm:$0xff]
    %v17 = vld [vmem:[%s1] sm:$0xff]
    %v18 = vld [vmem:[%s1 + $0x8] sm:$0xff]
    %v19 = vld [vmem:[%s2] sm:$0xff]
    %v20 = vld [vmem:[%s2 + $0x8] sm:$0xff]
    %21 = vmax.xlane.f32.xlu0 %v15
    %v22 = vpop.xlane.xlu0 %21
    %23 = vmax.xlane.f32.xlu0 %v16
    %v24 = vpop.xlane.xlu0 %23
    %v25 = vsub.f32 %v15, %v22
    %v26 = vsub.f32 %v16, %v24
    %v27 = vmul.f32 %v25, 1.442695
    %v28 = vpow.pop %v27
    %v29 = vmul.f32 %v26, 1.442695
    %v30 = vpow.pop %v29
    %31 = vadd.xlane.f32.xlu0 %v28
    %v32 = vpop.xlane.xlu0 %31
    %33 = vadd.xlane.f32.xlu0 %v30
    %v34 = vpop.xlane.xlu0 %33
    %v35 = vlog2.pop %v32
    %v36 = vmul.f32 %v35, 0.6931472
    %v37 = vlog2.pop %v34
    %v38 = vmul.f32 %v37, 0.6931472
    %v39 = vadd.f32 %v22, %v36
    %v40 = vadd.f32 %v24, %v38
    %v41 = vlaneseq
    %v42 = vand.u32 %v41, 127
    %43 = vset.pattern.permute.xlu0 0
    %44 = vperm.xlu0 %43, %v17
    %v45 = vpop.permute.xlu0 %44
    %46 = vset.pattern.permute.xlu0 0
    %47 = vperm.xlu0 %46, %v18
    %v48 = vpop.permute.xlu0 %47
    %vm49 = vcmp.eq.s32.totalorder %v42, %v45
    %vm50 = vcmp.eq.s32.totalorder %v42, %v48
    %v51 = vsel %vm49, %v15, 0.0
    %v52 = vsel %vm50, %v16, 0.0
    %53 = vadd.xlane.f32.xlu0 %v51
    %v54 = vpop.xlane.xlu0 %53
    %55 = vadd.xlane.f32.xlu0 %v52
    %v56 = vpop.xlane.xlu0 %55
    %v57 = vsub.f32 %v39, %v54
    %v58 = vsub.f32 %v40, %v56
    %v59 = vsub.f32 0.0, %v57
    %v60 = vsub.f32 0.0, %v58
    %v61 = vmul.f32 %v59, 1.442695
    %v62 = vpow.pop %v61
    %v63 = vmul.f32 %v60, 1.442695
    %v64 = vpow.pop %v63
    %v65 = vsub.f32 1.0, %v62
    %v66 = vsub.f32 1.0, %v64
    %v67 = vmul.f32 %v65, %v65
    %v68 = vmul.f32 %v66, %v66
    %v69 = vmul.f32 %v67, %v57
    %v70 = vmul.f32 %v68, %v58
    %v71 = vmul.f32 %v69, %v19
    %v72 = vmul.f32 %v70, %v20
    %vm73 = vcmask 7168
    %v74 = vsel %vm73, %v71, 0.0
    %v75 = vsel %vm73, %v72, 0.0
    %v76 = vadd.f32 %v74, %v75
    %77 = vadd.xlane.f32.xlu0 %v76
    %v78 = vpop.xlane.xlu0 %77
    %v79 = vrot.slane %v78, 4
    %v80 = vadd.f32 %v78, %v79
    %v81 = vrot.slane %v80, 2
    %v82 = vadd.f32 %v80, %v81
    %v83 = vrot.slane %v82, 1
    %v84 = vadd.f32 %v82, %v83
    %s85 = vtos %v84
    %v86 = vsel %vm73, %v19, 0.0
    %v87 = vsel %vm73, %v20, 0.0
    %v88 = vadd.f32 %v86, %v87
    %89 = vadd.xlane.f32.xlu0 %v88
    %v90 = vpop.xlane.xlu0 %89
    %v91 = vrot.slane %v90, 4
    %v92 = vadd.f32 %v90, %v91
    %v93 = vrot.slane %v92, 2
    %v94 = vadd.f32 %v92, %v93
    %v95 = vrot.slane %v94, 1
    %v96 = vadd.f32 %v94, %v95
    %s97 = vtos %v96
    %v98 = vstv %s97
    %v99 = vrcp.pop %v98
    %s100 = vtos %v99
    %s101 = smul.f32 %s85, %s100
    %v102 = vstv %s101
    %vm103 = vcmask 0
    %104 = vst.msk [vmem:[#allocation2] sm:$0x1] %vm103, %v102
    // Predicated region
    $region14: #{forward.31} parent=1 // pred_check
      _
    $region15: #{forward.31} parent=1 // pred_check_branch
      %106 = sbr.rel (0) target = $region17
    $region16: #{forward.31} parent=1 // pred_region
      %s108 = ssub.s32 16, 16
      %109 = vsyncadd [#allocation3], %s108
      %s111 = sshll.u32 [#allocation2], 4
      %s112 = int_to_ptr.vmem [resolvable:$true] %s111
      %114 = dma.vmem_to_hbm [thread:$0]  %s112, 16, %s3, [#allocation3]
    $region17: #{forward.31} parent=1 // pred_fallthru
      _
    // Predicated region
    $region18: #{forward.31} parent=1 // pred_check
      _
    $region19: #{forward.31} parent=1 // pred_check_branch
      %116 = sbr.rel (0) target = $region21
    $region20: #{forward.31} parent=1 // pred_region
      %117 = dma.done [#allocation3], 16
    $region21: #{forward.31} parent=1 // pred_fallthru
      _
    %118 = vsyncpa [#allocation3], 1

</llo_original>
